<compile_context>
chip_gen: v5e
topology: v5e:2x2
jax: 0.10.0
libtpu: 0.0.40
codegen_flags: <defaults>
</compile_context>

<pallas_src>
import jax
import jax.numpy as jnp
from jax.experimental import pallas as pl
from jax.experimental.pallas import tpu as pltpu

HIDDEN = 64          # per-critic hidden width
H2 = 2 * HIDDEN      # fused width (both critics side by side on the lane axis)
LN_EPS = 1e-5
MAX_TILE_B = 1024    # batch rows per grid step

HIGH = jax.lax.Precision.HIGHEST


def _round_up(x, m):
    return ((x + m - 1) // m) * m


def q_critic_kernel(state_ref, action_ref,
                    w1s_ref, w1a_ref, w2_ref, w3_ref,
                    pavg_ref, prow_ref,
                    q_ref):
    """Fused twin-critic MLP on one batch tile.

    state_ref : [TB, S]      action_ref : [TB, A]
    w1s_ref   : [S, 128]     w1a_ref    : [A, 128]   (W1 split over input dim)
    w2_ref    : [128, 128]   block-diagonal
    w3_ref    : [128, 2]     column 0 -> q1, column 1 -> q2
    pavg_ref  : [128, 128]   block-averaging matrix (1/64 within each 64-lane half)
    prow_ref  : [8, 128]     rows: b1, g1, be1, b2, g2, be2, b3(pad), 0
    q_ref     : [TB, 2]
    """
    pavg = pavg_ref[...]
    prow = prow_ref[...]
    b1, g1, be1 = prow[0:1, :], prow[1:2, :], prow[2:3, :]
    b2, g2, be2 = prow[3:4, :], prow[4:5, :], prow[5:6, :]
    b3 = prow[6:7, 0:2]

    def layernorm_per_half(x, gamma, beta):
        # Per-half LayerNorm with statistics computed on the MXU:
        # mu/var come back already broadcast across each 64-lane half.
        mu = jnp.dot(x, pavg, precision=HIGH, preferred_element_type=jnp.float32)
        xc = x - mu
        var = jnp.dot(xc * xc, pavg, precision=HIGH,
                      preferred_element_type=jnp.float32)
        inv = jax.lax.rsqrt(var + LN_EPS)          # EUP
        return xc * inv * gamma + beta

    state = state_ref[...].astype(jnp.float32)
    action = action_ref[...].astype(jnp.float32)

    # Fused Linear(S+A -> 128) without materializing concat([state, action]).
    h = (jnp.dot(state, w1s_ref[...], precision=HIGH,
                 preferred_element_type=jnp.float32)
         + jnp.dot(action, w1a_ref[...], precision=HIGH,
                   preferred_element_type=jnp.float32)
         + b1)
    # Dropout(0.01): identity in eval mode.
    h = jnp.maximum(layernorm_per_half(h, g1, be1), 0.0)

    # Fused block-diagonal Linear(128 -> 128).
    h = jnp.dot(h, w2_ref[...], precision=HIGH,
                preferred_element_type=jnp.float32) + b2
    h = jnp.maximum(layernorm_per_half(h, g2, be2), 0.0)

    # Fused Linear(128 -> 2): column 0 = q1, column 1 = q2.
    q = jnp.dot(h, w3_ref[...], precision=HIGH,
                preferred_element_type=jnp.float32) + b3
    q_ref[...] = q.astype(q_ref.dtype)


def init_params(key, state_dim, action_dim):
    """Per-net parameters mimicking PyTorch defaults
    (Linear: U(-1/sqrt(fan_in), ...); LayerNorm: gamma=1, beta=0).
    Weights are stored pre-transposed [in, out], stacked over the 2 critics.
    """
    d_in = state_dim + action_dim
    keys = jax.random.split(key, 6)

    def lin(kw, kb, fan_in, fan_out):
        bound = 1.0 / jnp.sqrt(jnp.float32(fan_in))
        w = jax.random.uniform(kw, (2, fan_in, fan_out), jnp.float32, -bound, bound)
        b = jax.random.uniform(kb, (2, 1, fan_out), jnp.float32, -bound, bound)
        return w, b

    w1, b1 = lin(keys[0], keys[1], d_in, HIDDEN)
    w2, b2 = lin(keys[2], keys[3], HIDDEN, HIDDEN)
    w3, b3 = lin(keys[4], keys[5], HIDDEN, 1)

    ones = jnp.ones((2, 1, HIDDEN), jnp.float32)
    zeros = jnp.zeros((2, 1, HIDDEN), jnp.float32)
    return dict(w1=w1, b1=b1, g1=ones, be1=zeros,
                w2=w2, b2=b2, g2=ones, be2=zeros,
                w3=w3, b3=b3)


def pack_params(params, state_dim, action_dim):
    """One-time repack into the fused 128-lane layout used by the kernel."""
    w1 = params["w1"]                                   # [2, D, 64]
    w1cat = jnp.concatenate([w1[0], w1[1]], axis=-1)    # [D, 128]
    w1s = w1cat[:state_dim]                             # [S, 128]
    w1a = w1cat[state_dim:]                             # [A, 128]

    w2 = params["w2"]                                   # [2, 64, 64]
    w2cat = (jnp.zeros((H2, H2), jnp.float32)
             .at[:HIDDEN, :HIDDEN].set(w2[0])
             .at[HIDDEN:, HIDDEN:].set(w2[1]))

    w3 = params["w3"]                                   # [2, 64, 1]
    w3cat = (jnp.zeros((H2, 2), jnp.float32)
             .at[:HIDDEN, 0:1].set(w3[0])
             .at[HIDDEN:, 1:2].set(w3[1]))

    def cat_row(p):                                     # [2,1,64] -> [128]
        return jnp.concatenate([p[0, 0], p[1, 0]], axis=-1)

    b3row = (jnp.zeros((H2,), jnp.float32)
             .at[0].set(params["b3"][0, 0, 0])
             .at[1].set(params["b3"][1, 0, 0]))

    prow = jnp.stack([cat_row(params["b1"]), cat_row(params["g1"]),
                      cat_row(params["be1"]),
                      cat_row(params["b2"]), cat_row(params["g2"]),
                      cat_row(params["be2"]),
                      b3row, jnp.zeros((H2,), jnp.float32)], axis=0)  # [8, 128]

    # Block-averaging matrix for MXU-based per-half LayerNorm statistics.
    pavg = (jnp.zeros((H2, H2), jnp.float32)
            .at[:HIDDEN, :HIDDEN].set(1.0 / HIDDEN)
            .at[HIDDEN:, HIDDEN:].set(1.0 / HIDDEN))

    return dict(w1s=w1s, w1a=w1a, w2=w2cat, w3=w3cat, pavg=pavg, prow=prow)


def q_critic_forward(state, action, fused):
    """Returns (q1, q2), each [B, 1] float32."""
    state = state.astype(jnp.float32)
    action = action.astype(jnp.float32)
    B, S = state.shape
    A = action.shape[1]

    # Balanced, sublane-aligned batch tiles; force >= 2 grid steps whenever
    # possible so v7x's two TensorCores both get work on the "parallel" axis.
    min_tiles = 2 if B >= 16 else 1
    num_tiles = max(pl.cdiv(B, MAX_TILE_B), min_tiles)
    tile_b = _round_up(pl.cdiv(B, num_tiles), 8)
    grid = (pl.cdiv(B, tile_b),)

    def row_spec(shape):
        return pl.BlockSpec(shape, lambda i: (i, 0))

    def const_spec(shape):
        return pl.BlockSpec(shape, lambda i: (0, 0))     # weights stay resident

    flops = 2 * B * ((S + A) * H2 + 3 * H2 * H2 + H2 * 2) + 20 * B * H2
    bytes_accessed = 4 * (B * (S + A) + B * 2
                          + (S + A) * H2 + 2 * H2 * H2 + H2 * 2 + 8 * H2)
    cost = pl.CostEstimate(flops=flops, transcendentals=2 * B * H2,
                           bytes_accessed=bytes_accessed)

    q = pl.pallas_call(
        q_critic_kernel,
        out_shape=jax.ShapeDtypeStruct((B, 2), jnp.float32),
        grid=grid,
        in_specs=[
            row_spec((tile_b, S)), row_spec((tile_b, A)),
            const_spec((S, H2)), const_spec((A, H2)),
            const_spec((H2, H2)),                 # w2
            const_spec((H2, 2)),                  # w3
            const_spec((H2, H2)),                 # pavg (LN stats matrix)
            const_spec((8, H2)),                  # packed row params
        ],
        out_specs=row_spec((tile_b, 2)),
        compiler_params=pltpu.CompilerParams(dimension_semantics=("parallel",)),
        cost_estimate=cost,
    )(state, action,
      fused["w1s"], fused["w1a"], fused["w2"], fused["w3"],
      fused["pavg"], fused["prow"])

    return q[:, 0:1], q[:, 1:2]


def _reference_forward(state, action, params):
    """Plain-JAX twin-net reference (same math as the PyTorch module, eval mode)."""
    sa = jnp.concatenate([state, action], axis=-1).astype(jnp.float32)

    def ln(x, g, b):
        mu = jnp.mean(x, axis=-1, keepdims=True)
        var = jnp.mean((x - mu) ** 2, axis=-1, keepdims=True)
        return (x - mu) / jnp.sqrt(var + LN_EPS) * g + b

    def net(i):
        h = sa @ params["w1"][i] + params["b1"][i]
        h = jnp.maximum(ln(h, params["g1"][i], params["be1"][i]), 0.0)
        h = h @ params["w2"][i] + params["b2"][i]
        h = jnp.maximum(ln(h, params["g2"][i], params["be2"][i]), 0.0)
        return h @ params["w3"][i] + params["b3"][i]

    return net(0), net(1)


if __name__ == "__main__":
    state_dim, action_dim, batch = 16, 4, 24   # batch=24 exercises 2 grid steps + row clipping

    key = jax.random.PRNGKey(0)
    k_params, k_state, k_action = jax.random.split(key, 3)

    params = init_params(k_params, state_dim, action_dim)
    fused = pack_params(params, state_dim, action_dim)

    state = jax.random.normal(k_state, (batch, state_dim), jnp.float32)
    action = jax.random.normal(k_action, (batch, action_dim), jnp.float32)

    q1, q2 = q_critic_forward(state, action, fused)
    jax.block_until_ready((q1, q2))

    r1, r2 = _reference_forward(state, action, params)
    assert q1.shape == (batch, 1) and q2.shape == (batch, 1)
    assert jnp.allclose(q1, r1, atol=1e-4, rtol=1e-4)
    assert jnp.allclose(q2, r2, atol=1e-4, rtol=1e-4)

    # TODO(synk): Dropout(p=0.01) is identity here (eval-mode parity); a PRNG
    # path (pltpu.prng_seed / stateful_bernoulli) would be needed for train().
    print("KERNEL_OK")
</pallas_src>

<mosaic_0001>
module attributes {stable_mosaic.version = 11 : i64} {
  func.func @q_critic_kernel(%arg0: i32, %arg1: memref<16x16xf32, #tpu.memory_space<vmem>>, %arg2: memref<16x4xf32, #tpu.memory_space<vmem>>, %arg3: memref<16x128xf32, #tpu.memory_space<vmem>>, %arg4: memref<4x128xf32, #tpu.memory_space<vmem>>, %arg5: memref<128x128xf32, #tpu.memory_space<vmem>>, %arg6: memref<128x2xf32, #tpu.memory_space<vmem>>, %arg7: memref<128x128xf32, #tpu.memory_space<vmem>>, %arg8: memref<8x128xf32, #tpu.memory_space<vmem>>, %arg9: memref<16x2xf32, #tpu.memory_space<vmem>>) attributes {dimension_semantics = [#tpu.dimension_semantics<parallel>], iteration_bounds = array<i64: 2>, scalar_prefetch = 0 : i64, scratch_operands = 0 : i64, tpu.core_type = #tpu.core_type<tc>, window_params = [{transform_indices = @transform_0, window_bounds = array<i64: 16, 16>}, {transform_indices = @transform_1, window_bounds = array<i64: 16, 4>}, {pipeline_mode = #tpu.pipeline_mode<synchronous>, transform_indices = @transform_2, window_bounds = array<i64: 16, 128>}, {pipeline_mode = #tpu.pipeline_mode<synchronous>, transform_indices = @transform_3, window_bounds = array<i64: 4, 128>}, {pipeline_mode = #tpu.pipeline_mode<synchronous>, transform_indices = @transform_4, window_bounds = array<i64: 128, 128>}, {pipeline_mode = #tpu.pipeline_mode<synchronous>, transform_indices = @transform_5, window_bounds = array<i64: 128, 2>}, {pipeline_mode = #tpu.pipeline_mode<synchronous>, transform_indices = @transform_6, window_bounds = array<i64: 128, 128>}, {pipeline_mode = #tpu.pipeline_mode<synchronous>, transform_indices = @transform_7, window_bounds = array<i64: 8, 128>}, {transform_indices = @transform_8, window_bounds = array<i64: 16, 2>}]} {
    %c0 = arith.constant 0 : index
    %c0_0 = arith.constant 0 : index
    %0 = vector.load %arg7[%c0, %c0_0] : memref<128x128xf32, #tpu.memory_space<vmem>>, vector<128x128xf32>
    %c0_1 = arith.constant 0 : index
    %c0_2 = arith.constant 0 : index
    %1 = vector.load %arg8[%c0_1, %c0_2] : memref<8x128xf32, #tpu.memory_space<vmem>>, vector<8x128xf32>
    %2 = vector.extract_strided_slice %1 {offsets = [0, 0], sizes = [1, 128], strides = [1, 1]} : vector<8x128xf32> to vector<1x128xf32>
    %3 = vector.extract_strided_slice %1 {offsets = [1, 0], sizes = [1, 128], strides = [1, 1]} : vector<8x128xf32> to vector<1x128xf32>
    %4 = vector.extract_strided_slice %1 {offsets = [2, 0], sizes = [1, 128], strides = [1, 1]} : vector<8x128xf32> to vector<1x128xf32>
    %5 = vector.extract_strided_slice %1 {offsets = [3, 0], sizes = [1, 128], strides = [1, 1]} : vector<8x128xf32> to vector<1x128xf32>
    %6 = vector.extract_strided_slice %1 {offsets = [4, 0], sizes = [1, 128], strides = [1, 1]} : vector<8x128xf32> to vector<1x128xf32>
    %7 = vector.extract_strided_slice %1 {offsets = [5, 0], sizes = [1, 128], strides = [1, 1]} : vector<8x128xf32> to vector<1x128xf32>
    %8 = vector.extract_strided_slice %1 {offsets = [6, 0], sizes = [1, 2], strides = [1, 1]} : vector<8x128xf32> to vector<1x2xf32>
    %c0_3 = arith.constant 0 : index
    %c0_4 = arith.constant 0 : index
    %9 = vector.load %arg1[%c0_3, %c0_4] : memref<16x16xf32, #tpu.memory_space<vmem>>, vector<16x16xf32>
    %c0_5 = arith.constant 0 : index
    %c0_6 = arith.constant 0 : index
    %10 = vector.load %arg2[%c0_5, %c0_6] : memref<16x4xf32, #tpu.memory_space<vmem>>, vector<16x4xf32>
    %c0_7 = arith.constant 0 : index
    %c0_8 = arith.constant 0 : index
    %11 = vector.load %arg3[%c0_7, %c0_8] : memref<16x128xf32, #tpu.memory_space<vmem>>, vector<16x128xf32>
    %cst = arith.constant dense<0.000000e+00> : vector<16x128xf32>
    %12 = tpu.matmul %9, %11, %cst {dimension_numbers = #tpu.dot_dimension_numbers<[1], [0], [0], [1], [0, 0, 1, 1], [], []>, precision = #tpu.contract_precision<fp32>} : vector<16x16xf32>, vector<16x128xf32>, vector<16x128xf32> -> vector<16x128xf32>
    %c0_9 = arith.constant 0 : index
    %c0_10 = arith.constant 0 : index
    %13 = vector.load %arg4[%c0_9, %c0_10] : memref<4x128xf32, #tpu.memory_space<vmem>>, vector<4x128xf32>
    %cst_11 = arith.constant dense<0.000000e+00> : vector<16x128xf32>
    %14 = tpu.matmul %10, %13, %cst_11 {dimension_numbers = #tpu.dot_dimension_numbers<[1], [0], [0], [1], [0, 0, 1, 1], [], []>, precision = #tpu.contract_precision<fp32>} : vector<16x4xf32>, vector<4x128xf32>, vector<16x128xf32> -> vector<16x128xf32>
    %15 = arith.addf %12, %14 : vector<16x128xf32>
    %16 = vector.broadcast %2 : vector<1x128xf32> to vector<16x128xf32>
    %17 = arith.addf %15, %16 : vector<16x128xf32>
    %cst_12 = arith.constant dense<0.000000e+00> : vector<16x128xf32>
    %18 = tpu.matmul %17, %0, %cst_12 {dimension_numbers = #tpu.dot_dimension_numbers<[1], [0], [0], [1], [0, 0, 1, 1], [], []>, precision = #tpu.contract_precision<fp32>} : vector<16x128xf32>, vector<128x128xf32>, vector<16x128xf32> -> vector<16x128xf32>
    %19 = arith.subf %17, %18 : vector<16x128xf32>
    %20 = arith.mulf %19, %19 : vector<16x128xf32>
    %cst_13 = arith.constant dense<0.000000e+00> : vector<16x128xf32>
    %21 = tpu.matmul %20, %0, %cst_13 {dimension_numbers = #tpu.dot_dimension_numbers<[1], [0], [0], [1], [0, 0, 1, 1], [], []>, precision = #tpu.contract_precision<fp32>} : vector<16x128xf32>, vector<128x128xf32>, vector<16x128xf32> -> vector<16x128xf32>
    %cst_14 = arith.constant 9.99999974E-6 : f32
    %22 = vector.broadcast %cst_14 : f32 to vector<16x128xf32>
    %23 = arith.addf %21, %22 : vector<16x128xf32>
    %24 = math.rsqrt %23 : vector<16x128xf32>
    %25 = arith.mulf %19, %24 : vector<16x128xf32>
    %26 = vector.broadcast %3 : vector<1x128xf32> to vector<16x128xf32>
    %27 = arith.mulf %25, %26 : vector<16x128xf32>
    %28 = vector.broadcast %4 : vector<1x128xf32> to vector<16x128xf32>
    %29 = arith.addf %27, %28 : vector<16x128xf32>
    %cst_15 = arith.constant 0.000000e+00 : f32
    %30 = vector.broadcast %cst_15 : f32 to vector<16x128xf32>
    %31 = arith.maximumf %29, %30 : vector<16x128xf32>
    %c0_16 = arith.constant 0 : index
    %c0_17 = arith.constant 0 : index
    %32 = vector.load %arg5[%c0_16, %c0_17] : memref<128x128xf32, #tpu.memory_space<vmem>>, vector<128x128xf32>
    %cst_18 = arith.constant dense<0.000000e+00> : vector<16x128xf32>
    %33 = tpu.matmul %31, %32, %cst_18 {dimension_numbers = #tpu.dot_dimension_numbers<[1], [0], [0], [1], [0, 0, 1, 1], [], []>, precision = #tpu.contract_precision<fp32>} : vector<16x128xf32>, vector<128x128xf32>, vector<16x128xf32> -> vector<16x128xf32>
    %34 = vector.broadcast %5 : vector<1x128xf32> to vector<16x128xf32>
    %35 = arith.addf %33, %34 : vector<16x128xf32>
    %cst_19 = arith.constant dense<0.000000e+00> : vector<16x128xf32>
    %36 = tpu.matmul %35, %0, %cst_19 {dimension_numbers = #tpu.dot_dimension_numbers<[1], [0], [0], [1], [0, 0, 1, 1], [], []>, precision = #tpu.contract_precision<fp32>} : vector<16x128xf32>, vector<128x128xf32>, vector<16x128xf32> -> vector<16x128xf32>
    %37 = arith.subf %35, %36 : vector<16x128xf32>
    %38 = arith.mulf %37, %37 : vector<16x128xf32>
    %cst_20 = arith.constant dense<0.000000e+00> : vector<16x128xf32>
    %39 = tpu.matmul %38, %0, %cst_20 {dimension_numbers = #tpu.dot_dimension_numbers<[1], [0], [0], [1], [0, 0, 1, 1], [], []>, precision = #tpu.contract_precision<fp32>} : vector<16x128xf32>, vector<128x128xf32>, vector<16x128xf32> -> vector<16x128xf32>
    %cst_21 = arith.constant 9.99999974E-6 : f32
    %40 = vector.broadcast %cst_21 : f32 to vector<16x128xf32>
    %41 = arith.addf %39, %40 : vector<16x128xf32>
    %42 = math.rsqrt %41 : vector<16x128xf32>
    %43 = arith.mulf %37, %42 : vector<16x128xf32>
    %44 = vector.broadcast %6 : vector<1x128xf32> to vector<16x128xf32>
    %45 = arith.mulf %43, %44 : vector<16x128xf32>
    %46 = vector.broadcast %7 : vector<1x128xf32> to vector<16x128xf32>
    %47 = arith.addf %45, %46 : vector<16x128xf32>
    %cst_22 = arith.constant 0.000000e+00 : f32
    %48 = vector.broadcast %cst_22 : f32 to vector<16x128xf32>
    %49 = arith.maximumf %47, %48 : vector<16x128xf32>
    %c0_23 = arith.constant 0 : index
    %c0_24 = arith.constant 0 : index
    %50 = vector.load %arg6[%c0_23, %c0_24] : memref<128x2xf32, #tpu.memory_space<vmem>>, vector<128x2xf32>
    %cst_25 = arith.constant dense<0.000000e+00> : vector<16x2xf32>
    %51 = tpu.matmul %49, %50, %cst_25 {dimension_numbers = #tpu.dot_dimension_numbers<[1], [0], [0], [1], [0, 0, 1, 1], [], []>, precision = #tpu.contract_precision<fp32>} : vector<16x128xf32>, vector<128x2xf32>, vector<16x2xf32> -> vector<16x2xf32>
    %52 = vector.broadcast %8 : vector<1x2xf32> to vector<16x2xf32>
    %53 = arith.addf %51, %52 : vector<16x2xf32>
    %c0_26 = arith.constant 0 : index
    %c0_27 = arith.constant 0 : index
    %54 = vector.load %arg9[%c0_26, %c0_27] : memref<16x2xf32, #tpu.memory_space<vmem>>, vector<16x2xf32>
    tpu.vector_store %arg9[%c0_26, %c0_27], %53 {strides = array<i32>} : memref<16x2xf32, #tpu.memory_space<vmem>>, vector<16x2xf32>,
    return
  }
  func.func @transform_0(%arg0: i32) -> (i32, i32) {
    %c0_i32 = arith.constant 0 : i32
    %c0_i32_0 = arith.constant 0 : i32
    return %arg0, %c0_i32 : i32, i32
  }
  func.func @transform_1(%arg0: i32) -> (i32, i32) {
    %c0_i32 = arith.constant 0 : i32
    %c0_i32_0 = arith.constant 0 : i32
    return %arg0, %c0_i32 : i32, i32
  }
  func.func @transform_2(%arg0: i32) -> (i32, i32) {
    %c0_i32 = arith.constant 0 : i32
    %c0_i32_0 = arith.constant 0 : i32
    %c0_i32_1 = arith.constant 0 : i32
    return %c0_i32, %c0_i32_0 : i32, i32
  }
  func.func @transform_3(%arg0: i32) -> (i32, i32) {
    %c0_i32 = arith.constant 0 : i32
    %c0_i32_0 = arith.constant 0 : i32
    %c0_i32_1 = arith.constant 0 : i32
    return %c0_i32, %c0_i32_0 : i32, i32
  }
  func.func @transform_4(%arg0: i32) -> (i32, i32) {
    %c0_i32 = arith.constant 0 : i32
    %c0_i32_0 = arith.constant 0 : i32
    %c0_i32_1 = arith.constant 0 : i32
    return %c0_i32, %c0_i32_0 : i32, i32
  }
  func.func @transform_5(%arg0: i32) -> (i32, i32) {
    %c0_i32 = arith.constant 0 : i32
    %c0_i32_0 = arith.constant 0 : i32
    %c0_i32_1 = arith.constant 0 : i32
    return %c0_i32, %c0_i32_0 : i32, i32
  }
  func.func @transform_6(%arg0: i32) -> (i32, i32) {
    %c0_i32 = arith.constant 0 : i32
    %c0_i32_0 = arith.constant 0 : i32
    %c0_i32_1 = arith.constant 0 : i32
    return %c0_i32, %c0_i32_0 : i32, i32
  }
  func.func @transform_7(%arg0: i32) -> (i32, i32) {
    %c0_i32 = arith.constant 0 : i32
    %c0_i32_0 = arith.constant 0 : i32
    %c0_i32_1 = arith.constant 0 : i32
    return %c0_i32, %c0_i32_0 : i32, i32
  }
  func.func @transform_8(%arg0: i32) -> (i32, i32) {
    %c0_i32 = arith.constant 0 : i32
    %c0_i32_0 = arith.constant 0 : i32
    return %arg0, %c0_i32 : i32, i32
  }
}

</mosaic_0001>

<llo_original>
// kernel: tpu_custom_call.1
$region0: #{tpu_custom_call.1}
  #allocation0 [shape = 'u32[]', space=smem, size = 0x4, offset = 0x4, fixed_abs, tag = 'smem constant byte address 0x4 - core index']
  #allocation1 [shape = 'u32[72,128]{1,0:T(1,128)}', space=vmem, size = 0x9000, scoped, tag = 'internal scratch']
  %s0 = inlined_call_operand.vmem [shape: f32[24,16], index: 0, kind: input, shape index: {}]
  %s1 = inlined_call_operand.vmem [shape: f32[24,4], index: 1, kind: input, shape index: {}]
  %s2 = inlined_call_operand.vmem [shape: f32[16,128], index: 2, kind: input, shape index: {}]
  %s3 = inlined_call_operand.vmem [shape: f32[4,128], index: 3, kind: input, shape index: {}]
  %s4 = inlined_call_operand.vmem [shape: f32[128,128], index: 4, kind: input, shape index: {}]
  %s5 = inlined_call_operand.vmem [shape: f32[128,2], index: 5, kind: input, shape index: {}]
  %s6 = inlined_call_operand.hbm [shape: f32[128,128], index: 6, kind: input, shape index: {}]
  %s7 = inlined_call_operand.vmem [shape: f32[8,128], index: 7, kind: input, shape index: {}]
  %s8 = inlined_call_operand.vmem [shape: f32[24,2], index: 8, kind: output, shape index: {}]
  %s9 = sld [smem:[#allocation0]]
  $region117: #{tpu_custom_call.1} parent=0
    _
  %s11 = ssub.s32 1, %s9
  %s12 = scalar_select 0, %s11, %s9
  $region1: #{tpu_custom_call.1} parent=0
    #allocation2 [shape = 'u8[65536]{0}', space=vmem, size = 0x10000, scoped, tag = 'input window, operand 6, single buffered']
    #allocation3 [shape = 's32[2]{0}', space=sflag, size = 0x8, scoped, tag = 'scoped memory for tpu_custom_call.1']
    #allocation4 [shape = 'u8[16384]{0}', space=vmem, size = 0x4000, scoped, tag = 'output window, operand 0']
    %13 = vsyncpa [#allocation3], 0
    loop: start=0, step=1, limit=4
    $region2: #{tpu_custom_call.1} parent=1 // loop_pre_header
      _
    $region3: #{tpu_custom_call.1} parent=1 // loop_header
      %s15 = sphi 0, %s19
      %p16 = scmp.ge.s32.totalorder %s15, 4
      %s25 = sphi 0, %s27
      %s28 = sphi 0, %s25
      %s29 = sphi 0, %s28
      %s45 = sphi 0, %s29
      %s51 = sphi 0, %s53
      %s54 = sphi 0, %s51
      %s55 = sphi 0, %s54
      %s71 = sphi 0, %s55
      %s75 = sphi 0, %s75
      %s77 = sphi 0, %s75
      %s78 = sphi 0, %s77
      %s92 = sphi 0, %s78
      %s96 = sphi 0, %s96
      %s98 = sphi 0, %s96
      %s99 = sphi 0, %s98
      %s113 = sphi 0, %s99
      %s117 = sphi 0, %s117
      %s119 = sphi 0, %s117
      %s120 = sphi 0, %s119
      %s134 = sphi 0, %s120
      %s138 = sphi 0, %s138
      %s140 = sphi 0, %s138
      %s141 = sphi 0, %s140
      %s155 = sphi 0, %s141
      %s159 = sphi 0, %s159
      %s161 = sphi 0, %s159
      %s162 = sphi 0, %s161
      %s176 = sphi 0, %s162
      %s180 = sphi 0, %s180
      %s182 = sphi 0, %s180
      %s183 = sphi 0, %s182
      %s197 = sphi 0, %s183
      %s203 = sphi 0, %s205
      %s206 = sphi 0, %s203
      %s207 = sphi 0, %s206
      %s223 = sphi 0, %s207
    $region4: #{tpu_custom_call.1} parent=1 // loop_header_branch
      %18 = sbr.rel (%p16) target = $region8
    $region5: #{tpu_custom_call.1} parent=1 // loop_body
      %s20 = ssub.s32 %s15, 1
      %s21 = ssub.s32 %s15, 2
      %s22 = sadd.s32 %s15, 1
      %s23 = ssub.s32 %s15, %s22
      %p24 = scmp.eq.s32.totalorder %s23, 0
      %s26 = sadd.s32 %s25, 1
      %s27 = scalar_select %p24, %s25, %s26
      %p30 = pneg %p24
      %p31 = scmp.eq.s32.totalorder %s15, 1
      %p32 = por %p30, %p31
      %p33 = scmp.ne.s32.totalorder %s25, %s28
      %p34 = scmp.eq.s32.totalorder %s15, 0
      %p35 = por %p33, %p34
      %p36 = scmp.ne.s32.totalorder %s25, %s28
      %p37 = scmp.eq.s32.totalorder %s20, 1
      %p38 = por %p36, %p37
      %p39 = scmp.ne.s32.totalorder %s28, %s29
      %p40 = scmp.eq.s32.totalorder %s20, 0
      %p41 = por %p39, %p40
      %p42 = scmp.ne.s32.totalorder %s28, %s29
      %p43 = scmp.eq.s32.totalorder %s21, 1
      %p44 = por %p42, %p43
      %p46 = scmp.ne.s32.totalorder %s29, %s45
      %p47 = scmp.eq.s32.totalorder %s21, 0
      %p48 = por %p46, %p47
      %s49 = ssub.s32 %s15, %s22
      %p50 = scmp.eq.s32.totalorder %s49, 0
      %s52 = sadd.s32 %s51, 1
      %s53 = scalar_select %p50, %s51, %s52
      %p56 = pneg %p50
      %p57 = scmp.eq.s32.totalorder %s15, 1
      %p58 = por %p56, %p57
      %p59 = scmp.ne.s32.totalorder %s51, %s54
      %p60 = scmp.eq.s32.totalorder %s15, 0
      %p61 = por %p59, %p60
      %p62 = scmp.ne.s32.totalorder %s51, %s54
      %p63 = scmp.eq.s32.totalorder %s20, 1
      %p64 = por %p62, %p63
      %p65 = scmp.ne.s32.totalorder %s54, %s55
      %p66 = scmp.eq.s32.totalorder %s20, 0
      %p67 = por %p65, %p66
      %p68 = scmp.ne.s32.totalorder %s54, %s55
      %p69 = scmp.eq.s32.totalorder %s21, 1
      %p70 = por %p68, %p69
      %p72 = scmp.ne.s32.totalorder %s55, %s71
      %p73 = scmp.eq.s32.totalorder %s21, 0
      %p74 = por %p72, %p73
      %s76 = sadd.s32 %s75, 1
      %p79 = scmp.eq.s32.totalorder %s15, 1
      %p80 = scmp.ne.s32.totalorder %s75, %s77
      %p81 = scmp.eq.s32.totalorder %s15, 0
      %p82 = por %p80, %p81
      %p83 = scmp.ne.s32.totalorder %s75, %s77
      %p84 = scmp.eq.s32.totalorder %s20, 1
      %p85 = por %p83, %p84
      %p86 = scmp.ne.s32.totalorder %s77, %s78
      %p87 = scmp.eq.s32.totalorder %s20, 0
      %p88 = por %p86, %p87
      %p89 = scmp.ne.s32.totalorder %s77, %s78
      %p90 = scmp.eq.s32.totalorder %s21, 1
      %p91 = por %p89, %p90
      %p93 = scmp.ne.s32.totalorder %s78, %s92
      %p94 = scmp.eq.s32.totalorder %s21, 0
      %p95 = por %p93, %p94
      %s97 = sadd.s32 %s96, 1
      %p100 = scmp.eq.s32.totalorder %s15, 1
      %p101 = scmp.ne.s32.totalorder %s96, %s98
      %p102 = scmp.eq.s32.totalorder %s15, 0
      %p103 = por %p101, %p102
      %p104 = scmp.ne.s32.totalorder %s96, %s98
      %p105 = scmp.eq.s32.totalorder %s20, 1
      %p106 = por %p104, %p105
      %p107 = scmp.ne.s32.totalorder %s98, %s99
      %p108 = scmp.eq.s32.totalorder %s20, 0
      %p109 = por %p107, %p108
      %p110 = scmp.ne.s32.totalorder %s98, %s99
      %p111 = scmp.eq.s32.totalorder %s21, 1
      %p112 = por %p110, %p111
      %p114 = scmp.ne.s32.totalorder %s99, %s113
      %p115 = scmp.eq.s32.totalorder %s21, 0
      %p116 = por %p114, %p115
      %s118 = sadd.s32 %s117, 1
      %p121 = scmp.eq.s32.totalorder %s15, 1
      %p122 = scmp.ne.s32.totalorder %s117, %s119
      %p123 = scmp.eq.s32.totalorder %s15, 0
      %p124 = por %p122, %p123
      %p125 = scmp.ne.s32.totalorder %s117, %s119
      %p126 = scmp.eq.s32.totalorder %s20, 1
      %p127 = por %p125, %p126
      %p128 = scmp.ne.s32.totalorder %s119, %s120
      %p129 = scmp.eq.s32.totalorder %s20, 0
      %p130 = por %p128, %p129
      %p131 = scmp.ne.s32.totalorder %s119, %s120
      %p132 = scmp.eq.s32.totalorder %s21, 1
      %p133 = por %p131, %p132
      %p135 = scmp.ne.s32.totalorder %s120, %s134
      %p136 = scmp.eq.s32.totalorder %s21, 0
      %p137 = por %p135, %p136
      %s139 = sadd.s32 %s138, 1
      %p142 = scmp.eq.s32.totalorder %s15, 1
      %p143 = scmp.ne.s32.totalorder %s138, %s140
      %p144 = scmp.eq.s32.totalorder %s15, 0
      %p145 = por %p143, %p144
      %p146 = scmp.ne.s32.totalorder %s138, %s140
      %p147 = scmp.eq.s32.totalorder %s20, 1
      %p148 = por %p146, %p147
      %p149 = scmp.ne.s32.totalorder %s140, %s141
      %p150 = scmp.eq.s32.totalorder %s20, 0
      %p151 = por %p149, %p150
      %p152 = scmp.ne.s32.totalorder %s140, %s141
      %p153 = scmp.eq.s32.totalorder %s21, 1
      %p154 = por %p152, %p153
      %p156 = scmp.ne.s32.totalorder %s141, %s155
      %p157 = scmp.eq.s32.totalorder %s21, 0
      %p158 = por %p156, %p157
      %s160 = sadd.s32 %s159, 1
      %p163 = scmp.eq.s32.totalorder %s15, 1
      %p164 = scmp.ne.s32.totalorder %s159, %s161
      %p165 = scmp.eq.s32.totalorder %s15, 0
      %p166 = por %p164, %p165
      %p167 = scmp.ne.s32.totalorder %s159, %s161
      %p168 = scmp.eq.s32.totalorder %s20, 1
      %p169 = por %p167, %p168
      %p170 = scmp.ne.s32.totalorder %s161, %s162
      %p171 = scmp.eq.s32.totalorder %s20, 0
      %p172 = por %p170, %p171
      %p173 = scmp.ne.s32.totalorder %s161, %s162
      %p174 = scmp.eq.s32.totalorder %s21, 1
      %p175 = por %p173, %p174
      %p177 = scmp.ne.s32.totalorder %s162, %s176
      %p178 = scmp.eq.s32.totalorder %s21, 0
      %p179 = por %p177, %p178
      %s181 = sadd.s32 %s180, 1
      %p184 = scmp.eq.s32.totalorder %s15, 1
      %p185 = scmp.ne.s32.totalorder %s180, %s182
      %p186 = scmp.eq.s32.totalorder %s15, 0
      %p187 = por %p185, %p186
      %p188 = scmp.ne.s32.totalorder %s180, %s182
      %p189 = scmp.eq.s32.totalorder %s20, 1
      %p190 = por %p188, %p189
      %p191 = scmp.ne.s32.totalorder %s182, %s183
      %p192 = scmp.eq.s32.totalorder %s20, 0
      %p193 = por %p191, %p192
      %p194 = scmp.ne.s32.totalorder %s182, %s183
      %p195 = scmp.eq.s32.totalorder %s21, 1
      %p196 = por %p194, %p195
      %p198 = scmp.ne.s32.totalorder %s183, %s197
      %p199 = scmp.eq.s32.totalorder %s21, 0
      %p200 = por %p198, %p199
      %s201 = ssub.s32 %s15, %s22
      %p202 = scmp.eq.s32.totalorder %s201, 0
      %s204 = sadd.s32 %s203, 1
      %s205 = scalar_select %p202, %s203, %s204
      %p208 = pneg %p202
      %p209 = scmp.eq.s32.totalorder %s15, 1
      %p210 = por %p208, %p209
      %p211 = scmp.ne.s32.totalorder %s203, %s206
      %p212 = scmp.eq.s32.totalorder %s15, 0
      %p213 = por %p211, %p212
      %p214 = scmp.ne.s32.totalorder %s203, %s206
      %p215 = scmp.eq.s32.totalorder %s20, 1
      %p216 = por %p214, %p215
      %p217 = scmp.ne.s32.totalorder %s206, %s207
      %p218 = scmp.eq.s32.totalorder %s20, 0
      %p219 = por %p217, %p218
      %p220 = scmp.ne.s32.totalorder %s206, %s207
      %p221 = scmp.eq.s32.totalorder %s21, 1
      %p222 = por %p220, %p221
      %p224 = scmp.ne.s32.totalorder %s207, %s223
      %p225 = scmp.eq.s32.totalorder %s21, 0
      %p226 = por %p224, %p225
      %p227 = scmp.le.s32.totalorder 1, %s15
      %p228 = scmp.lt.s32.totalorder %s15, 3
      %p229 = pnand %p227, %p228
      %p230 = pneg %p229
      // Predicated region
      $region9: #{tpu_custom_call.1} parent=5 // pred_check
        _
      $region10: #{tpu_custom_call.1} parent=5 // pred_check_branch
        %232 = sbr.rel (%p229) target = $region12
      $region11: #{tpu_custom_call.1} parent=5 // pred_region
        %s233 = ssub.s32 %s15, 1
        // Predicated region
        $region13: #{tpu_custom_call.1} parent=11 // pred_check
          %p234 = pneg %p88
        $region14: #{tpu_custom_call.1} parent=11 // pred_check_branch
          %236 = sbr.rel (%p234) target = $region16
        $region15: #{tpu_custom_call.1} parent=11 // pred_region
          _
        $region16: #{tpu_custom_call.1} parent=11 // pred_fallthru
          _
        // Predicated region
        $region17: #{tpu_custom_call.1} parent=11 // pred_check
          %p237 = pneg %p109
        $region18: #{tpu_custom_call.1} parent=11 // pred_check_branch
          %239 = sbr.rel (%p237) target = $region20
        $region19: #{tpu_custom_call.1} parent=11 // pred_region
          _
        $region20: #{tpu_custom_call.1} parent=11 // pred_fallthru
          _
        // Predicated region
        $region21: #{tpu_custom_call.1} parent=11 // pred_check
          %p240 = pneg %p130
        $region22: #{tpu_custom_call.1} parent=11 // pred_check_branch
          %242 = sbr.rel (%p240) target = $region24
        $region23: #{tpu_custom_call.1} parent=11 // pred_region
          _
        $region24: #{tpu_custom_call.1} parent=11 // pred_fallthru
          _
        // Predicated region
        $region25: #{tpu_custom_call.1} parent=11 // pred_check
          %p243 = pneg %p151
        $region26: #{tpu_custom_call.1} parent=11 // pred_check_branch
          %245 = sbr.rel (%p243) target = $region28
        $region27: #{tpu_custom_call.1} parent=11 // pred_region
          _
        $region28: #{tpu_custom_call.1} parent=11 // pred_fallthru
          _
        // Predicated region
        $region29: #{tpu_custom_call.1} parent=11 // pred_check
          %p246 = pneg %p172
        $region30: #{tpu_custom_call.1} parent=11 // pred_check_branch
          %248 = sbr.rel (%p246) target = $region32
        $region31: #{tpu_custom_call.1} parent=11 // pred_region
          %250 = vsyncadd [#allocation3], 0
          %s251 = sshll.u32 %s6, 4
          %s252 = int_to_ptr.hbm [resolvable:$true] %s251
          %s253 = sshll.u32 [#allocation2], 4
          %s254 = int_to_ptr.vmem [resolvable:$true] %s253
          %259 = dma.hbm_to_vmem [thread:$0]  %s252, 2048, %s254, [#allocation3], 128, 128, 8
        $region32: #{tpu_custom_call.1} parent=11 // pred_fallthru
          _
        // Predicated region
        $region33: #{tpu_custom_call.1} parent=11 // pred_check
          %p260 = pneg %p193
        $region34: #{tpu_custom_call.1} parent=11 // pred_check_branch
          %262 = sbr.rel (%p260) target = $region36
        $region35: #{tpu_custom_call.1} parent=11 // pred_region
          _
        $region36: #{tpu_custom_call.1} parent=11 // pred_fallthru
          _
      $region12: #{tpu_custom_call.1} parent=5 // pred_fallthru
        _
      %p263 = scmp.lt.s32.totalorder %s15, 2
      // Predicated region
      $region37: #{tpu_custom_call.1} parent=5 // pred_check
        %p264 = pneg %p263
      $region38: #{tpu_custom_call.1} parent=5 // pred_check_branch
        %266 = sbr.rel (%p264) target = $region40
      $region39: #{tpu_custom_call.1} parent=5 // pred_region
        // Predicated region
        $region41: #{tpu_custom_call.1} parent=39 // pred_check
          %p267 = pneg %p35
        $region42: #{tpu_custom_call.1} parent=39 // pred_check_branch
          %269 = sbr.rel (%p267) target = $region44
        $region43: #{tpu_custom_call.1} parent=39 // pred_region
          %s270 = smul.u32 2, %s15
          %s271 = ssub.s32 3, %s270
          %p272 = scmp.lt.s32.totalorder %s271, 2
          %s273 = scalar_select %p272, %s271, 2
          %s274 = smul.u32 8, %s273
          %p275 = scmp.lt.s32.totalorder %s270, 2
          %s276 = scalar_select %p275, %s270, 2
          %s277 = smul.addr %s276, 8
          %s278 = scalar_lea.vmem %s0, %s277
          %s279 = smul.u32 2, %s15
          %s280 = ssub.s32 3, %s279
          %p281 = scmp.lt.s32.totalorder %s280, 2
          %s282 = scalar_select %p281, %s280, 2
          %s283 = smul.u32 8, %s282
        $region44: #{tpu_custom_call.1} parent=39 // pred_fallthru
          _
        // Predicated region
        $region45: #{tpu_custom_call.1} parent=39 // pred_check
          %p284 = pneg %p61
        $region46: #{tpu_custom_call.1} parent=39 // pred_check_branch
          %286 = sbr.rel (%p284) target = $region48
        $region47: #{tpu_custom_call.1} parent=39 // pred_region
          %s287 = smul.u32 2, %s15
          %s288 = ssub.s32 3, %s287
          %p289 = scmp.lt.s32.totalorder %s288, 2
          %s290 = scalar_select %p289, %s288, 2
          %s291 = smul.u32 8, %s290
          %p292 = scmp.lt.s32.totalorder %s287, 2
          %s293 = scalar_select %p292, %s287, 2
          %s294 = smul.addr %s293, 8
          %s295 = scalar_lea.vmem %s1, %s294
          %s296 = smul.u32 2, %s15
          %s297 = ssub.s32 3, %s296
          %p298 = scmp.lt.s32.totalorder %s297, 2
          %s299 = scalar_select %p298, %s297, 2
          %s300 = smul.u32 8, %s299
        $region48: #{tpu_custom_call.1} parent=39 // pred_fallthru
          _
      $region40: #{tpu_custom_call.1} parent=5 // pred_fallthru
        _
      %p301 = scmp.le.s32.totalorder 1, %s15
      %p302 = scmp.lt.s32.totalorder %s15, 3
      %p303 = pnand %p301, %p302
      %p304 = pneg %p303
      // Predicated region
      $region49: #{tpu_custom_call.1} parent=5 // pred_check
        _
      $region50: #{tpu_custom_call.1} parent=5 // pred_check_branch
        %306 = sbr.rel (%p303) target = $region52
      $region51: #{tpu_custom_call.1} parent=5 // pred_region
        %s307 = ssub.s32 %s15, 1
        // Predicated region
        $region53: #{tpu_custom_call.1} parent=51 // pred_check
          %p308 = pneg %p172
        $region54: #{tpu_custom_call.1} parent=51 // pred_check_branch
          %310 = sbr.rel (%p308) target = $region56
        $region55: #{tpu_custom_call.1} parent=51 // pred_region
          %312 = dma.done [#allocation3], 2048
        $region56: #{tpu_custom_call.1} parent=51 // pred_fallthru
          _
        %s313 = smul.u32 2, %s20
        %s314 = ssub.s32 3, %s313
        %p315 = scmp.lt.s32.totalorder %s314, 2
        %s316 = scalar_select %p315, %s314, 2
        %s317 = smul.u32 8, %s316
        %p318 = scmp.lt.s32.totalorder %s313, 2
        %s319 = scalar_select %p318, %s313, 2
        %s320 = smul.addr %s319, 8
        %s321 = scalar_lea.vmem %s0, %s320
        %p322 = pneg %p41
        %p323 = pneg %p38
        %s324 = smul.u32 2, %s20
        %s325 = ssub.s32 3, %s324
        %p326 = scmp.lt.s32.totalorder %s325, 2
        %s327 = scalar_select %p326, %s325, 2
        %s328 = smul.u32 8, %s327
        %p329 = scmp.lt.s32.totalorder %s324, 2
        %s330 = scalar_select %p329, %s324, 2
        %s331 = smul.addr %s330, 8
        %s332 = scalar_lea.vmem %s1, %s331
        %p333 = pneg %p67
        %p334 = pneg %p64
        %p335 = pneg %p88
        %p336 = pneg %p85
        %p337 = pneg %p109
        %p338 = pneg %p106
        %p339 = pneg %p130
        %p340 = pneg %p127
        %p341 = pneg %p151
        %p342 = pneg %p148
        %p343 = pneg %p172
        %p344 = pneg %p169
        %p345 = pneg %p193
        %p346 = pneg %p190
        %p347 = pneg %p219
        %p348 = pneg %p216
        %s349 = sand.u32 %s206, 1
        %s350 = sand.u32 %s206, 1
        %s351 = smul.addr %s350, 16
        %s352 = scalar_lea.vmem [#allocation4], %s351
        %s353 = smul.u32 2, %s20
        %s354 = ssub.s32 3, %s353
        %p355 = scmp.lt.s32.totalorder %s354, 2
        %s356 = scalar_select %p355, %s354, 2
        %s357 = smul.u32 8, %s356
        %p358 = scmp.lt.s32.totalorder %s353, 2
        %s359 = scalar_select %p358, %s353, 2
        %s360 = smul.addr %s359, 8
        %s361 = scalar_lea.vmem %s0, %s360
        %s362 = smul.u32 2, %s20
        %s363 = ssub.s32 3, %s362
        %p364 = scmp.lt.s32.totalorder %s363, 2
        %s365 = scalar_select %p364, %s363, 2
        %s366 = smul.u32 8, %s365
        %s367 = smul.u32 2, %s20
        %s368 = ssub.s32 3, %s367
        %p369 = scmp.lt.s32.totalorder %s368, 2
        %s370 = scalar_select %p369, %s368, 2
        %s371 = smul.u32 8, %s370
        %p372 = scmp.lt.s32.totalorder %s367, 2
        %s373 = scalar_select %p372, %s367, 2
        %s374 = smul.addr %s373, 8
        %s375 = scalar_lea.vmem %s1, %s374
        %s376 = smul.u32 2, %s20
        %s377 = ssub.s32 3, %s376
        %p378 = scmp.lt.s32.totalorder %s377, 2
        %s379 = scalar_select %p378, %s377, 2
        %s380 = smul.u32 8, %s379
        %s381 = smul.u32 2, %s20
        %s382 = ssub.s32 3, %s381
        %p383 = scmp.lt.s32.totalorder %s382, 2
        %s384 = scalar_select %p383, %s382, 2
        %s385 = smul.u32 8, %s384
        %v386 = vld [vmem:[#allocation2] sm:$0xff]
        %v387 = vld [vmem:[#allocation2 + $0x8] sm:$0xff]
        %v388 = vld [vmem:[#allocation2 + $0x10] sm:$0xff]
        %v389 = vld [vmem:[#allocation2 + $0x18] sm:$0xff]
        %v390 = vld [vmem:[#allocation2 + $0x20] sm:$0xff]
        %v391 = vld [vmem:[#allocation2 + $0x28] sm:$0xff]
        %v392 = vld [vmem:[#allocation2 + $0x30] sm:$0xff]
        %v393 = vld [vmem:[#allocation2 + $0x38] sm:$0xff]
        %v394 = vld [vmem:[#allocation2 + $0x40] sm:$0xff]
        %v395 = vld [vmem:[#allocation2 + $0x48] sm:$0xff]
        %v396 = vld [vmem:[#allocation2 + $0x50] sm:$0xff]
        %v397 = vld [vmem:[#allocation2 + $0x58] sm:$0xff]
        %v398 = vld [vmem:[#allocation2 + $0x60] sm:$0xff]
        %v399 = vld [vmem:[#allocation2 + $0x68] sm:$0xff]
        %v400 = vld [vmem:[#allocation2 + $0x70] sm:$0xff]
        %v401 = vld [vmem:[#allocation2 + $0x78] sm:$0xff]
        %v402 = vld [vmem:[%s7] sm:$0xff]
        %v403 = vld [vmem:[%s361] sm:$0xff]
        %v404 = vld [vmem:[%s361 + $0x8] sm:$0xff]
        %v405 = vld [vmem:[%s375] sm:$0xff]
        %v406 = vld [vmem:[%s375 + $0x8] sm:$0xff]
        %v407 = vld [vmem:[%s2] sm:$0xff]
        %v408 = vld [vmem:[%s2 + $0x8] sm:$0xff]
        %v409 = vld [vmem:[%s3] sm:$0xf]
        %vm410 = vcmask 31744
        %v412 = vsel %vm410, %v405, 0
        %v415 = vsel %vm410, %v406, 0
        %vm417 = vcmask 1043456
        %v419 = vsel %vm417, %v409, 0
        %421 = vmatpush.msra.mxu0 0.0
        %422 = vmatpush.msra.mxu0 0.0
        %423 = vmatpush.msra.mxu0 0.0
        %424 = vmatpush.msra.mxu0 0.0
        %425 = vmatpush.msra.mxu0 0.0
        %426 = vmatpush.msra.mxu0 0.0
        %427 = vmatpush.msra.mxu0 0.0
        %428 = vmatpush.msra.mxu0 0.0
        %429 = vmatpush.msra.mxu0 0.0
        %430 = vmatpush.msra.mxu0 0.0
        %431 = vmatpush.msra.mxu0 0.0
        %432 = vmatpush.msra.mxu0 0.0
        %433 = vmatpush.msra.mxu0 0.0
        %434 = vmatpush.msra.mxu0 0.0
        %435 = vmatpush.msra.mxu0 0.0
        %v436 = vand.u32 %v419, 4294901760
        %437 = vmatpush.msra.mxu0 %v436
        %v438 = vand.u32 %v412, 4294901760
        %v439 = vsub.f32 %v412, %v438
        %v440 = vand.u32 %v439, 4294901760
        %v441 = vsub.f32 %v439, %v440
        %v442 = vand.u32 %v441, 4294901760
        %443 = vmatmul.f32.gmra.mxu0 %v442
        %v444 = vpop.f32.mrf.mxu0
        %v445 = vadd.f32 0.0, %v444
        %v446 = vand.u32 %v415, 4294901760
        %v447 = vsub.f32 %v415, %v446
        %v448 = vand.u32 %v447, 4294901760
        %v449 = vsub.f32 %v447, %v448
        %v450 = vand.u32 %v449, 4294901760
        %451 = vmatmul.f32.gmra.mxu0 %v450
        %v452 = vpop.f32.mrf.mxu0
        %v453 = vadd.f32 0.0, %v452
        %454 = vdwg.mxu0
        %455 = vmatpush.msra.mxu0 0.0
        %456 = vmatpush.msra.mxu0 0.0
        %457 = vmatpush.msra.mxu0 0.0
        %458 = vmatpush.msra.mxu0 0.0
        %459 = vmatpush.msra.mxu0 0.0
        %460 = vmatpush.msra.mxu0 0.0
        %461 = vmatpush.msra.mxu0 0.0
        %462 = vmatpush.msra.mxu0 0.0
        %463 = vmatpush.msra.mxu0 0.0
        %464 = vmatpush.msra.mxu0 0.0
        %465 = vmatpush.msra.mxu0 0.0
        %466 = vmatpush.msra.mxu0 0.0
        %467 = vmatpush.msra.mxu0 0.0
        %468 = vmatpush.msra.mxu0 0.0
        %469 = vmatpush.msra.mxu0 0.0
        %v470 = vand.u32 %v419, 4294901760
        %v471 = vsub.f32 %v419, %v470
        %v472 = vand.u32 %v471, 4294901760
        %v473 = vsub.f32 %v471, %v472
        %v474 = vand.u32 %v473, 4294901760
        %475 = vmatpush.msra.mxu0 %v474
        %v476 = vand.u32 %v412, 4294901760
        %477 = vmatmul.f32.gmra.mxu0 %v476
        %v478 = vpop.f32.mrf.mxu0
        %v479 = vadd.f32 %v445, %v478
        %v480 = vand.u32 %v415, 4294901760
        %481 = vmatmul.f32.gmra.mxu0 %v480
        %v482 = vpop.f32.mrf.mxu0
        %v483 = vadd.f32 %v453, %v482
        %484 = vdwg.mxu0
        %485 = vmatpush.msra.mxu0 0.0
        %486 = vmatpush.msra.mxu0 0.0
        %487 = vmatpush.msra.mxu0 0.0
        %488 = vmatpush.msra.mxu0 0.0
        %489 = vmatpush.msra.mxu0 0.0
        %490 = vmatpush.msra.mxu0 0.0
        %491 = vmatpush.msra.mxu0 0.0
        %492 = vmatpush.msra.mxu0 0.0
        %493 = vmatpush.msra.mxu0 0.0
        %494 = vmatpush.msra.mxu0 0.0
        %495 = vmatpush.msra.mxu0 0.0
        %496 = vmatpush.msra.mxu0 0.0
        %497 = vmatpush.msra.mxu0 0.0
        %498 = vmatpush.msra.mxu0 0.0
        %499 = vmatpush.msra.mxu0 0.0
        %v500 = vand.u32 %v419, 4294901760
        %v501 = vsub.f32 %v419, %v500
        %502 = vmatpush.msra.mxu0 %v501
        %v503 = vand.u32 %v412, 4294901760
        %v504 = vsub.f32 %v412, %v503
        %505 = vmatmul.f32.gmra.mxu0 %v504
        %v506 = vpop.f32.mrf.mxu0
        %v507 = vadd.f32 %v479, %v506
        %v508 = vand.u32 %v415, 4294901760
        %v509 = vsub.f32 %v415, %v508
        %510 = vmatmul.f32.gmra.mxu0 %v509
        %v511 = vpop.f32.mrf.mxu0
        %v512 = vadd.f32 %v483, %v511
        %513 = vdwg.mxu0
        %514 = vmatpush.msra.mxu0 0.0
        %515 = vmatpush.msra.mxu0 0.0
        %516 = vmatpush.msra.mxu0 0.0
        %517 = vmatpush.msra.mxu0 0.0
        %518 = vmatpush.msra.mxu0 0.0
        %519 = vmatpush.msra.mxu0 0.0
        %520 = vmatpush.msra.mxu0 0.0
        %521 = vmatpush.msra.mxu0 0.0
        %522 = vmatpush.msra.mxu0 0.0
        %523 = vmatpush.msra.mxu0 0.0
        %524 = vmatpush.msra.mxu0 0.0
        %525 = vmatpush.msra.mxu0 0.0
        %526 = vmatpush.msra.mxu0 0.0
        %527 = vmatpush.msra.mxu0 0.0
        %528 = vmatpush.msra.mxu0 0.0
        %v529 = vand.u32 %v419, 4294901760
        %530 = vmatpush.msra.mxu0 %v529
        %v531 = vand.u32 %v412, 4294901760
        %v532 = vsub.f32 %v412, %v531
        %v533 = vand.u32 %v532, 4294901760
        %534 = vmatmul.f32.gmra.mxu0 %v533
        %v535 = vpop.f32.mrf.mxu0
        %v536 = vadd.f32 %v507, %v535
        %v537 = vand.u32 %v415, 4294901760
        %v538 = vsub.f32 %v415, %v537
        %v539 = vand.u32 %v538, 4294901760
        %540 = vmatmul.f32.gmra.mxu0 %v539
        %v541 = vpop.f32.mrf.mxu0
        %v542 = vadd.f32 %v512, %v541
        %543 = vdwg.mxu0
        %544 = vmatpush.msra.mxu0 0.0
        %545 = vmatpush.msra.mxu0 0.0
        %546 = vmatpush.msra.mxu0 0.0
        %547 = vmatpush.msra.mxu0 0.0
        %548 = vmatpush.msra.mxu0 0.0
        %549 = vmatpush.msra.mxu0 0.0
        %550 = vmatpush.msra.mxu0 0.0
        %551 = vmatpush.msra.mxu0 0.0
        %552 = vmatpush.msra.mxu0 0.0
        %553 = vmatpush.msra.mxu0 0.0
        %554 = vmatpush.msra.mxu0 0.0
        %555 = vmatpush.msra.mxu0 0.0
        %556 = vmatpush.msra.mxu0 0.0
        %557 = vmatpush.msra.mxu0 0.0
        %558 = vmatpush.msra.mxu0 0.0
        %v559 = vand.u32 %v419, 4294901760
        %v560 = vsub.f32 %v419, %v559
        %v561 = vand.u32 %v560, 4294901760
        %562 = vmatpush.msra.mxu0 %v561
        %v563 = vand.u32 %v412, 4294901760
        %564 = vmatmul.f32.gmra.mxu0 %v563
        %v565 = vpop.f32.mrf.mxu0
        %v566 = vadd.f32 %v536, %v565
        %v567 = vand.u32 %v415, 4294901760
        %568 = vmatmul.f32.gmra.mxu0 %v567
        %v569 = vpop.f32.mrf.mxu0
        %v570 = vadd.f32 %v542, %v569
        %571 = vdwg.mxu0
        %572 = vmatpush.msra.mxu0 0.0
        %573 = vmatpush.msra.mxu0 0.0
        %574 = vmatpush.msra.mxu0 0.0
        %575 = vmatpush.msra.mxu0 0.0
        %576 = vmatpush.msra.mxu0 0.0
        %577 = vmatpush.msra.mxu0 0.0
        %578 = vmatpush.msra.mxu0 0.0
        %579 = vmatpush.msra.mxu0 0.0
        %580 = vmatpush.msra.mxu0 0.0
        %581 = vmatpush.msra.mxu0 0.0
        %582 = vmatpush.msra.mxu0 0.0
        %583 = vmatpush.msra.mxu0 0.0
        %584 = vmatpush.msra.mxu0 0.0
        %585 = vmatpush.msra.mxu0 0.0
        %586 = vmatpush.msra.mxu0 0.0
        %v587 = vand.u32 %v419, 4294901760
        %588 = vmatpush.msra.mxu0 %v587
        %v589 = vand.u32 %v412, 4294901760
        %590 = vmatmul.f32.gmra.mxu0 %v589
        %v591 = vpop.f32.mrf.mxu0
        %v592 = vadd.f32 %v566, %v591
        %v593 = vand.u32 %v415, 4294901760
        %594 = vmatmul.f32.gmra.mxu0 %v593
        %v595 = vpop.f32.mrf.mxu0
        %v596 = vadd.f32 %v570, %v595
        %597 = vdwg.mxu0
        %vm598 = vcmask 130048
        %v600 = vsel %vm598, %v403, 0
        %v603 = vsel %vm598, %v404, 0
        %605 = vmatpush.msra.mxu0 0.0
        %606 = vmatpush.msra.mxu0 0.0
        %607 = vmatpush.msra.mxu0 0.0
        %608 = vmatpush.msra.mxu0 0.0
        %609 = vmatpush.msra.mxu0 0.0
        %610 = vmatpush.msra.mxu0 0.0
        %611 = vmatpush.msra.mxu0 0.0
        %612 = vmatpush.msra.mxu0 0.0
        %613 = vmatpush.msra.mxu0 0.0
        %614 = vmatpush.msra.mxu0 0.0
        %615 = vmatpush.msra.mxu0 0.0
        %616 = vmatpush.msra.mxu0 0.0
        %617 = vmatpush.msra.mxu0 0.0
        %618 = vmatpush.msra.mxu0 0.0
        %v619 = vand.u32 %v408, 4294901760
        %620 = vmatpush.msra.mxu0 %v619
        %v621 = vand.u32 %v407, 4294901760
        %622 = vmatpush.msra.mxu0 %v621
        %v623 = vand.u32 %v600, 4294901760
        %v624 = vsub.f32 %v600, %v623
        %v625 = vand.u32 %v624, 4294901760
        %v626 = vsub.f32 %v624, %v625
        %v627 = vand.u32 %v626, 4294901760
        %628 = vmatmul.f32.gmra.mxu0 %v627
        %v629 = vpop.f32.mrf.mxu0
        %v630 = vadd.f32 %v592, %v629
        %v631 = vand.u32 %v603, 4294901760
        %v632 = vsub.f32 %v603, %v631
        %v633 = vand.u32 %v632, 4294901760
        %v634 = vsub.f32 %v632, %v633
        %v635 = vand.u32 %v634, 4294901760
        %636 = vmatmul.f32.gmra.mxu0 %v635
        %v637 = vpop.f32.mrf.mxu0
        %v638 = vadd.f32 %v596, %v637
        %639 = vdwg.mxu0
        %640 = vmatpush.msra.mxu0 0.0
        %641 = vmatpush.msra.mxu0 0.0
        %642 = vmatpush.msra.mxu0 0.0
        %643 = vmatpush.msra.mxu0 0.0
        %644 = vmatpush.msra.mxu0 0.0
        %645 = vmatpush.msra.mxu0 0.0
        %646 = vmatpush.msra.mxu0 0.0
        %647 = vmatpush.msra.mxu0 0.0
        %648 = vmatpush.msra.mxu0 0.0
        %649 = vmatpush.msra.mxu0 0.0
        %650 = vmatpush.msra.mxu0 0.0
        %651 = vmatpush.msra.mxu0 0.0
        %652 = vmatpush.msra.mxu0 0.0
        %653 = vmatpush.msra.mxu0 0.0
        %v654 = vand.u32 %v408, 4294901760
        %v655 = vsub.f32 %v408, %v654
        %v656 = vand.u32 %v655, 4294901760
        %v657 = vsub.f32 %v655, %v656
        %v658 = vand.u32 %v657, 4294901760
        %659 = vmatpush.msra.mxu0 %v658
        %v660 = vand.u32 %v407, 4294901760
        %v661 = vsub.f32 %v407, %v660
        %v662 = vand.u32 %v661, 4294901760
        %v663 = vsub.f32 %v661, %v662
        %v664 = vand.u32 %v663, 4294901760
        %665 = vmatpush.msra.mxu0 %v664
        %v666 = vand.u32 %v600, 4294901760
        %667 = vmatmul.f32.gmra.mxu0 %v666
        %v668 = vpop.f32.mrf.mxu0
        %v669 = vadd.f32 %v630, %v668
        %v670 = vand.u32 %v603, 4294901760
        %671 = vmatmul.f32.gmra.mxu0 %v670
        %v672 = vpop.f32.mrf.mxu0
        %v673 = vadd.f32 %v638, %v672
        %674 = vdwg.mxu0
        %675 = vmatpush.msra.mxu0 0.0
        %676 = vmatpush.msra.mxu0 0.0
        %677 = vmatpush.msra.mxu0 0.0
        %678 = vmatpush.msra.mxu0 0.0
        %679 = vmatpush.msra.mxu0 0.0
        %680 = vmatpush.msra.mxu0 0.0
        %681 = vmatpush.msra.mxu0 0.0
        %682 = vmatpush.msra.mxu0 0.0
        %683 = vmatpush.msra.mxu0 0.0
        %684 = vmatpush.msra.mxu0 0.0
        %685 = vmatpush.msra.mxu0 0.0
        %686 = vmatpush.msra.mxu0 0.0
        %687 = vmatpush.msra.mxu0 0.0
        %688 = vmatpush.msra.mxu0 0.0
        %v689 = vand.u32 %v408, 4294901760
        %v690 = vsub.f32 %v408, %v689
        %691 = vmatpush.msra.mxu0 %v690
        %v692 = vand.u32 %v407, 4294901760
        %v693 = vsub.f32 %v407, %v692
        %694 = vmatpush.msra.mxu0 %v693
        %v695 = vand.u32 %v600, 4294901760
        %v696 = vsub.f32 %v600, %v695
        %697 = vmatmul.f32.gmra.mxu0 %v696
        %v698 = vpop.f32.mrf.mxu0
        %v699 = vadd.f32 %v669, %v698
        %v700 = vand.u32 %v603, 4294901760
        %v701 = vsub.f32 %v603, %v700
        %702 = vmatmul.f32.gmra.mxu0 %v701
        %v703 = vpop.f32.mrf.mxu0
        %v704 = vadd.f32 %v673, %v703
        %705 = vdwg.mxu0
        %706 = vmatpush.msra.mxu0 0.0
        %707 = vmatpush.msra.mxu0 0.0
        %708 = vmatpush.msra.mxu0 0.0
        %709 = vmatpush.msra.mxu0 0.0
        %710 = vmatpush.msra.mxu0 0.0
        %711 = vmatpush.msra.mxu0 0.0
        %712 = vmatpush.msra.mxu0 0.0
        %713 = vmatpush.msra.mxu0 0.0
        %714 = vmatpush.msra.mxu0 0.0
        %715 = vmatpush.msra.mxu0 0.0
        %716 = vmatpush.msra.mxu0 0.0
        %717 = vmatpush.msra.mxu0 0.0
        %718 = vmatpush.msra.mxu0 0.0
        %719 = vmatpush.msra.mxu0 0.0
        %v720 = vand.u32 %v408, 4294901760
        %721 = vmatpush.msra.mxu0 %v720
        %v722 = vand.u32 %v407, 4294901760
        %723 = vmatpush.msra.mxu0 %v722
        %v724 = vand.u32 %v600, 4294901760
        %v725 = vsub.f32 %v600, %v724
        %v726 = vand.u32 %v725, 4294901760
        %727 = vmatmul.f32.gmra.mxu0 %v726
        %v728 = vpop.f32.mrf.mxu0
        %v729 = vadd.f32 %v699, %v728
        %v730 = vand.u32 %v603, 4294901760
        %v731 = vsub.f32 %v603, %v730
        %v732 = vand.u32 %v731, 4294901760
        %733 = vmatmul.f32.gmra.mxu0 %v732
        %v734 = vpop.f32.mrf.mxu0
        %v735 = vadd.f32 %v704, %v734
        %736 = vdwg.mxu0
        %737 = vmatpush.msra.mxu0 0.0
        %738 = vmatpush.msra.mxu0 0.0
        %739 = vmatpush.msra.mxu0 0.0
        %740 = vmatpush.msra.mxu0 0.0
        %741 = vmatpush.msra.mxu0 0.0
        %742 = vmatpush.msra.mxu0 0.0
        %743 = vmatpush.msra.mxu0 0.0
        %744 = vmatpush.msra.mxu0 0.0
        %745 = vmatpush.msra.mxu0 0.0
        %746 = vmatpush.msra.mxu0 0.0
        %747 = vmatpush.msra.mxu0 0.0
        %748 = vmatpush.msra.mxu0 0.0
        %749 = vmatpush.msra.mxu0 0.0
        %750 = vmatpush.msra.mxu0 0.0
        %v751 = vand.u32 %v408, 4294901760
        %v752 = vsub.f32 %v408, %v751
        %v753 = vand.u32 %v752, 4294901760
        %754 = vmatpush.msra.mxu0 %v753
        %v755 = vand.u32 %v407, 4294901760
        %v756 = vsub.f32 %v407, %v755
        %v757 = vand.u32 %v756, 4294901760
        %758 = vmatpush.msra.mxu0 %v757
        %v759 = vand.u32 %v600, 4294901760
        %760 = vmatmul.f32.gmra.mxu0 %v759
        %v761 = vpop.f32.mrf.mxu0
        %v762 = vadd.f32 %v729, %v761
        %v763 = vand.u32 %v603, 4294901760
        %764 = vmatmul.f32.gmra.mxu0 %v763
        %v765 = vpop.f32.mrf.mxu0
        %v766 = vadd.f32 %v735, %v765
        %767 = vdwg.mxu0
        %768 = vmatpush.msra.mxu0 0.0
        %769 = vmatpush.msra.mxu0 0.0
        %770 = vmatpush.msra.mxu0 0.0
        %771 = vmatpush.msra.mxu0 0.0
        %772 = vmatpush.msra.mxu0 0.0
        %773 = vmatpush.msra.mxu0 0.0
        %774 = vmatpush.msra.mxu0 0.0
        %775 = vmatpush.msra.mxu0 0.0
        %776 = vmatpush.msra.mxu0 0.0
        %777 = vmatpush.msra.mxu0 0.0
        %778 = vmatpush.msra.mxu0 0.0
        %779 = vmatpush.msra.mxu0 0.0
        %780 = vmatpush.msra.mxu0 0.0
        %781 = vmatpush.msra.mxu0 0.0
        %v782 = vand.u32 %v408, 4294901760
        %783 = vmatpush.msra.mxu0 %v782
        %v784 = vand.u32 %v407, 4294901760
        %785 = vmatpush.msra.mxu0 %v784
        %v786 = vand.u32 %v600, 4294901760
        %787 = vmatmul.f32.gmra.mxu0 %v786
        %v788 = vpop.f32.mrf.mxu0
        %v789 = vadd.f32 %v762, %v788
        %v790 = vand.u32 %v603, 4294901760
        %791 = vmatmul.f32.gmra.mxu0 %v790
        %v792 = vpop.f32.mrf.mxu0
        %v793 = vadd.f32 %v766, %v792
        %794 = vdwg.mxu0
        %v795 = vperm.slane %v402, 0
        %v796 = vadd.f32 %v789, %v795
        %v797 = vadd.f32 %v793, %v795
        %v798 = vand.u32 %v401, 4294901760
        %799 = vmatpush.msra.mxu0 %v798
        %v800 = vand.u32 %v400, 4294901760
        %801 = vmatpush.msra.mxu0 %v800
        %v802 = vand.u32 %v399, 4294901760
        %803 = vmatpush.msra.mxu0 %v802
        %v804 = vand.u32 %v398, 4294901760
        %805 = vmatpush.msra.mxu0 %v804
        %v806 = vand.u32 %v397, 4294901760
        %807 = vmatpush.msra.mxu0 %v806
        %v808 = vand.u32 %v396, 4294901760
        %809 = vmatpush.msra.mxu0 %v808
        %v810 = vand.u32 %v395, 4294901760
        %811 = vmatpush.msra.mxu0 %v810
        %v812 = vand.u32 %v394, 4294901760
        %813 = vmatpush.msra.mxu0 %v812
        %v814 = vand.u32 %v393, 4294901760
        %815 = vmatpush.msra.mxu0 %v814
        %v816 = vand.u32 %v392, 4294901760
        %817 = vmatpush.msra.mxu0 %v816
        %v818 = vand.u32 %v391, 4294901760
        %819 = vmatpush.msra.mxu0 %v818
        %v820 = vand.u32 %v390, 4294901760
        %821 = vmatpush.msra.mxu0 %v820
        %v822 = vand.u32 %v389, 4294901760
        %823 = vmatpush.msra.mxu0 %v822
        %v824 = vand.u32 %v388, 4294901760
        %825 = vmatpush.msra.mxu0 %v824
        %v826 = vand.u32 %v387, 4294901760
        %827 = vmatpush.msra.mxu0 %v826
        %v828 = vand.u32 %v386, 4294901760
        %829 = vmatpush.msra.mxu0 %v828
        %v830 = vand.u32 %v796, 4294901760
        %v831 = vsub.f32 %v796, %v830
        %v832 = vand.u32 %v831, 4294901760
        %v833 = vsub.f32 %v831, %v832
        %v834 = vand.u32 %v833, 4294901760
        %835 = vmatmul.f32.gmra.mxu0 %v834
        %v836 = vpop.f32.mrf.mxu0
        %v837 = vadd.f32 0.0, %v836
        %v838 = vand.u32 %v797, 4294901760
        %v839 = vsub.f32 %v797, %v838
        %v840 = vand.u32 %v839, 4294901760
        %v841 = vsub.f32 %v839, %v840
        %v842 = vand.u32 %v841, 4294901760
        %843 = vmatmul.f32.gmra.mxu0 %v842
        %v844 = vpop.f32.mrf.mxu0
        %v845 = vadd.f32 0.0, %v844
        %846 = vdwg.mxu0
        %v847 = vand.u32 %v401, 4294901760
        %v848 = vsub.f32 %v401, %v847
        %v849 = vand.u32 %v848, 4294901760
        %v850 = vsub.f32 %v848, %v849
        %v851 = vand.u32 %v850, 4294901760
        %852 = vmatpush.msra.mxu0 %v851
        %v853 = vand.u32 %v400, 4294901760
        %v854 = vsub.f32 %v400, %v853
        %v855 = vand.u32 %v854, 4294901760
        %v856 = vsub.f32 %v854, %v855
        %v857 = vand.u32 %v856, 4294901760
        %858 = vmatpush.msra.mxu0 %v857
        %v859 = vand.u32 %v399, 4294901760
        %v860 = vsub.f32 %v399, %v859
        %v861 = vand.u32 %v860, 4294901760
        %v862 = vsub.f32 %v860, %v861
        %v863 = vand.u32 %v862, 4294901760
        %864 = vmatpush.msra.mxu0 %v863
        %v865 = vand.u32 %v398, 4294901760
        %v866 = vsub.f32 %v398, %v865
        %v867 = vand.u32 %v866, 4294901760
        %v868 = vsub.f32 %v866, %v867
        %v869 = vand.u32 %v868, 4294901760
        %870 = vmatpush.msra.mxu0 %v869
        %v871 = vand.u32 %v397, 4294901760
        %v872 = vsub.f32 %v397, %v871
        %v873 = vand.u32 %v872, 4294901760
        %v874 = vsub.f32 %v872, %v873
        %v875 = vand.u32 %v874, 4294901760
        %876 = vmatpush.msra.mxu0 %v875
        %v877 = vand.u32 %v396, 4294901760
        %v878 = vsub.f32 %v396, %v877
        %v879 = vand.u32 %v878, 4294901760
        %v880 = vsub.f32 %v878, %v879
        %v881 = vand.u32 %v880, 4294901760
        %882 = vmatpush.msra.mxu0 %v881
        %v883 = vand.u32 %v395, 4294901760
        %v884 = vsub.f32 %v395, %v883
        %v885 = vand.u32 %v884, 4294901760
        %v886 = vsub.f32 %v884, %v885
        %v887 = vand.u32 %v886, 4294901760
        %888 = vmatpush.msra.mxu0 %v887
        %v889 = vand.u32 %v394, 4294901760
        %v890 = vsub.f32 %v394, %v889
        %v891 = vand.u32 %v890, 4294901760
        %v892 = vsub.f32 %v890, %v891
        %v893 = vand.u32 %v892, 4294901760
        %894 = vmatpush.msra.mxu0 %v893
        %v895 = vand.u32 %v393, 4294901760
        %v896 = vsub.f32 %v393, %v895
        %v897 = vand.u32 %v896, 4294901760
        %v898 = vsub.f32 %v896, %v897
        %v899 = vand.u32 %v898, 4294901760
        %900 = vmatpush.msra.mxu0 %v899
        %v901 = vand.u32 %v392, 4294901760
        %v902 = vsub.f32 %v392, %v901
        %v903 = vand.u32 %v902, 4294901760
        %v904 = vsub.f32 %v902, %v903
        %v905 = vand.u32 %v904, 4294901760
        %906 = vmatpush.msra.mxu0 %v905
        %v907 = vand.u32 %v391, 4294901760
        %v908 = vsub.f32 %v391, %v907
        %v909 = vand.u32 %v908, 4294901760
        %v910 = vsub.f32 %v908, %v909
        %v911 = vand.u32 %v910, 4294901760
        %912 = vmatpush.msra.mxu0 %v911
        %v913 = vand.u32 %v390, 4294901760
        %v914 = vsub.f32 %v390, %v913
        %v915 = vand.u32 %v914, 4294901760
        %v916 = vsub.f32 %v914, %v915
        %v917 = vand.u32 %v916, 4294901760
        %918 = vmatpush.msra.mxu0 %v917
        %v919 = vand.u32 %v389, 4294901760
        %v920 = vsub.f32 %v389, %v919
        %v921 = vand.u32 %v920, 4294901760
        %v922 = vsub.f32 %v920, %v921
        %v923 = vand.u32 %v922, 4294901760
        %924 = vmatpush.msra.mxu0 %v923
        %v925 = vand.u32 %v388, 4294901760
        %v926 = vsub.f32 %v388, %v925
        %v927 = vand.u32 %v926, 4294901760
        %v928 = vsub.f32 %v926, %v927
        %v929 = vand.u32 %v928, 4294901760
        %930 = vmatpush.msra.mxu0 %v929
        %v931 = vand.u32 %v387, 4294901760
        %v932 = vsub.f32 %v387, %v931
        %v933 = vand.u32 %v932, 4294901760
        %v934 = vsub.f32 %v932, %v933
        %v935 = vand.u32 %v934, 4294901760
        %936 = vmatpush.msra.mxu0 %v935
        %v937 = vand.u32 %v386, 4294901760
        %v938 = vsub.f32 %v386, %v937
        %v939 = vand.u32 %v938, 4294901760
        %v940 = vsub.f32 %v938, %v939
        %v941 = vand.u32 %v940, 4294901760
        %942 = vmatpush.msra.mxu0 %v941
        %v943 = vand.u32 %v796, 4294901760
        %944 = vmatmul.f32.gmra.mxu0 %v943
        %v945 = vpop.f32.mrf.mxu0
        %v946 = vadd.f32 %v837, %v945
        %v947 = vand.u32 %v797, 4294901760
        %948 = vmatmul.f32.gmra.mxu0 %v947
        %v949 = vpop.f32.mrf.mxu0
        %v950 = vadd.f32 %v845, %v949
        %951 = vdwg.mxu0
        %v952 = vand.u32 %v401, 4294901760
        %v953 = vsub.f32 %v401, %v952
        %954 = vmatpush.msra.mxu0 %v953
        %v955 = vand.u32 %v400, 4294901760
        %v956 = vsub.f32 %v400, %v955
        %957 = vmatpush.msra.mxu0 %v956
        %v958 = vand.u32 %v399, 4294901760
        %v959 = vsub.f32 %v399, %v958
        %960 = vmatpush.msra.mxu0 %v959
        %v961 = vand.u32 %v398, 4294901760
        %v962 = vsub.f32 %v398, %v961
        %963 = vmatpush.msra.mxu0 %v962
        %v964 = vand.u32 %v397, 4294901760
        %v965 = vsub.f32 %v397, %v964
        %966 = vmatpush.msra.mxu0 %v965
        %v967 = vand.u32 %v396, 4294901760
        %v968 = vsub.f32 %v396, %v967
        %969 = vmatpush.msra.mxu0 %v968
        %v970 = vand.u32 %v395, 4294901760
        %v971 = vsub.f32 %v395, %v970
        %972 = vmatpush.msra.mxu0 %v971
        %v973 = vand.u32 %v394, 4294901760
        %v974 = vsub.f32 %v394, %v973
        %975 = vmatpush.msra.mxu0 %v974
        %v976 = vand.u32 %v393, 4294901760
        %v977 = vsub.f32 %v393, %v976
        %978 = vmatpush.msra.mxu0 %v977
        %v979 = vand.u32 %v392, 4294901760
        %v980 = vsub.f32 %v392, %v979
        %981 = vmatpush.msra.mxu0 %v980
        %v982 = vand.u32 %v391, 4294901760
        %v983 = vsub.f32 %v391, %v982
        %984 = vmatpush.msra.mxu0 %v983
        %v985 = vand.u32 %v390, 4294901760
        %v986 = vsub.f32 %v390, %v985
        %987 = vmatpush.msra.mxu0 %v986
        %v988 = vand.u32 %v389, 4294901760
        %v989 = vsub.f32 %v389, %v988
        %990 = vmatpush.msra.mxu0 %v989
        %v991 = vand.u32 %v388, 4294901760
        %v992 = vsub.f32 %v388, %v991
        %993 = vmatpush.msra.mxu0 %v992
        %v994 = vand.u32 %v387, 4294901760
        %v995 = vsub.f32 %v387, %v994
        %996 = vmatpush.msra.mxu0 %v995
        %v997 = vand.u32 %v386, 4294901760
        %v998 = vsub.f32 %v386, %v997
        %999 = vmatpush.msra.mxu0 %v998
        %v1000 = vand.u32 %v796, 4294901760
        %v1001 = vsub.f32 %v796, %v1000
        %1002 = vmatmul.f32.gmra.mxu0 %v1001
        %v1003 = vpop.f32.mrf.mxu0
        %v1004 = vadd.f32 %v946, %v1003
        %v1005 = vand.u32 %v797, 4294901760
        %v1006 = vsub.f32 %v797, %v1005
        %1007 = vmatmul.f32.gmra.mxu0 %v1006
        %v1008 = vpop.f32.mrf.mxu0
        %v1009 = vadd.f32 %v950, %v1008
        %1010 = vdwg.mxu0
        %v1011 = vand.u32 %v401, 4294901760
        %1012 = vmatpush.msra.mxu0 %v1011
        %v1013 = vand.u32 %v400, 4294901760
        %1014 = vmatpush.msra.mxu0 %v1013
        %v1015 = vand.u32 %v399, 4294901760
        %1016 = vmatpush.msra.mxu0 %v1015
        %v1017 = vand.u32 %v398, 4294901760
        %1018 = vmatpush.msra.mxu0 %v1017
        %v1019 = vand.u32 %v397, 4294901760
        %1020 = vmatpush.msra.mxu0 %v1019
        %v1021 = vand.u32 %v396, 4294901760
        %1022 = vmatpush.msra.mxu0 %v1021
        %v1023 = vand.u32 %v395, 4294901760
        %1024 = vmatpush.msra.mxu0 %v1023
        %v1025 = vand.u32 %v394, 4294901760
        %1026 = vmatpush.msra.mxu0 %v1025
        %v1027 = vand.u32 %v393, 4294901760
        %1028 = vmatpush.msra.mxu0 %v1027
        %v1029 = vand.u32 %v392, 4294901760
        %1030 = vmatpush.msra.mxu0 %v1029
        %v1031 = vand.u32 %v391, 4294901760
        %1032 = vmatpush.msra.mxu0 %v1031
        %v1033 = vand.u32 %v390, 4294901760
        %1034 = vmatpush.msra.mxu0 %v1033
        %v1035 = vand.u32 %v389, 4294901760
        %1036 = vmatpush.msra.mxu0 %v1035
        %v1037 = vand.u32 %v388, 4294901760
        %1038 = vmatpush.msra.mxu0 %v1037
        %v1039 = vand.u32 %v387, 4294901760
        %1040 = vmatpush.msra.mxu0 %v1039
        %v1041 = vand.u32 %v386, 4294901760
        %1042 = vmatpush.msra.mxu0 %v1041
        %v1043 = vand.u32 %v796, 4294901760
        %v1044 = vsub.f32 %v796, %v1043
        %v1045 = vand.u32 %v1044, 4294901760
        %1046 = vmatmul.f32.gmra.mxu0 %v1045
        %v1047 = vpop.f32.mrf.mxu0
        %v1048 = vadd.f32 %v1004, %v1047
        %v1049 = vand.u32 %v797, 4294901760
        %v1050 = vsub.f32 %v797, %v1049
        %v1051 = vand.u32 %v1050, 4294901760
        %1052 = vmatmul.f32.gmra.mxu0 %v1051
        %v1053 = vpop.f32.mrf.mxu0
        %v1054 = vadd.f32 %v1009, %v1053
        %1055 = vdwg.mxu0
        %v1056 = vand.u32 %v401, 4294901760
        %v1057 = vsub.f32 %v401, %v1056
        %v1058 = vand.u32 %v1057, 4294901760
        %1059 = vmatpush.msra.mxu0 %v1058
        %v1060 = vand.u32 %v400, 4294901760
        %v1061 = vsub.f32 %v400, %v1060
        %v1062 = vand.u32 %v1061, 4294901760
        %1063 = vmatpush.msra.mxu0 %v1062
        %v1064 = vand.u32 %v399, 4294901760
        %v1065 = vsub.f32 %v399, %v1064
        %v1066 = vand.u32 %v1065, 4294901760
        %1067 = vmatpush.msra.mxu0 %v1066
        %v1068 = vand.u32 %v398, 4294901760
        %v1069 = vsub.f32 %v398, %v1068
        %v1070 = vand.u32 %v1069, 4294901760
        %1071 = vmatpush.msra.mxu0 %v1070
        %v1072 = vand.u32 %v397, 4294901760
        %v1073 = vsub.f32 %v397, %v1072
        %v1074 = vand.u32 %v1073, 4294901760
        %1075 = vmatpush.msra.mxu0 %v1074
        %v1076 = vand.u32 %v396, 4294901760
        %v1077 = vsub.f32 %v396, %v1076
        %v1078 = vand.u32 %v1077, 4294901760
        %1079 = vmatpush.msra.mxu0 %v1078
        %v1080 = vand.u32 %v395, 4294901760
        %v1081 = vsub.f32 %v395, %v1080
        %v1082 = vand.u32 %v1081, 4294901760
        %1083 = vmatpush.msra.mxu0 %v1082
        %v1084 = vand.u32 %v394, 4294901760
        %v1085 = vsub.f32 %v394, %v1084
        %v1086 = vand.u32 %v1085, 4294901760
        %1087 = vmatpush.msra.mxu0 %v1086
        %v1088 = vand.u32 %v393, 4294901760
        %v1089 = vsub.f32 %v393, %v1088
        %v1090 = vand.u32 %v1089, 4294901760
        %1091 = vmatpush.msra.mxu0 %v1090
        %v1092 = vand.u32 %v392, 4294901760
        %v1093 = vsub.f32 %v392, %v1092
        %v1094 = vand.u32 %v1093, 4294901760
        %1095 = vmatpush.msra.mxu0 %v1094
        %v1096 = vand.u32 %v391, 4294901760
        %v1097 = vsub.f32 %v391, %v1096
        %v1098 = vand.u32 %v1097, 4294901760
        %1099 = vmatpush.msra.mxu0 %v1098
        %v1100 = vand.u32 %v390, 4294901760
        %v1101 = vsub.f32 %v390, %v1100
        %v1102 = vand.u32 %v1101, 4294901760
        %1103 = vmatpush.msra.mxu0 %v1102
        %v1104 = vand.u32 %v389, 4294901760
        %v1105 = vsub.f32 %v389, %v1104
        %v1106 = vand.u32 %v1105, 4294901760
        %1107 = vmatpush.msra.mxu0 %v1106
        %v1108 = vand.u32 %v388, 4294901760
        %v1109 = vsub.f32 %v388, %v1108
        %v1110 = vand.u32 %v1109, 4294901760
        %1111 = vmatpush.msra.mxu0 %v1110
        %v1112 = vand.u32 %v387, 4294901760
        %v1113 = vsub.f32 %v387, %v1112
        %v1114 = vand.u32 %v1113, 4294901760
        %1115 = vmatpush.msra.mxu0 %v1114
        %v1116 = vand.u32 %v386, 4294901760
        %v1117 = vsub.f32 %v386, %v1116
        %v1118 = vand.u32 %v1117, 4294901760
        %1119 = vmatpush.msra.mxu0 %v1118
        %v1120 = vand.u32 %v796, 4294901760
        %1121 = vmatmul.f32.gmra.mxu0 %v1120
        %v1122 = vpop.f32.mrf.mxu0
        %v1123 = vadd.f32 %v1048, %v1122
        %v1124 = vand.u32 %v797, 4294901760
        %1125 = vmatmul.f32.gmra.mxu0 %v1124
        %v1126 = vpop.f32.mrf.mxu0
        %v1127 = vadd.f32 %v1054, %v1126
        %1128 = vdwg.mxu0
        %v1129 = vand.u32 %v401, 4294901760
        %1130 = vmatpush.msra.mxu0 %v1129
        %v1131 = vand.u32 %v400, 4294901760
        %1132 = vmatpush.msra.mxu0 %v1131
        %v1133 = vand.u32 %v399, 4294901760
        %1134 = vmatpush.msra.mxu0 %v1133
        %v1135 = vand.u32 %v398, 4294901760
        %1136 = vmatpush.msra.mxu0 %v1135
        %v1137 = vand.u32 %v397, 4294901760
        %1138 = vmatpush.msra.mxu0 %v1137
        %v1139 = vand.u32 %v396, 4294901760
        %1140 = vmatpush.msra.mxu0 %v1139
        %v1141 = vand.u32 %v395, 4294901760
        %1142 = vmatpush.msra.mxu0 %v1141
        %v1143 = vand.u32 %v394, 4294901760
        %1144 = vmatpush.msra.mxu0 %v1143
        %v1145 = vand.u32 %v393, 4294901760
        %1146 = vmatpush.msra.mxu0 %v1145
        %v1147 = vand.u32 %v392, 4294901760
        %1148 = vmatpush.msra.mxu0 %v1147
        %v1149 = vand.u32 %v391, 4294901760
        %1150 = vmatpush.msra.mxu0 %v1149
        %v1151 = vand.u32 %v390, 4294901760
        %1152 = vmatpush.msra.mxu0 %v1151
        %v1153 = vand.u32 %v389, 4294901760
        %1154 = vmatpush.msra.mxu0 %v1153
        %v1155 = vand.u32 %v388, 4294901760
        %1156 = vmatpush.msra.mxu0 %v1155
        %v1157 = vand.u32 %v387, 4294901760
        %1158 = vmatpush.msra.mxu0 %v1157
        %v1159 = vand.u32 %v386, 4294901760
        %1160 = vmatpush.msra.mxu0 %v1159
        %v1161 = vand.u32 %v796, 4294901760
        %1162 = vmatmul.f32.gmra.mxu0 %v1161
        %v1163 = vpop.f32.mrf.mxu0
        %v1164 = vadd.f32 %v1123, %v1163
        %v1165 = vand.u32 %v797, 4294901760
        %1166 = vmatmul.f32.gmra.mxu0 %v1165
        %v1167 = vpop.f32.mrf.mxu0
        %v1168 = vadd.f32 %v1127, %v1167
        %1169 = vdwg.mxu0
        %v1170 = vsub.f32 %v796, %v1164
        %v1171 = vsub.f32 %v797, %v1168
        %v1172 = vmul.f32 %v1170, %v1170
        %v1173 = vmul.f32 %v1171, %v1171
        %v1174 = vand.u32 %v401, 4294901760
        %1175 = vmatpush.msra.mxu0 %v1174
        %v1176 = vand.u32 %v400, 4294901760
        %1177 = vmatpush.msra.mxu0 %v1176
        %v1178 = vand.u32 %v399, 4294901760
        %1179 = vmatpush.msra.mxu0 %v1178
        %v1180 = vand.u32 %v398, 4294901760
        %1181 = vmatpush.msra.mxu0 %v1180
        %v1182 = vand.u32 %v397, 4294901760
        %1183 = vmatpush.msra.mxu0 %v1182
        %v1184 = vand.u32 %v396, 4294901760
        %1185 = vmatpush.msra.mxu0 %v1184
        %v1186 = vand.u32 %v395, 4294901760
        %1187 = vmatpush.msra.mxu0 %v1186
        %v1188 = vand.u32 %v394, 4294901760
        %1189 = vmatpush.msra.mxu0 %v1188
        %v1190 = vand.u32 %v393, 4294901760
        %1191 = vmatpush.msra.mxu0 %v1190
        %v1192 = vand.u32 %v392, 4294901760
        %1193 = vmatpush.msra.mxu0 %v1192
        %v1194 = vand.u32 %v391, 4294901760
        %1195 = vmatpush.msra.mxu0 %v1194
        %v1196 = vand.u32 %v390, 4294901760
        %1197 = vmatpush.msra.mxu0 %v1196
        %v1198 = vand.u32 %v389, 4294901760
        %1199 = vmatpush.msra.mxu0 %v1198
        %v1200 = vand.u32 %v388, 4294901760
        %1201 = vmatpush.msra.mxu0 %v1200
        %v1202 = vand.u32 %v387, 4294901760
        %1203 = vmatpush.msra.mxu0 %v1202
        %v1204 = vand.u32 %v386, 4294901760
        %1205 = vmatpush.msra.mxu0 %v1204
        %v1206 = vand.u32 %v1172, 4294901760
        %v1207 = vsub.f32 %v1172, %v1206
        %v1208 = vand.u32 %v1207, 4294901760
        %v1209 = vsub.f32 %v1207, %v1208
        %v1210 = vand.u32 %v1209, 4294901760
        %1211 = vmatmul.f32.gmra.mxu0 %v1210
        %v1212 = vpop.f32.mrf.mxu0
        %v1213 = vadd.f32 1e-05, %v1212
        %v1214 = vand.u32 %v1173, 4294901760
        %v1215 = vsub.f32 %v1173, %v1214
        %v1216 = vand.u32 %v1215, 4294901760
        %v1217 = vsub.f32 %v1215, %v1216
        %v1218 = vand.u32 %v1217, 4294901760
        %1219 = vmatmul.f32.gmra.mxu0 %v1218
        %v1220 = vpop.f32.mrf.mxu0
        %v1221 = vadd.f32 1e-05, %v1220
        %1222 = vdwg.mxu0
        %v1223 = vand.u32 %v401, 4294901760
        %v1224 = vsub.f32 %v401, %v1223
        %v1225 = vand.u32 %v1224, 4294901760
        %v1226 = vsub.f32 %v1224, %v1225
        %v1227 = vand.u32 %v1226, 4294901760
        %1228 = vmatpush.msra.mxu0 %v1227
        %v1229 = vand.u32 %v400, 4294901760
        %v1230 = vsub.f32 %v400, %v1229
        %v1231 = vand.u32 %v1230, 4294901760
        %v1232 = vsub.f32 %v1230, %v1231
        %v1233 = vand.u32 %v1232, 4294901760
        %1234 = vmatpush.msra.mxu0 %v1233
        %v1235 = vand.u32 %v399, 4294901760
        %v1236 = vsub.f32 %v399, %v1235
        %v1237 = vand.u32 %v1236, 4294901760
        %v1238 = vsub.f32 %v1236, %v1237
        %v1239 = vand.u32 %v1238, 4294901760
        %1240 = vmatpush.msra.mxu0 %v1239
        %v1241 = vand.u32 %v398, 4294901760
        %v1242 = vsub.f32 %v398, %v1241
        %v1243 = vand.u32 %v1242, 4294901760
        %v1244 = vsub.f32 %v1242, %v1243
        %v1245 = vand.u32 %v1244, 4294901760
        %1246 = vmatpush.msra.mxu0 %v1245
        %v1247 = vand.u32 %v397, 4294901760
        %v1248 = vsub.f32 %v397, %v1247
        %v1249 = vand.u32 %v1248, 4294901760
        %v1250 = vsub.f32 %v1248, %v1249
        %v1251 = vand.u32 %v1250, 4294901760
        %1252 = vmatpush.msra.mxu0 %v1251
        %v1253 = vand.u32 %v396, 4294901760
        %v1254 = vsub.f32 %v396, %v1253
        %v1255 = vand.u32 %v1254, 4294901760
        %v1256 = vsub.f32 %v1254, %v1255
        %v1257 = vand.u32 %v1256, 4294901760
        %1258 = vmatpush.msra.mxu0 %v1257
        %v1259 = vand.u32 %v395, 4294901760
        %v1260 = vsub.f32 %v395, %v1259
        %v1261 = vand.u32 %v1260, 4294901760
        %v1262 = vsub.f32 %v1260, %v1261
        %v1263 = vand.u32 %v1262, 4294901760
        %1264 = vmatpush.msra.mxu0 %v1263
        %v1265 = vand.u32 %v394, 4294901760
        %v1266 = vsub.f32 %v394, %v1265
        %v1267 = vand.u32 %v1266, 4294901760
        %v1268 = vsub.f32 %v1266, %v1267
        %v1269 = vand.u32 %v1268, 4294901760
        %1270 = vmatpush.msra.mxu0 %v1269
        %v1271 = vand.u32 %v393, 4294901760
        %v1272 = vsub.f32 %v393, %v1271
        %v1273 = vand.u32 %v1272, 4294901760
        %v1274 = vsub.f32 %v1272, %v1273
        %v1275 = vand.u32 %v1274, 4294901760
        %1276 = vmatpush.msra.mxu0 %v1275
        %v1277 = vand.u32 %v392, 4294901760
        %v1278 = vsub.f32 %v392, %v1277
        %v1279 = vand.u32 %v1278, 4294901760
        %v1280 = vsub.f32 %v1278, %v1279
        %v1281 = vand.u32 %v1280, 4294901760
        %1282 = vmatpush.msra.mxu0 %v1281
        %v1283 = vand.u32 %v391, 4294901760
        %v1284 = vsub.f32 %v391, %v1283
        %v1285 = vand.u32 %v1284, 4294901760
        %v1286 = vsub.f32 %v1284, %v1285
        %v1287 = vand.u32 %v1286, 4294901760
        %1288 = vmatpush.msra.mxu0 %v1287
        %v1289 = vand.u32 %v390, 4294901760
        %v1290 = vsub.f32 %v390, %v1289
        %v1291 = vand.u32 %v1290, 4294901760
        %v1292 = vsub.f32 %v1290, %v1291
        %v1293 = vand.u32 %v1292, 4294901760
        %1294 = vmatpush.msra.mxu0 %v1293
        %v1295 = vand.u32 %v389, 4294901760
        %v1296 = vsub.f32 %v389, %v1295
        %v1297 = vand.u32 %v1296, 4294901760
        %v1298 = vsub.f32 %v1296, %v1297
        %v1299 = vand.u32 %v1298, 4294901760
        %1300 = vmatpush.msra.mxu0 %v1299
        %v1301 = vand.u32 %v388, 4294901760
        %v1302 = vsub.f32 %v388, %v1301
        %v1303 = vand.u32 %v1302, 4294901760
        %v1304 = vsub.f32 %v1302, %v1303
        %v1305 = vand.u32 %v1304, 4294901760
        %1306 = vmatpush.msra.mxu0 %v1305
        %v1307 = vand.u32 %v387, 4294901760
        %v1308 = vsub.f32 %v387, %v1307
        %v1309 = vand.u32 %v1308, 4294901760
        %v1310 = vsub.f32 %v1308, %v1309
        %v1311 = vand.u32 %v1310, 4294901760
        %1312 = vmatpush.msra.mxu0 %v1311
        %v1313 = vand.u32 %v386, 4294901760
        %v1314 = vsub.f32 %v386, %v1313
        %v1315 = vand.u32 %v1314, 4294901760
        %v1316 = vsub.f32 %v1314, %v1315
        %v1317 = vand.u32 %v1316, 4294901760
        %1318 = vmatpush.msra.mxu0 %v1317
        %v1319 = vand.u32 %v1172, 4294901760
        %1320 = vmatmul.f32.gmra.mxu0 %v1319
        %v1321 = vpop.f32.mrf.mxu0
        %v1322 = vadd.f32 %v1213, %v1321
        %v1323 = vand.u32 %v1173, 4294901760
        %1324 = vmatmul.f32.gmra.mxu0 %v1323
        %v1325 = vpop.f32.mrf.mxu0
        %v1326 = vadd.f32 %v1221, %v1325
        %1327 = vdwg.mxu0
        %v1328 = vand.u32 %v401, 4294901760
        %v1329 = vsub.f32 %v401, %v1328
        %1330 = vmatpush.msra.mxu0 %v1329
        %v1331 = vand.u32 %v400, 4294901760
        %v1332 = vsub.f32 %v400, %v1331
        %1333 = vmatpush.msra.mxu0 %v1332
        %v1334 = vand.u32 %v399, 4294901760
        %v1335 = vsub.f32 %v399, %v1334
        %1336 = vmatpush.msra.mxu0 %v1335
        %v1337 = vand.u32 %v398, 4294901760
        %v1338 = vsub.f32 %v398, %v1337
        %1339 = vmatpush.msra.mxu0 %v1338
        %v1340 = vand.u32 %v397, 4294901760
        %v1341 = vsub.f32 %v397, %v1340
        %1342 = vmatpush.msra.mxu0 %v1341
        %v1343 = vand.u32 %v396, 4294901760
        %v1344 = vsub.f32 %v396, %v1343
        %1345 = vmatpush.msra.mxu0 %v1344
        %v1346 = vand.u32 %v395, 4294901760
        %v1347 = vsub.f32 %v395, %v1346
        %1348 = vmatpush.msra.mxu0 %v1347
        %v1349 = vand.u32 %v394, 4294901760
        %v1350 = vsub.f32 %v394, %v1349
        %1351 = vmatpush.msra.mxu0 %v1350
        %v1352 = vand.u32 %v393, 4294901760
        %v1353 = vsub.f32 %v393, %v1352
        %1354 = vmatpush.msra.mxu0 %v1353
        %v1355 = vand.u32 %v392, 4294901760
        %v1356 = vsub.f32 %v392, %v1355
        %1357 = vmatpush.msra.mxu0 %v1356
        %v1358 = vand.u32 %v391, 4294901760
        %v1359 = vsub.f32 %v391, %v1358
        %1360 = vmatpush.msra.mxu0 %v1359
        %v1361 = vand.u32 %v390, 4294901760
        %v1362 = vsub.f32 %v390, %v1361
        %1363 = vmatpush.msra.mxu0 %v1362
        %v1364 = vand.u32 %v389, 4294901760
        %v1365 = vsub.f32 %v389, %v1364
        %1366 = vmatpush.msra.mxu0 %v1365
        %v1367 = vand.u32 %v388, 4294901760
        %v1368 = vsub.f32 %v388, %v1367
        %1369 = vmatpush.msra.mxu0 %v1368
        %v1370 = vand.u32 %v387, 4294901760
        %v1371 = vsub.f32 %v387, %v1370
        %1372 = vmatpush.msra.mxu0 %v1371
        %v1373 = vand.u32 %v386, 4294901760
        %v1374 = vsub.f32 %v386, %v1373
        %1375 = vmatpush.msra.mxu0 %v1374
        %v1376 = vand.u32 %v1172, 4294901760
        %v1377 = vsub.f32 %v1172, %v1376
        %1378 = vmatmul.f32.gmra.mxu0 %v1377
        %v1379 = vpop.f32.mrf.mxu0
        %v1380 = vadd.f32 %v1322, %v1379
        %v1381 = vand.u32 %v1173, 4294901760
        %v1382 = vsub.f32 %v1173, %v1381
        %1383 = vmatmul.f32.gmra.mxu0 %v1382
        %v1384 = vpop.f32.mrf.mxu0
        %v1385 = vadd.f32 %v1326, %v1384
        %1386 = vdwg.mxu0
        %v1387 = vand.u32 %v401, 4294901760
        %1388 = vmatpush.msra.mxu0 %v1387
        %v1389 = vand.u32 %v400, 4294901760
        %1390 = vmatpush.msra.mxu0 %v1389
        %v1391 = vand.u32 %v399, 4294901760
        %1392 = vmatpush.msra.mxu0 %v1391
        %v1393 = vand.u32 %v398, 4294901760
        %1394 = vmatpush.msra.mxu0 %v1393
        %v1395 = vand.u32 %v397, 4294901760
        %1396 = vmatpush.msra.mxu0 %v1395
        %v1397 = vand.u32 %v396, 4294901760
        %1398 = vmatpush.msra.mxu0 %v1397
        %v1399 = vand.u32 %v395, 4294901760
        %1400 = vmatpush.msra.mxu0 %v1399
        %v1401 = vand.u32 %v394, 4294901760
        %1402 = vmatpush.msra.mxu0 %v1401
        %v1403 = vand.u32 %v393, 4294901760
        %1404 = vmatpush.msra.mxu0 %v1403
        %v1405 = vand.u32 %v392, 4294901760
        %1406 = vmatpush.msra.mxu0 %v1405
        %v1407 = vand.u32 %v391, 4294901760
        %1408 = vmatpush.msra.mxu0 %v1407
        %v1409 = vand.u32 %v390, 4294901760
        %1410 = vmatpush.msra.mxu0 %v1409
        %v1411 = vand.u32 %v389, 4294901760
        %1412 = vmatpush.msra.mxu0 %v1411
        %v1413 = vand.u32 %v388, 4294901760
        %1414 = vmatpush.msra.mxu0 %v1413
        %v1415 = vand.u32 %v387, 4294901760
        %1416 = vmatpush.msra.mxu0 %v1415
        %v1417 = vand.u32 %v386, 4294901760
        %1418 = vmatpush.msra.mxu0 %v1417
        %v1419 = vand.u32 %v1172, 4294901760
        %v1420 = vsub.f32 %v1172, %v1419
        %v1421 = vand.u32 %v1420, 4294901760
        %1422 = vmatmul.f32.gmra.mxu0 %v1421
        %v1423 = vpop.f32.mrf.mxu0
        %v1424 = vadd.f32 %v1380, %v1423
        %v1425 = vand.u32 %v1173, 4294901760
        %v1426 = vsub.f32 %v1173, %v1425
        %v1427 = vand.u32 %v1426, 4294901760
        %1428 = vmatmul.f32.gmra.mxu0 %v1427
        %v1429 = vpop.f32.mrf.mxu0
        %v1430 = vadd.f32 %v1385, %v1429
        %1431 = vdwg.mxu0
        %v1432 = vand.u32 %v401, 4294901760
        %v1433 = vsub.f32 %v401, %v1432
        %v1434 = vand.u32 %v1433, 4294901760
        %1435 = vmatpush.msra.mxu0 %v1434
        %v1436 = vand.u32 %v400, 4294901760
        %v1437 = vsub.f32 %v400, %v1436
        %v1438 = vand.u32 %v1437, 4294901760
        %1439 = vmatpush.msra.mxu0 %v1438
        %v1440 = vand.u32 %v399, 4294901760
        %v1441 = vsub.f32 %v399, %v1440
        %v1442 = vand.u32 %v1441, 4294901760
        %1443 = vmatpush.msra.mxu0 %v1442
        %v1444 = vand.u32 %v398, 4294901760
        %v1445 = vsub.f32 %v398, %v1444
        %v1446 = vand.u32 %v1445, 4294901760
        %1447 = vmatpush.msra.mxu0 %v1446
        %v1448 = vand.u32 %v397, 4294901760
        %v1449 = vsub.f32 %v397, %v1448
        %v1450 = vand.u32 %v1449, 4294901760
        %1451 = vmatpush.msra.mxu0 %v1450
        %v1452 = vand.u32 %v396, 4294901760
        %v1453 = vsub.f32 %v396, %v1452
        %v1454 = vand.u32 %v1453, 4294901760
        %1455 = vmatpush.msra.mxu0 %v1454
        %v1456 = vand.u32 %v395, 4294901760
        %v1457 = vsub.f32 %v395, %v1456
        %v1458 = vand.u32 %v1457, 4294901760
        %1459 = vmatpush.msra.mxu0 %v1458
        %v1460 = vand.u32 %v394, 4294901760
        %v1461 = vsub.f32 %v394, %v1460
        %v1462 = vand.u32 %v1461, 4294901760
        %1463 = vmatpush.msra.mxu0 %v1462
        %v1464 = vand.u32 %v393, 4294901760
        %v1465 = vsub.f32 %v393, %v1464
        %v1466 = vand.u32 %v1465, 4294901760
        %1467 = vmatpush.msra.mxu0 %v1466
        %v1468 = vand.u32 %v392, 4294901760
        %v1469 = vsub.f32 %v392, %v1468
        %v1470 = vand.u32 %v1469, 4294901760
        %1471 = vmatpush.msra.mxu0 %v1470
        %v1472 = vand.u32 %v391, 4294901760
        %v1473 = vsub.f32 %v391, %v1472
        %v1474 = vand.u32 %v1473, 4294901760
        %1475 = vmatpush.msra.mxu0 %v1474
        %v1476 = vand.u32 %v390, 4294901760
        %v1477 = vsub.f32 %v390, %v1476
        %v1478 = vand.u32 %v1477, 4294901760
        %1479 = vmatpush.msra.mxu0 %v1478
        %v1480 = vand.u32 %v389, 4294901760
        %v1481 = vsub.f32 %v389, %v1480
        %v1482 = vand.u32 %v1481, 4294901760
        %1483 = vmatpush.msra.mxu0 %v1482
        %v1484 = vand.u32 %v388, 4294901760
        %v1485 = vsub.f32 %v388, %v1484
        %v1486 = vand.u32 %v1485, 4294901760
        %1487 = vmatpush.msra.mxu0 %v1486
        %v1488 = vand.u32 %v387, 4294901760
        %v1489 = vsub.f32 %v387, %v1488
        %v1490 = vand.u32 %v1489, 4294901760
        %1491 = vmatpush.msra.mxu0 %v1490
        %v1492 = vand.u32 %v386, 4294901760
        %v1493 = vsub.f32 %v386, %v1492
        %v1494 = vand.u32 %v1493, 4294901760
        %1495 = vmatpush.msra.mxu0 %v1494
        %v1496 = vand.u32 %v1172, 4294901760
        %1497 = vmatmul.f32.gmra.mxu0 %v1496
        %v1498 = vpop.f32.mrf.mxu0
        %v1499 = vadd.f32 %v1424, %v1498
        %v1500 = vand.u32 %v1173, 4294901760
        %1501 = vmatmul.f32.gmra.mxu0 %v1500
        %v1502 = vpop.f32.mrf.mxu0
        %v1503 = vadd.f32 %v1430, %v1502
        %1504 = vdwg.mxu0
        %v1505 = vand.u32 %v401, 4294901760
        %1506 = vmatpush.msra.mxu0 %v1505
        %v1507 = vand.u32 %v400, 4294901760
        %1508 = vmatpush.msra.mxu0 %v1507
        %v1509 = vand.u32 %v399, 4294901760
        %1510 = vmatpush.msra.mxu0 %v1509
        %v1511 = vand.u32 %v398, 4294901760
        %1512 = vmatpush.msra.mxu0 %v1511
        %v1513 = vand.u32 %v397, 4294901760
        %1514 = vmatpush.msra.mxu0 %v1513
        %v1515 = vand.u32 %v396, 4294901760
        %1516 = vmatpush.msra.mxu0 %v1515
        %v1517 = vand.u32 %v395, 4294901760
        %1518 = vmatpush.msra.mxu0 %v1517
        %v1519 = vand.u32 %v394, 4294901760
        %1520 = vmatpush.msra.mxu0 %v1519
        %v1521 = vand.u32 %v393, 4294901760
        %1522 = vmatpush.msra.mxu0 %v1521
        %v1523 = vand.u32 %v392, 4294901760
        %1524 = vmatpush.msra.mxu0 %v1523
        %v1525 = vand.u32 %v391, 4294901760
        %1526 = vmatpush.msra.mxu0 %v1525
        %v1527 = vand.u32 %v390, 4294901760
        %1528 = vmatpush.msra.mxu0 %v1527
        %v1529 = vand.u32 %v389, 4294901760
        %1530 = vmatpush.msra.mxu0 %v1529
        %v1531 = vand.u32 %v388, 4294901760
        %1532 = vmatpush.msra.mxu0 %v1531
        %v1533 = vand.u32 %v387, 4294901760
        %1534 = vmatpush.msra.mxu0 %v1533
        %v1535 = vand.u32 %v386, 4294901760
        %1536 = vmatpush.msra.mxu0 %v1535
        %v1537 = vand.u32 %v1172, 4294901760
        %1538 = vmatmul.f32.gmra.mxu0 %v1537
        %v1539 = vpop.f32.mrf.mxu0
        %v1540 = vadd.f32 %v1499, %v1539
        %v1541 = vand.u32 %v1173, 4294901760
        %1542 = vmatmul.f32.gmra.mxu0 %v1541
        %v1543 = vpop.f32.mrf.mxu0
        %v1544 = vadd.f32 %v1503, %v1543
        %1545 = vdwg.mxu0
        %v1546 = vrsqrt.pop %v1540
        %v1547 = vmul.f32 %v1546, %v1540
        %v1548 = vmul.f32 %v1547, %v1546
        %v1549 = vmul.f32 0.5, %v1548
        %v1550 = vsub.f32 1.5, %v1549
        %v1551 = vmul.f32 %v1546, %v1550
        %vm1552 = vweird.f32 %v1540
        %vm1553 = vweird.f32 %v1546
        %vm1554 = vmor %vm1552, %vm1553
        %v1555 = vsel %vm1554, %v1546, %v1551
        %v1556 = vrsqrt.pop %v1544
        %v1557 = vmul.f32 %v1556, %v1544
        %v1558 = vmul.f32 %v1557, %v1556
        %v1559 = vmul.f32 0.5, %v1558
        %v1560 = vsub.f32 1.5, %v1559
        %v1561 = vmul.f32 %v1556, %v1560
        %vm1562 = vweird.f32 %v1544
        %vm1563 = vweird.f32 %v1556
        %vm1564 = vmor %vm1562, %vm1563
        %v1565 = vsel %vm1564, %v1556, %v1561
        %v1566 = vmul.f32 %v1170, %v1555
        %v1567 = vmul.f32 %v1171, %v1565
        %v1568 = vperm.slane %v402, 1
        %v1569 = vmul.f32 %v1566, %v1568
        %v1570 = vmul.f32 %v1567, %v1568
        %v1571 = vperm.slane %v402, 2
        %v1572 = vadd.f32 %v1569, %v1571
        %v1573 = vadd.f32 %v1570, %v1571
        %v1574 = vmax.f32 %v1572, 0.0
        %v1575 = vmax.f32 %v1573, 0.0
        %v1576 = vld [vmem:[%s4] sm:$0xff]
        %v1577 = vld [vmem:[%s4 + $0x8] sm:$0xff]
        %v1578 = vld [vmem:[%s4 + $0x10] sm:$0xff]
        %v1579 = vld [vmem:[%s4 + $0x18] sm:$0xff]
        %v1580 = vld [vmem:[%s4 + $0x20] sm:$0xff]
        %v1581 = vld [vmem:[%s4 + $0x28] sm:$0xff]
        %v1582 = vld [vmem:[%s4 + $0x30] sm:$0xff]
        %v1583 = vld [vmem:[%s4 + $0x38] sm:$0xff]
        %v1584 = vld [vmem:[%s4 + $0x40] sm:$0xff]
        %v1585 = vld [vmem:[%s4 + $0x48] sm:$0xff]
        %v1586 = vld [vmem:[%s4 + $0x50] sm:$0xff]
        %v1587 = vld [vmem:[%s4 + $0x58] sm:$0xff]
        %v1588 = vld [vmem:[%s4 + $0x60] sm:$0xff]
        %v1589 = vld [vmem:[%s4 + $0x68] sm:$0xff]
        %v1590 = vld [vmem:[%s4 + $0x70] sm:$0xff]
        %v1591 = vld [vmem:[%s4 + $0x78] sm:$0xff]
        %v1592 = vperm.slane %v402, 3
        %v1593 = vand.u32 %v1591, 4294901760
        %1594 = vmatpush.msra.mxu0 %v1593
        %v1595 = vand.u32 %v1590, 4294901760
        %1596 = vmatpush.msra.mxu0 %v1595
        %v1597 = vand.u32 %v1589, 4294901760
        %1598 = vmatpush.msra.mxu0 %v1597
        %v1599 = vand.u32 %v1588, 4294901760
        %1600 = vmatpush.msra.mxu0 %v1599
        %v1601 = vand.u32 %v1587, 4294901760
        %1602 = vmatpush.msra.mxu0 %v1601
        %v1603 = vand.u32 %v1586, 4294901760
        %1604 = vmatpush.msra.mxu0 %v1603
        %v1605 = vand.u32 %v1585, 4294901760
        %1606 = vmatpush.msra.mxu0 %v1605
        %v1607 = vand.u32 %v1584, 4294901760
        %1608 = vmatpush.msra.mxu0 %v1607
        %v1609 = vand.u32 %v1583, 4294901760
        %1610 = vmatpush.msra.mxu0 %v1609
        %v1611 = vand.u32 %v1582, 4294901760
        %1612 = vmatpush.msra.mxu0 %v1611
        %v1613 = vand.u32 %v1581, 4294901760
        %1614 = vmatpush.msra.mxu0 %v1613
        %v1615 = vand.u32 %v1580, 4294901760
        %1616 = vmatpush.msra.mxu0 %v1615
        %v1617 = vand.u32 %v1579, 4294901760
        %1618 = vmatpush.msra.mxu0 %v1617
        %v1619 = vand.u32 %v1578, 4294901760
        %1620 = vmatpush.msra.mxu0 %v1619
        %v1621 = vand.u32 %v1577, 4294901760
        %1622 = vmatpush.msra.mxu0 %v1621
        %v1623 = vand.u32 %v1576, 4294901760
        %1624 = vmatpush.msra.mxu0 %v1623
        %v1625 = vand.u32 %v1574, 4294901760
        %v1626 = vsub.f32 %v1574, %v1625
        %v1627 = vand.u32 %v1626, 4294901760
        %v1628 = vsub.f32 %v1626, %v1627
        %v1629 = vand.u32 %v1628, 4294901760
        %1630 = vmatmul.f32.gmra.mxu0 %v1629
        %v1631 = vpop.f32.mrf.mxu0
        %v1632 = vadd.f32 %v1592, %v1631
        %v1633 = vand.u32 %v1575, 4294901760
        %v1634 = vsub.f32 %v1575, %v1633
        %v1635 = vand.u32 %v1634, 4294901760
        %v1636 = vsub.f32 %v1634, %v1635
        %v1637 = vand.u32 %v1636, 4294901760
        %1638 = vmatmul.f32.gmra.mxu0 %v1637
        %v1639 = vpop.f32.mrf.mxu0
        %v1640 = vadd.f32 %v1592, %v1639
        %1641 = vdwg.mxu0
        %v1642 = vand.u32 %v1591, 4294901760
        %v1643 = vsub.f32 %v1591, %v1642
        %v1644 = vand.u32 %v1643, 4294901760
        %v1645 = vsub.f32 %v1643, %v1644
        %v1646 = vand.u32 %v1645, 4294901760
        %1647 = vmatpush.msra.mxu0 %v1646
        %v1648 = vand.u32 %v1590, 4294901760
        %v1649 = vsub.f32 %v1590, %v1648
        %v1650 = vand.u32 %v1649, 4294901760
        %v1651 = vsub.f32 %v1649, %v1650
        %v1652 = vand.u32 %v1651, 4294901760
        %1653 = vmatpush.msra.mxu0 %v1652
        %v1654 = vand.u32 %v1589, 4294901760
        %v1655 = vsub.f32 %v1589, %v1654
        %v1656 = vand.u32 %v1655, 4294901760
        %v1657 = vsub.f32 %v1655, %v1656
        %v1658 = vand.u32 %v1657, 4294901760
        %1659 = vmatpush.msra.mxu0 %v1658
        %v1660 = vand.u32 %v1588, 4294901760
        %v1661 = vsub.f32 %v1588, %v1660
        %v1662 = vand.u32 %v1661, 4294901760
        %v1663 = vsub.f32 %v1661, %v1662
        %v1664 = vand.u32 %v1663, 4294901760
        %1665 = vmatpush.msra.mxu0 %v1664
        %v1666 = vand.u32 %v1587, 4294901760
        %v1667 = vsub.f32 %v1587, %v1666
        %v1668 = vand.u32 %v1667, 4294901760
        %v1669 = vsub.f32 %v1667, %v1668
        %v1670 = vand.u32 %v1669, 4294901760
        %1671 = vmatpush.msra.mxu0 %v1670
        %v1672 = vand.u32 %v1586, 4294901760
        %v1673 = vsub.f32 %v1586, %v1672
        %v1674 = vand.u32 %v1673, 4294901760
        %v1675 = vsub.f32 %v1673, %v1674
        %v1676 = vand.u32 %v1675, 4294901760
        %1677 = vmatpush.msra.mxu0 %v1676
        %v1678 = vand.u32 %v1585, 4294901760
        %v1679 = vsub.f32 %v1585, %v1678
        %v1680 = vand.u32 %v1679, 4294901760
        %v1681 = vsub.f32 %v1679, %v1680
        %v1682 = vand.u32 %v1681, 4294901760
        %1683 = vmatpush.msra.mxu0 %v1682
        %v1684 = vand.u32 %v1584, 4294901760
        %v1685 = vsub.f32 %v1584, %v1684
        %v1686 = vand.u32 %v1685, 4294901760
        %v1687 = vsub.f32 %v1685, %v1686
        %v1688 = vand.u32 %v1687, 4294901760
        %1689 = vmatpush.msra.mxu0 %v1688
        %v1690 = vand.u32 %v1583, 4294901760
        %v1691 = vsub.f32 %v1583, %v1690
        %v1692 = vand.u32 %v1691, 4294901760
        %v1693 = vsub.f32 %v1691, %v1692
        %v1694 = vand.u32 %v1693, 4294901760
        %1695 = vmatpush.msra.mxu0 %v1694
        %v1696 = vand.u32 %v1582, 4294901760
        %v1697 = vsub.f32 %v1582, %v1696
        %v1698 = vand.u32 %v1697, 4294901760
        %v1699 = vsub.f32 %v1697, %v1698
        %v1700 = vand.u32 %v1699, 4294901760
        %1701 = vmatpush.msra.mxu0 %v1700
        %v1702 = vand.u32 %v1581, 4294901760
        %v1703 = vsub.f32 %v1581, %v1702
        %v1704 = vand.u32 %v1703, 4294901760
        %v1705 = vsub.f32 %v1703, %v1704
        %v1706 = vand.u32 %v1705, 4294901760
        %1707 = vmatpush.msra.mxu0 %v1706
        %v1708 = vand.u32 %v1580, 4294901760
        %v1709 = vsub.f32 %v1580, %v1708
        %v1710 = vand.u32 %v1709, 4294901760
        %v1711 = vsub.f32 %v1709, %v1710
        %v1712 = vand.u32 %v1711, 4294901760
        %1713 = vmatpush.msra.mxu0 %v1712
        %v1714 = vand.u32 %v1579, 4294901760
        %v1715 = vsub.f32 %v1579, %v1714
        %v1716 = vand.u32 %v1715, 4294901760
        %v1717 = vsub.f32 %v1715, %v1716
        %v1718 = vand.u32 %v1717, 4294901760
        %1719 = vmatpush.msra.mxu0 %v1718
        %v1720 = vand.u32 %v1578, 4294901760
        %v1721 = vsub.f32 %v1578, %v1720
        %v1722 = vand.u32 %v1721, 4294901760
        %v1723 = vsub.f32 %v1721, %v1722
        %v1724 = vand.u32 %v1723, 4294901760
        %1725 = vmatpush.msra.mxu0 %v1724
        %v1726 = vand.u32 %v1577, 4294901760
        %v1727 = vsub.f32 %v1577, %v1726
        %v1728 = vand.u32 %v1727, 4294901760
        %v1729 = vsub.f32 %v1727, %v1728
        %v1730 = vand.u32 %v1729, 4294901760
        %1731 = vmatpush.msra.mxu0 %v1730
        %v1732 = vand.u32 %v1576, 4294901760
        %v1733 = vsub.f32 %v1576, %v1732
        %v1734 = vand.u32 %v1733, 4294901760
        %v1735 = vsub.f32 %v1733, %v1734
        %v1736 = vand.u32 %v1735, 4294901760
        %1737 = vmatpush.msra.mxu0 %v1736
        %v1738 = vand.u32 %v1574, 4294901760
        %1739 = vmatmul.f32.gmra.mxu0 %v1738
        %v1740 = vpop.f32.mrf.mxu0
        %v1741 = vadd.f32 %v1632, %v1740
        %v1742 = vand.u32 %v1575, 4294901760
        %1743 = vmatmul.f32.gmra.mxu0 %v1742
        %v1744 = vpop.f32.mrf.mxu0
        %v1745 = vadd.f32 %v1640, %v1744
        %1746 = vdwg.mxu0
        %v1747 = vand.u32 %v1591, 4294901760
        %v1748 = vsub.f32 %v1591, %v1747
        %1749 = vmatpush.msra.mxu0 %v1748
        %v1750 = vand.u32 %v1590, 4294901760
        %v1751 = vsub.f32 %v1590, %v1750
        %1752 = vmatpush.msra.mxu0 %v1751
        %v1753 = vand.u32 %v1589, 4294901760
        %v1754 = vsub.f32 %v1589, %v1753
        %1755 = vmatpush.msra.mxu0 %v1754
        %v1756 = vand.u32 %v1588, 4294901760
        %v1757 = vsub.f32 %v1588, %v1756
        %1758 = vmatpush.msra.mxu0 %v1757
        %v1759 = vand.u32 %v1587, 4294901760
        %v1760 = vsub.f32 %v1587, %v1759
        %1761 = vmatpush.msra.mxu0 %v1760
        %v1762 = vand.u32 %v1586, 4294901760
        %v1763 = vsub.f32 %v1586, %v1762
        %1764 = vmatpush.msra.mxu0 %v1763
        %v1765 = vand.u32 %v1585, 4294901760
        %v1766 = vsub.f32 %v1585, %v1765
        %1767 = vmatpush.msra.mxu0 %v1766
        %v1768 = vand.u32 %v1584, 4294901760
        %v1769 = vsub.f32 %v1584, %v1768
        %1770 = vmatpush.msra.mxu0 %v1769
        %v1771 = vand.u32 %v1583, 4294901760
        %v1772 = vsub.f32 %v1583, %v1771
        %1773 = vmatpush.msra.mxu0 %v1772
        %v1774 = vand.u32 %v1582, 4294901760
        %v1775 = vsub.f32 %v1582, %v1774
        %1776 = vmatpush.msra.mxu0 %v1775
        %v1777 = vand.u32 %v1581, 4294901760
        %v1778 = vsub.f32 %v1581, %v1777
        %1779 = vmatpush.msra.mxu0 %v1778
        %v1780 = vand.u32 %v1580, 4294901760
        %v1781 = vsub.f32 %v1580, %v1780
        %1782 = vmatpush.msra.mxu0 %v1781
        %v1783 = vand.u32 %v1579, 4294901760
        %v1784 = vsub.f32 %v1579, %v1783
        %1785 = vmatpush.msra.mxu0 %v1784
        %v1786 = vand.u32 %v1578, 4294901760
        %v1787 = vsub.f32 %v1578, %v1786
        %1788 = vmatpush.msra.mxu0 %v1787
        %v1789 = vand.u32 %v1577, 4294901760
        %v1790 = vsub.f32 %v1577, %v1789
        %1791 = vmatpush.msra.mxu0 %v1790
        %v1792 = vand.u32 %v1576, 4294901760
        %v1793 = vsub.f32 %v1576, %v1792
        %1794 = vmatpush.msra.mxu0 %v1793
        %v1795 = vand.u32 %v1574, 4294901760
        %v1796 = vsub.f32 %v1574, %v1795
        %1797 = vmatmul.f32.gmra.mxu0 %v1796
        %v1798 = vpop.f32.mrf.mxu0
        %v1799 = vadd.f32 %v1741, %v1798
        %v1800 = vand.u32 %v1575, 4294901760
        %v1801 = vsub.f32 %v1575, %v1800
        %1802 = vmatmul.f32.gmra.mxu0 %v1801
        %v1803 = vpop.f32.mrf.mxu0
        %v1804 = vadd.f32 %v1745, %v1803
        %1805 = vdwg.mxu0
        %v1806 = vand.u32 %v1591, 4294901760
        %1807 = vmatpush.msra.mxu0 %v1806
        %v1808 = vand.u32 %v1590, 4294901760
        %1809 = vmatpush.msra.mxu0 %v1808
        %v1810 = vand.u32 %v1589, 4294901760
        %1811 = vmatpush.msra.mxu0 %v1810
        %v1812 = vand.u32 %v1588, 4294901760
        %1813 = vmatpush.msra.mxu0 %v1812
        %v1814 = vand.u32 %v1587, 4294901760
        %1815 = vmatpush.msra.mxu0 %v1814
        %v1816 = vand.u32 %v1586, 4294901760
        %1817 = vmatpush.msra.mxu0 %v1816
        %v1818 = vand.u32 %v1585, 4294901760
        %1819 = vmatpush.msra.mxu0 %v1818
        %v1820 = vand.u32 %v1584, 4294901760
        %1821 = vmatpush.msra.mxu0 %v1820
        %v1822 = vand.u32 %v1583, 4294901760
        %1823 = vmatpush.msra.mxu0 %v1822
        %v1824 = vand.u32 %v1582, 4294901760
        %1825 = vmatpush.msra.mxu0 %v1824
        %v1826 = vand.u32 %v1581, 4294901760
        %1827 = vmatpush.msra.mxu0 %v1826
        %v1828 = vand.u32 %v1580, 4294901760
        %1829 = vmatpush.msra.mxu0 %v1828
        %v1830 = vand.u32 %v1579, 4294901760
        %1831 = vmatpush.msra.mxu0 %v1830
        %v1832 = vand.u32 %v1578, 4294901760
        %1833 = vmatpush.msra.mxu0 %v1832
        %v1834 = vand.u32 %v1577, 4294901760
        %1835 = vmatpush.msra.mxu0 %v1834
        %v1836 = vand.u32 %v1576, 4294901760
        %1837 = vmatpush.msra.mxu0 %v1836
        %v1838 = vand.u32 %v1574, 4294901760
        %v1839 = vsub.f32 %v1574, %v1838
        %v1840 = vand.u32 %v1839, 4294901760
        %1841 = vmatmul.f32.gmra.mxu0 %v1840
        %v1842 = vpop.f32.mrf.mxu0
        %v1843 = vadd.f32 %v1799, %v1842
        %v1844 = vand.u32 %v1575, 4294901760
        %v1845 = vsub.f32 %v1575, %v1844
        %v1846 = vand.u32 %v1845, 4294901760
        %1847 = vmatmul.f32.gmra.mxu0 %v1846
        %v1848 = vpop.f32.mrf.mxu0
        %v1849 = vadd.f32 %v1804, %v1848
        %1850 = vdwg.mxu0
        %v1851 = vand.u32 %v1591, 4294901760
        %v1852 = vsub.f32 %v1591, %v1851
        %v1853 = vand.u32 %v1852, 4294901760
        %1854 = vmatpush.msra.mxu0 %v1853
        %v1855 = vand.u32 %v1590, 4294901760
        %v1856 = vsub.f32 %v1590, %v1855
        %v1857 = vand.u32 %v1856, 4294901760
        %1858 = vmatpush.msra.mxu0 %v1857
        %v1859 = vand.u32 %v1589, 4294901760
        %v1860 = vsub.f32 %v1589, %v1859
        %v1861 = vand.u32 %v1860, 4294901760
        %1862 = vmatpush.msra.mxu0 %v1861
        %v1863 = vand.u32 %v1588, 4294901760
        %v1864 = vsub.f32 %v1588, %v1863
        %v1865 = vand.u32 %v1864, 4294901760
        %1866 = vmatpush.msra.mxu0 %v1865
        %v1867 = vand.u32 %v1587, 4294901760
        %v1868 = vsub.f32 %v1587, %v1867
        %v1869 = vand.u32 %v1868, 4294901760
        %1870 = vmatpush.msra.mxu0 %v1869
        %v1871 = vand.u32 %v1586, 4294901760
        %v1872 = vsub.f32 %v1586, %v1871
        %v1873 = vand.u32 %v1872, 4294901760
        %1874 = vmatpush.msra.mxu0 %v1873
        %v1875 = vand.u32 %v1585, 4294901760
        %v1876 = vsub.f32 %v1585, %v1875
        %v1877 = vand.u32 %v1876, 4294901760
        %1878 = vmatpush.msra.mxu0 %v1877
        %v1879 = vand.u32 %v1584, 4294901760
        %v1880 = vsub.f32 %v1584, %v1879
        %v1881 = vand.u32 %v1880, 4294901760
        %1882 = vmatpush.msra.mxu0 %v1881
        %v1883 = vand.u32 %v1583, 4294901760
        %v1884 = vsub.f32 %v1583, %v1883
        %v1885 = vand.u32 %v1884, 4294901760
        %1886 = vmatpush.msra.mxu0 %v1885
        %v1887 = vand.u32 %v1582, 4294901760
        %v1888 = vsub.f32 %v1582, %v1887
        %v1889 = vand.u32 %v1888, 4294901760
        %1890 = vmatpush.msra.mxu0 %v1889
        %v1891 = vand.u32 %v1581, 4294901760
        %v1892 = vsub.f32 %v1581, %v1891
        %v1893 = vand.u32 %v1892, 4294901760
        %1894 = vmatpush.msra.mxu0 %v1893
        %v1895 = vand.u32 %v1580, 4294901760
        %v1896 = vsub.f32 %v1580, %v1895
        %v1897 = vand.u32 %v1896, 4294901760
        %1898 = vmatpush.msra.mxu0 %v1897
        %v1899 = vand.u32 %v1579, 4294901760
        %v1900 = vsub.f32 %v1579, %v1899
        %v1901 = vand.u32 %v1900, 4294901760
        %1902 = vmatpush.msra.mxu0 %v1901
        %v1903 = vand.u32 %v1578, 4294901760
        %v1904 = vsub.f32 %v1578, %v1903
        %v1905 = vand.u32 %v1904, 4294901760
        %1906 = vmatpush.msra.mxu0 %v1905
        %v1907 = vand.u32 %v1577, 4294901760
        %v1908 = vsub.f32 %v1577, %v1907
        %v1909 = vand.u32 %v1908, 4294901760
        %1910 = vmatpush.msra.mxu0 %v1909
        %v1911 = vand.u32 %v1576, 4294901760
        %v1912 = vsub.f32 %v1576, %v1911
        %v1913 = vand.u32 %v1912, 4294901760
        %1914 = vmatpush.msra.mxu0 %v1913
        %v1915 = vand.u32 %v1574, 4294901760
        %1916 = vmatmul.f32.gmra.mxu0 %v1915
        %v1917 = vpop.f32.mrf.mxu0
        %v1918 = vadd.f32 %v1843, %v1917
        %v1919 = vand.u32 %v1575, 4294901760
        %1920 = vmatmul.f32.gmra.mxu0 %v1919
        %v1921 = vpop.f32.mrf.mxu0
        %v1922 = vadd.f32 %v1849, %v1921
        %1923 = vdwg.mxu0
        %v1924 = vand.u32 %v1591, 4294901760
        %1925 = vmatpush.msra.mxu0 %v1924
        %v1926 = vand.u32 %v1590, 4294901760
        %1927 = vmatpush.msra.mxu0 %v1926
        %v1928 = vand.u32 %v1589, 4294901760
        %1929 = vmatpush.msra.mxu0 %v1928
        %v1930 = vand.u32 %v1588, 4294901760
        %1931 = vmatpush.msra.mxu0 %v1930
        %v1932 = vand.u32 %v1587, 4294901760
        %1933 = vmatpush.msra.mxu0 %v1932
        %v1934 = vand.u32 %v1586, 4294901760
        %1935 = vmatpush.msra.mxu0 %v1934
        %v1936 = vand.u32 %v1585, 4294901760
        %1937 = vmatpush.msra.mxu0 %v1936
        %v1938 = vand.u32 %v1584, 4294901760
        %1939 = vmatpush.msra.mxu0 %v1938
        %v1940 = vand.u32 %v1583, 4294901760
        %1941 = vmatpush.msra.mxu0 %v1940
        %v1942 = vand.u32 %v1582, 4294901760
        %1943 = vmatpush.msra.mxu0 %v1942
        %v1944 = vand.u32 %v1581, 4294901760
        %1945 = vmatpush.msra.mxu0 %v1944
        %v1946 = vand.u32 %v1580, 4294901760
        %1947 = vmatpush.msra.mxu0 %v1946
        %v1948 = vand.u32 %v1579, 4294901760
        %1949 = vmatpush.msra.mxu0 %v1948
        %v1950 = vand.u32 %v1578, 4294901760
        %1951 = vmatpush.msra.mxu0 %v1950
        %v1952 = vand.u32 %v1577, 4294901760
        %1953 = vmatpush.msra.mxu0 %v1952
        %v1954 = vand.u32 %v1576, 4294901760
        %1955 = vmatpush.msra.mxu0 %v1954
        %v1956 = vand.u32 %v1574, 4294901760
        %1957 = vmatmul.f32.gmra.mxu0 %v1956
        %v1958 = vpop.f32.mrf.mxu0
        %v1959 = vadd.f32 %v1918, %v1958
        %v1960 = vand.u32 %v1575, 4294901760
        %1961 = vmatmul.f32.gmra.mxu0 %v1960
        %v1962 = vpop.f32.mrf.mxu0
        %v1963 = vadd.f32 %v1922, %v1962
        %1964 = vdwg.mxu0
        %v1965 = vand.u32 %v401, 4294901760
        %1966 = vmatpush.msra.mxu0 %v1965
        %v1967 = vand.u32 %v400, 4294901760
        %1968 = vmatpush.msra.mxu0 %v1967
        %v1969 = vand.u32 %v399, 4294901760
        %1970 = vmatpush.msra.mxu0 %v1969
        %v1971 = vand.u32 %v398, 4294901760
        %1972 = vmatpush.msra.mxu0 %v1971
        %v1973 = vand.u32 %v397, 4294901760
        %1974 = vmatpush.msra.mxu0 %v1973
        %v1975 = vand.u32 %v396, 4294901760
        %1976 = vmatpush.msra.mxu0 %v1975
        %v1977 = vand.u32 %v395, 4294901760
        %1978 = vmatpush.msra.mxu0 %v1977
        %v1979 = vand.u32 %v394, 4294901760
        %1980 = vmatpush.msra.mxu0 %v1979
        %v1981 = vand.u32 %v393, 4294901760
        %1982 = vmatpush.msra.mxu0 %v1981
        %v1983 = vand.u32 %v392, 4294901760
        %1984 = vmatpush.msra.mxu0 %v1983
        %v1985 = vand.u32 %v391, 4294901760
        %1986 = vmatpush.msra.mxu0 %v1985
        %v1987 = vand.u32 %v390, 4294901760
        %1988 = vmatpush.msra.mxu0 %v1987
        %v1989 = vand.u32 %v389, 4294901760
        %1990 = vmatpush.msra.mxu0 %v1989
        %v1991 = vand.u32 %v388, 4294901760
        %1992 = vmatpush.msra.mxu0 %v1991
        %v1993 = vand.u32 %v387, 4294901760
        %1994 = vmatpush.msra.mxu0 %v1993
        %v1995 = vand.u32 %v386, 4294901760
        %1996 = vmatpush.msra.mxu0 %v1995
        %v1997 = vand.u32 %v1959, 4294901760
        %v1998 = vsub.f32 %v1959, %v1997
        %v1999 = vand.u32 %v1998, 4294901760
        %v2000 = vsub.f32 %v1998, %v1999
        %v2001 = vand.u32 %v2000, 4294901760
        %2002 = vmatmul.f32.gmra.mxu0 %v2001
        %v2003 = vpop.f32.mrf.mxu0
        %v2004 = vadd.f32 0.0, %v2003
        %v2005 = vand.u32 %v1963, 4294901760
        %v2006 = vsub.f32 %v1963, %v2005
        %v2007 = vand.u32 %v2006, 4294901760
        %v2008 = vsub.f32 %v2006, %v2007
        %v2009 = vand.u32 %v2008, 4294901760
        %2010 = vmatmul.f32.gmra.mxu0 %v2009
        %v2011 = vpop.f32.mrf.mxu0
        %v2012 = vadd.f32 0.0, %v2011
        %2013 = vdwg.mxu0
        %v2014 = vand.u32 %v401, 4294901760
        %v2015 = vsub.f32 %v401, %v2014
        %v2016 = vand.u32 %v2015, 4294901760
        %v2017 = vsub.f32 %v2015, %v2016
        %v2018 = vand.u32 %v2017, 4294901760
        %2019 = vmatpush.msra.mxu0 %v2018
        %v2020 = vand.u32 %v400, 4294901760
        %v2021 = vsub.f32 %v400, %v2020
        %v2022 = vand.u32 %v2021, 4294901760
        %v2023 = vsub.f32 %v2021, %v2022
        %v2024 = vand.u32 %v2023, 4294901760
        %2025 = vmatpush.msra.mxu0 %v2024
        %v2026 = vand.u32 %v399, 4294901760
        %v2027 = vsub.f32 %v399, %v2026
        %v2028 = vand.u32 %v2027, 4294901760
        %v2029 = vsub.f32 %v2027, %v2028
        %v2030 = vand.u32 %v2029, 4294901760
        %2031 = vmatpush.msra.mxu0 %v2030
        %v2032 = vand.u32 %v398, 4294901760
        %v2033 = vsub.f32 %v398, %v2032
        %v2034 = vand.u32 %v2033, 4294901760
        %v2035 = vsub.f32 %v2033, %v2034
        %v2036 = vand.u32 %v2035, 4294901760
        %2037 = vmatpush.msra.mxu0 %v2036
        %v2038 = vand.u32 %v397, 4294901760
        %v2039 = vsub.f32 %v397, %v2038
        %v2040 = vand.u32 %v2039, 4294901760
        %v2041 = vsub.f32 %v2039, %v2040
        %v2042 = vand.u32 %v2041, 4294901760
        %2043 = vmatpush.msra.mxu0 %v2042
        %v2044 = vand.u32 %v396, 4294901760
        %v2045 = vsub.f32 %v396, %v2044
        %v2046 = vand.u32 %v2045, 4294901760
        %v2047 = vsub.f32 %v2045, %v2046
        %v2048 = vand.u32 %v2047, 4294901760
        %2049 = vmatpush.msra.mxu0 %v2048
        %v2050 = vand.u32 %v395, 4294901760
        %v2051 = vsub.f32 %v395, %v2050
        %v2052 = vand.u32 %v2051, 4294901760
        %v2053 = vsub.f32 %v2051, %v2052
        %v2054 = vand.u32 %v2053, 4294901760
        %2055 = vmatpush.msra.mxu0 %v2054
        %v2056 = vand.u32 %v394, 4294901760
        %v2057 = vsub.f32 %v394, %v2056
        %v2058 = vand.u32 %v2057, 4294901760
        %v2059 = vsub.f32 %v2057, %v2058
        %v2060 = vand.u32 %v2059, 4294901760
        %2061 = vmatpush.msra.mxu0 %v2060
        %v2062 = vand.u32 %v393, 4294901760
        %v2063 = vsub.f32 %v393, %v2062
        %v2064 = vand.u32 %v2063, 4294901760
        %v2065 = vsub.f32 %v2063, %v2064
        %v2066 = vand.u32 %v2065, 4294901760
        %2067 = vmatpush.msra.mxu0 %v2066
        %v2068 = vand.u32 %v392, 4294901760
        %v2069 = vsub.f32 %v392, %v2068
        %v2070 = vand.u32 %v2069, 4294901760
        %v2071 = vsub.f32 %v2069, %v2070
        %v2072 = vand.u32 %v2071, 4294901760
        %2073 = vmatpush.msra.mxu0 %v2072
        %v2074 = vand.u32 %v391, 4294901760
        %v2075 = vsub.f32 %v391, %v2074
        %v2076 = vand.u32 %v2075, 4294901760
        %v2077 = vsub.f32 %v2075, %v2076
        %v2078 = vand.u32 %v2077, 4294901760
        %2079 = vmatpush.msra.mxu0 %v2078
        %v2080 = vand.u32 %v390, 4294901760
        %v2081 = vsub.f32 %v390, %v2080
        %v2082 = vand.u32 %v2081, 4294901760
        %v2083 = vsub.f32 %v2081, %v2082
        %v2084 = vand.u32 %v2083, 4294901760
        %2085 = vmatpush.msra.mxu0 %v2084
        %v2086 = vand.u32 %v389, 4294901760
        %v2087 = vsub.f32 %v389, %v2086
        %v2088 = vand.u32 %v2087, 4294901760
        %v2089 = vsub.f32 %v2087, %v2088
        %v2090 = vand.u32 %v2089, 4294901760
        %2091 = vmatpush.msra.mxu0 %v2090
        %v2092 = vand.u32 %v388, 4294901760
        %v2093 = vsub.f32 %v388, %v2092
        %v2094 = vand.u32 %v2093, 4294901760
        %v2095 = vsub.f32 %v2093, %v2094
        %v2096 = vand.u32 %v2095, 4294901760
        %2097 = vmatpush.msra.mxu0 %v2096
        %v2098 = vand.u32 %v387, 4294901760
        %v2099 = vsub.f32 %v387, %v2098
        %v2100 = vand.u32 %v2099, 4294901760
        %v2101 = vsub.f32 %v2099, %v2100
        %v2102 = vand.u32 %v2101, 4294901760
        %2103 = vmatpush.msra.mxu0 %v2102
        %v2104 = vand.u32 %v386, 4294901760
        %v2105 = vsub.f32 %v386, %v2104
        %v2106 = vand.u32 %v2105, 4294901760
        %v2107 = vsub.f32 %v2105, %v2106
        %v2108 = vand.u32 %v2107, 4294901760
        %2109 = vmatpush.msra.mxu0 %v2108
        %v2110 = vand.u32 %v1959, 4294901760
        %2111 = vmatmul.f32.gmra.mxu0 %v2110
        %v2112 = vpop.f32.mrf.mxu0
        %v2113 = vadd.f32 %v2004, %v2112
        %v2114 = vand.u32 %v1963, 4294901760
        %2115 = vmatmul.f32.gmra.mxu0 %v2114
        %v2116 = vpop.f32.mrf.mxu0
        %v2117 = vadd.f32 %v2012, %v2116
        %2118 = vdwg.mxu0
        %v2119 = vand.u32 %v401, 4294901760
        %v2120 = vsub.f32 %v401, %v2119
        %2121 = vmatpush.msra.mxu0 %v2120
        %v2122 = vand.u32 %v400, 4294901760
        %v2123 = vsub.f32 %v400, %v2122
        %2124 = vmatpush.msra.mxu0 %v2123
        %v2125 = vand.u32 %v399, 4294901760
        %v2126 = vsub.f32 %v399, %v2125
        %2127 = vmatpush.msra.mxu0 %v2126
        %v2128 = vand.u32 %v398, 4294901760
        %v2129 = vsub.f32 %v398, %v2128
        %2130 = vmatpush.msra.mxu0 %v2129
        %v2131 = vand.u32 %v397, 4294901760
        %v2132 = vsub.f32 %v397, %v2131
        %2133 = vmatpush.msra.mxu0 %v2132
        %v2134 = vand.u32 %v396, 4294901760
        %v2135 = vsub.f32 %v396, %v2134
        %2136 = vmatpush.msra.mxu0 %v2135
        %v2137 = vand.u32 %v395, 4294901760
        %v2138 = vsub.f32 %v395, %v2137
        %2139 = vmatpush.msra.mxu0 %v2138
        %v2140 = vand.u32 %v394, 4294901760
        %v2141 = vsub.f32 %v394, %v2140
        %2142 = vmatpush.msra.mxu0 %v2141
        %v2143 = vand.u32 %v393, 4294901760
        %v2144 = vsub.f32 %v393, %v2143
        %2145 = vmatpush.msra.mxu0 %v2144
        %v2146 = vand.u32 %v392, 4294901760
        %v2147 = vsub.f32 %v392, %v2146
        %2148 = vmatpush.msra.mxu0 %v2147
        %v2149 = vand.u32 %v391, 4294901760
        %v2150 = vsub.f32 %v391, %v2149
        %2151 = vmatpush.msra.mxu0 %v2150
        %v2152 = vand.u32 %v390, 4294901760
        %v2153 = vsub.f32 %v390, %v2152
        %2154 = vmatpush.msra.mxu0 %v2153
        %v2155 = vand.u32 %v389, 4294901760
        %v2156 = vsub.f32 %v389, %v2155
        %2157 = vmatpush.msra.mxu0 %v2156
        %v2158 = vand.u32 %v388, 4294901760
        %v2159 = vsub.f32 %v388, %v2158
        %2160 = vmatpush.msra.mxu0 %v2159
        %v2161 = vand.u32 %v387, 4294901760
        %v2162 = vsub.f32 %v387, %v2161
        %2163 = vmatpush.msra.mxu0 %v2162
        %v2164 = vand.u32 %v386, 4294901760
        %v2165 = vsub.f32 %v386, %v2164
        %2166 = vmatpush.msra.mxu0 %v2165
        %v2167 = vand.u32 %v1959, 4294901760
        %v2168 = vsub.f32 %v1959, %v2167
        %2169 = vmatmul.f32.gmra.mxu0 %v2168
        %v2170 = vpop.f32.mrf.mxu0
        %v2171 = vadd.f32 %v2113, %v2170
        %v2172 = vand.u32 %v1963, 4294901760
        %v2173 = vsub.f32 %v1963, %v2172
        %2174 = vmatmul.f32.gmra.mxu0 %v2173
        %v2175 = vpop.f32.mrf.mxu0
        %v2176 = vadd.f32 %v2117, %v2175
        %2177 = vdwg.mxu0
        %v2178 = vand.u32 %v401, 4294901760
        %2179 = vmatpush.msra.mxu0 %v2178
        %v2180 = vand.u32 %v400, 4294901760
        %2181 = vmatpush.msra.mxu0 %v2180
        %v2182 = vand.u32 %v399, 4294901760
        %2183 = vmatpush.msra.mxu0 %v2182
        %v2184 = vand.u32 %v398, 4294901760
        %2185 = vmatpush.msra.mxu0 %v2184
        %v2186 = vand.u32 %v397, 4294901760
        %2187 = vmatpush.msra.mxu0 %v2186
        %v2188 = vand.u32 %v396, 4294901760
        %2189 = vmatpush.msra.mxu0 %v2188
        %v2190 = vand.u32 %v395, 4294901760
        %2191 = vmatpush.msra.mxu0 %v2190
        %v2192 = vand.u32 %v394, 4294901760
        %2193 = vmatpush.msra.mxu0 %v2192
        %v2194 = vand.u32 %v393, 4294901760
        %2195 = vmatpush.msra.mxu0 %v2194
        %v2196 = vand.u32 %v392, 4294901760
        %2197 = vmatpush.msra.mxu0 %v2196
        %v2198 = vand.u32 %v391, 4294901760
        %2199 = vmatpush.msra.mxu0 %v2198
        %v2200 = vand.u32 %v390, 4294901760
        %2201 = vmatpush.msra.mxu0 %v2200
        %v2202 = vand.u32 %v389, 4294901760
        %2203 = vmatpush.msra.mxu0 %v2202
        %v2204 = vand.u32 %v388, 4294901760
        %2205 = vmatpush.msra.mxu0 %v2204
        %v2206 = vand.u32 %v387, 4294901760
        %2207 = vmatpush.msra.mxu0 %v2206
        %v2208 = vand.u32 %v386, 4294901760
        %2209 = vmatpush.msra.mxu0 %v2208
        %v2210 = vand.u32 %v1959, 4294901760
        %v2211 = vsub.f32 %v1959, %v2210
        %v2212 = vand.u32 %v2211, 4294901760
        %2213 = vmatmul.f32.gmra.mxu0 %v2212
        %v2214 = vpop.f32.mrf.mxu0
        %v2215 = vadd.f32 %v2171, %v2214
        %v2216 = vand.u32 %v1963, 4294901760
        %v2217 = vsub.f32 %v1963, %v2216
        %v2218 = vand.u32 %v2217, 4294901760
        %2219 = vmatmul.f32.gmra.mxu0 %v2218
        %v2220 = vpop.f32.mrf.mxu0
        %v2221 = vadd.f32 %v2176, %v2220
        %2222 = vdwg.mxu0
        %v2223 = vand.u32 %v401, 4294901760
        %v2224 = vsub.f32 %v401, %v2223
        %v2225 = vand.u32 %v2224, 4294901760
        %2226 = vmatpush.msra.mxu0 %v2225
        %v2227 = vand.u32 %v400, 4294901760
        %v2228 = vsub.f32 %v400, %v2227
        %v2229 = vand.u32 %v2228, 4294901760
        %2230 = vmatpush.msra.mxu0 %v2229
        %v2231 = vand.u32 %v399, 4294901760
        %v2232 = vsub.f32 %v399, %v2231
        %v2233 = vand.u32 %v2232, 4294901760
        %2234 = vmatpush.msra.mxu0 %v2233
        %v2235 = vand.u32 %v398, 4294901760
        %v2236 = vsub.f32 %v398, %v2235
        %v2237 = vand.u32 %v2236, 4294901760
        %2238 = vmatpush.msra.mxu0 %v2237
        %v2239 = vand.u32 %v397, 4294901760
        %v2240 = vsub.f32 %v397, %v2239
        %v2241 = vand.u32 %v2240, 4294901760
        %2242 = vmatpush.msra.mxu0 %v2241
        %v2243 = vand.u32 %v396, 4294901760
        %v2244 = vsub.f32 %v396, %v2243
        %v2245 = vand.u32 %v2244, 4294901760
        %2246 = vmatpush.msra.mxu0 %v2245
        %v2247 = vand.u32 %v395, 4294901760
        %v2248 = vsub.f32 %v395, %v2247
        %v2249 = vand.u32 %v2248, 4294901760
        %2250 = vmatpush.msra.mxu0 %v2249
        %v2251 = vand.u32 %v394, 4294901760
        %v2252 = vsub.f32 %v394, %v2251
        %v2253 = vand.u32 %v2252, 4294901760
        %2254 = vmatpush.msra.mxu0 %v2253
        %v2255 = vand.u32 %v393, 4294901760
        %v2256 = vsub.f32 %v393, %v2255
        %v2257 = vand.u32 %v2256, 4294901760
        %2258 = vmatpush.msra.mxu0 %v2257
        %v2259 = vand.u32 %v392, 4294901760
        %v2260 = vsub.f32 %v392, %v2259
        %v2261 = vand.u32 %v2260, 4294901760
        %2262 = vmatpush.msra.mxu0 %v2261
        %v2263 = vand.u32 %v391, 4294901760
        %v2264 = vsub.f32 %v391, %v2263
        %v2265 = vand.u32 %v2264, 4294901760
        %2266 = vmatpush.msra.mxu0 %v2265
        %v2267 = vand.u32 %v390, 4294901760
        %v2268 = vsub.f32 %v390, %v2267
        %v2269 = vand.u32 %v2268, 4294901760
        %2270 = vmatpush.msra.mxu0 %v2269
        %v2271 = vand.u32 %v389, 4294901760
        %v2272 = vsub.f32 %v389, %v2271
        %v2273 = vand.u32 %v2272, 4294901760
        %2274 = vmatpush.msra.mxu0 %v2273
        %v2275 = vand.u32 %v388, 4294901760
        %v2276 = vsub.f32 %v388, %v2275
        %v2277 = vand.u32 %v2276, 4294901760
        %2278 = vmatpush.msra.mxu0 %v2277
        %v2279 = vand.u32 %v387, 4294901760
        %v2280 = vsub.f32 %v387, %v2279
        %v2281 = vand.u32 %v2280, 4294901760
        %2282 = vmatpush.msra.mxu0 %v2281
        %v2283 = vand.u32 %v386, 4294901760
        %v2284 = vsub.f32 %v386, %v2283
        %v2285 = vand.u32 %v2284, 4294901760
        %2286 = vmatpush.msra.mxu0 %v2285
        %v2287 = vand.u32 %v1959, 4294901760
        %2288 = vmatmul.f32.gmra.mxu0 %v2287
        %v2289 = vpop.f32.mrf.mxu0
        %v2290 = vadd.f32 %v2215, %v2289
        %v2291 = vand.u32 %v1963, 4294901760
        %2292 = vmatmul.f32.gmra.mxu0 %v2291
        %v2293 = vpop.f32.mrf.mxu0
        %v2294 = vadd.f32 %v2221, %v2293
        %2295 = vdwg.mxu0
        %v2296 = vand.u32 %v401, 4294901760
        %2297 = vmatpush.msra.mxu0 %v2296
        %v2298 = vand.u32 %v400, 4294901760
        %2299 = vmatpush.msra.mxu0 %v2298
        %v2300 = vand.u32 %v399, 4294901760
        %2301 = vmatpush.msra.mxu0 %v2300
        %v2302 = vand.u32 %v398, 4294901760
        %2303 = vmatpush.msra.mxu0 %v2302
        %v2304 = vand.u32 %v397, 4294901760
        %2305 = vmatpush.msra.mxu0 %v2304
        %v2306 = vand.u32 %v396, 4294901760
        %2307 = vmatpush.msra.mxu0 %v2306
        %v2308 = vand.u32 %v395, 4294901760
        %2309 = vmatpush.msra.mxu0 %v2308
        %v2310 = vand.u32 %v394, 4294901760
        %2311 = vmatpush.msra.mxu0 %v2310
        %v2312 = vand.u32 %v393, 4294901760
        %2313 = vmatpush.msra.mxu0 %v2312
        %v2314 = vand.u32 %v392, 4294901760
        %2315 = vmatpush.msra.mxu0 %v2314
        %v2316 = vand.u32 %v391, 4294901760
        %2317 = vmatpush.msra.mxu0 %v2316
        %v2318 = vand.u32 %v390, 4294901760
        %2319 = vmatpush.msra.mxu0 %v2318
        %v2320 = vand.u32 %v389, 4294901760
        %2321 = vmatpush.msra.mxu0 %v2320
        %v2322 = vand.u32 %v388, 4294901760
        %2323 = vmatpush.msra.mxu0 %v2322
        %v2324 = vand.u32 %v387, 4294901760
        %2325 = vmatpush.msra.mxu0 %v2324
        %v2326 = vand.u32 %v386, 4294901760
        %2327 = vmatpush.msra.mxu0 %v2326
        %v2328 = vand.u32 %v1959, 4294901760
        %2329 = vmatmul.f32.gmra.mxu0 %v2328
        %v2330 = vpop.f32.mrf.mxu0
        %v2331 = vadd.f32 %v2290, %v2330
        %v2332 = vand.u32 %v1963, 4294901760
        %2333 = vmatmul.f32.gmra.mxu0 %v2332
        %v2334 = vpop.f32.mrf.mxu0
        %v2335 = vadd.f32 %v2294, %v2334
        %2336 = vdwg.mxu0
        %v2337 = vsub.f32 %v1959, %v2331
        %v2338 = vsub.f32 %v1963, %v2335
        %v2339 = vmul.f32 %v2337, %v2337
        %v2340 = vmul.f32 %v2338, %v2338
        %v2341 = vand.u32 %v401, 4294901760
        %2342 = vmatpush.msra.mxu0 %v2341
        %v2343 = vand.u32 %v400, 4294901760
        %2344 = vmatpush.msra.mxu0 %v2343
        %v2345 = vand.u32 %v399, 4294901760
        %2346 = vmatpush.msra.mxu0 %v2345
        %v2347 = vand.u32 %v398, 4294901760
        %2348 = vmatpush.msra.mxu0 %v2347
        %v2349 = vand.u32 %v397, 4294901760
        %2350 = vmatpush.msra.mxu0 %v2349
        %v2351 = vand.u32 %v396, 4294901760
        %2352 = vmatpush.msra.mxu0 %v2351
        %v2353 = vand.u32 %v395, 4294901760
        %2354 = vmatpush.msra.mxu0 %v2353
        %v2355 = vand.u32 %v394, 4294901760
        %2356 = vmatpush.msra.mxu0 %v2355
        %v2357 = vand.u32 %v393, 4294901760
        %2358 = vmatpush.msra.mxu0 %v2357
        %v2359 = vand.u32 %v392, 4294901760
        %2360 = vmatpush.msra.mxu0 %v2359
        %v2361 = vand.u32 %v391, 4294901760
        %2362 = vmatpush.msra.mxu0 %v2361
        %v2363 = vand.u32 %v390, 4294901760
        %2364 = vmatpush.msra.mxu0 %v2363
        %v2365 = vand.u32 %v389, 4294901760
        %2366 = vmatpush.msra.mxu0 %v2365
        %v2367 = vand.u32 %v388, 4294901760
        %2368 = vmatpush.msra.mxu0 %v2367
        %v2369 = vand.u32 %v387, 4294901760
        %2370 = vmatpush.msra.mxu0 %v2369
        %v2371 = vand.u32 %v386, 4294901760
        %2372 = vmatpush.msra.mxu0 %v2371
        %v2373 = vand.u32 %v2339, 4294901760
        %v2374 = vsub.f32 %v2339, %v2373
        %v2375 = vand.u32 %v2374, 4294901760
        %v2376 = vsub.f32 %v2374, %v2375
        %v2377 = vand.u32 %v2376, 4294901760
        %2378 = vmatmul.f32.gmra.mxu0 %v2377
        %v2379 = vpop.f32.mrf.mxu0
        %v2380 = vadd.f32 1e-05, %v2379
        %v2381 = vand.u32 %v2340, 4294901760
        %v2382 = vsub.f32 %v2340, %v2381
        %v2383 = vand.u32 %v2382, 4294901760
        %v2384 = vsub.f32 %v2382, %v2383
        %v2385 = vand.u32 %v2384, 4294901760
        %2386 = vmatmul.f32.gmra.mxu0 %v2385
        %v2387 = vpop.f32.mrf.mxu0
        %v2388 = vadd.f32 1e-05, %v2387
        %2389 = vdwg.mxu0
        %v2390 = vand.u32 %v401, 4294901760
        %v2391 = vsub.f32 %v401, %v2390
        %v2392 = vand.u32 %v2391, 4294901760
        %v2393 = vsub.f32 %v2391, %v2392
        %v2394 = vand.u32 %v2393, 4294901760
        %2395 = vmatpush.msra.mxu0 %v2394
        %v2396 = vand.u32 %v400, 4294901760
        %v2397 = vsub.f32 %v400, %v2396
        %v2398 = vand.u32 %v2397, 4294901760
        %v2399 = vsub.f32 %v2397, %v2398
        %v2400 = vand.u32 %v2399, 4294901760
        %2401 = vmatpush.msra.mxu0 %v2400
        %v2402 = vand.u32 %v399, 4294901760
        %v2403 = vsub.f32 %v399, %v2402
        %v2404 = vand.u32 %v2403, 4294901760
        %v2405 = vsub.f32 %v2403, %v2404
        %v2406 = vand.u32 %v2405, 4294901760
        %2407 = vmatpush.msra.mxu0 %v2406
        %v2408 = vand.u32 %v398, 4294901760
        %v2409 = vsub.f32 %v398, %v2408
        %v2410 = vand.u32 %v2409, 4294901760
        %v2411 = vsub.f32 %v2409, %v2410
        %v2412 = vand.u32 %v2411, 4294901760
        %2413 = vmatpush.msra.mxu0 %v2412
        %v2414 = vand.u32 %v397, 4294901760
        %v2415 = vsub.f32 %v397, %v2414
        %v2416 = vand.u32 %v2415, 4294901760
        %v2417 = vsub.f32 %v2415, %v2416
        %v2418 = vand.u32 %v2417, 4294901760
        %2419 = vmatpush.msra.mxu0 %v2418
        %v2420 = vand.u32 %v396, 4294901760
        %v2421 = vsub.f32 %v396, %v2420
        %v2422 = vand.u32 %v2421, 4294901760
        %v2423 = vsub.f32 %v2421, %v2422
        %v2424 = vand.u32 %v2423, 4294901760
        %2425 = vmatpush.msra.mxu0 %v2424
        %v2426 = vand.u32 %v395, 4294901760
        %v2427 = vsub.f32 %v395, %v2426
        %v2428 = vand.u32 %v2427, 4294901760
        %v2429 = vsub.f32 %v2427, %v2428
        %v2430 = vand.u32 %v2429, 4294901760
        %2431 = vmatpush.msra.mxu0 %v2430
        %v2432 = vand.u32 %v394, 4294901760
        %v2433 = vsub.f32 %v394, %v2432
        %v2434 = vand.u32 %v2433, 4294901760
        %v2435 = vsub.f32 %v2433, %v2434
        %v2436 = vand.u32 %v2435, 4294901760
        %2437 = vmatpush.msra.mxu0 %v2436
        %v2438 = vand.u32 %v393, 4294901760
        %v2439 = vsub.f32 %v393, %v2438
        %v2440 = vand.u32 %v2439, 4294901760
        %v2441 = vsub.f32 %v2439, %v2440
        %v2442 = vand.u32 %v2441, 4294901760
        %2443 = vmatpush.msra.mxu0 %v2442
        %v2444 = vand.u32 %v392, 4294901760
        %v2445 = vsub.f32 %v392, %v2444
        %v2446 = vand.u32 %v2445, 4294901760
        %v2447 = vsub.f32 %v2445, %v2446
        %v2448 = vand.u32 %v2447, 4294901760
        %2449 = vmatpush.msra.mxu0 %v2448
        %v2450 = vand.u32 %v391, 4294901760
        %v2451 = vsub.f32 %v391, %v2450
        %v2452 = vand.u32 %v2451, 4294901760
        %v2453 = vsub.f32 %v2451, %v2452
        %v2454 = vand.u32 %v2453, 4294901760
        %2455 = vmatpush.msra.mxu0 %v2454
        %v2456 = vand.u32 %v390, 4294901760
        %v2457 = vsub.f32 %v390, %v2456
        %v2458 = vand.u32 %v2457, 4294901760
        %v2459 = vsub.f32 %v2457, %v2458
        %v2460 = vand.u32 %v2459, 4294901760
        %2461 = vmatpush.msra.mxu0 %v2460
        %v2462 = vand.u32 %v389, 4294901760
        %v2463 = vsub.f32 %v389, %v2462
        %v2464 = vand.u32 %v2463, 4294901760
        %v2465 = vsub.f32 %v2463, %v2464
        %v2466 = vand.u32 %v2465, 4294901760
        %2467 = vmatpush.msra.mxu0 %v2466
        %v2468 = vand.u32 %v388, 4294901760
        %v2469 = vsub.f32 %v388, %v2468
        %v2470 = vand.u32 %v2469, 4294901760
        %v2471 = vsub.f32 %v2469, %v2470
        %v2472 = vand.u32 %v2471, 4294901760
        %2473 = vmatpush.msra.mxu0 %v2472
        %v2474 = vand.u32 %v387, 4294901760
        %v2475 = vsub.f32 %v387, %v2474
        %v2476 = vand.u32 %v2475, 4294901760
        %v2477 = vsub.f32 %v2475, %v2476
        %v2478 = vand.u32 %v2477, 4294901760
        %2479 = vmatpush.msra.mxu0 %v2478
        %v2480 = vand.u32 %v386, 4294901760
        %v2481 = vsub.f32 %v386, %v2480
        %v2482 = vand.u32 %v2481, 4294901760
        %v2483 = vsub.f32 %v2481, %v2482
        %v2484 = vand.u32 %v2483, 4294901760
        %2485 = vmatpush.msra.mxu0 %v2484
        %v2486 = vand.u32 %v2339, 4294901760
        %2487 = vmatmul.f32.gmra.mxu0 %v2486
        %v2488 = vpop.f32.mrf.mxu0
        %v2489 = vadd.f32 %v2380, %v2488
        %v2490 = vand.u32 %v2340, 4294901760
        %2491 = vmatmul.f32.gmra.mxu0 %v2490
        %v2492 = vpop.f32.mrf.mxu0
        %v2493 = vadd.f32 %v2388, %v2492
        %2494 = vdwg.mxu0
        %v2495 = vand.u32 %v401, 4294901760
        %v2496 = vsub.f32 %v401, %v2495
        %2497 = vmatpush.msra.mxu0 %v2496
        %v2498 = vand.u32 %v400, 4294901760
        %v2499 = vsub.f32 %v400, %v2498
        %2500 = vmatpush.msra.mxu0 %v2499
        %v2501 = vand.u32 %v399, 4294901760
        %v2502 = vsub.f32 %v399, %v2501
        %2503 = vmatpush.msra.mxu0 %v2502
        %v2504 = vand.u32 %v398, 4294901760
        %v2505 = vsub.f32 %v398, %v2504
        %2506 = vmatpush.msra.mxu0 %v2505
        %v2507 = vand.u32 %v397, 4294901760
        %v2508 = vsub.f32 %v397, %v2507
        %2509 = vmatpush.msra.mxu0 %v2508
        %v2510 = vand.u32 %v396, 4294901760
        %v2511 = vsub.f32 %v396, %v2510
        %2512 = vmatpush.msra.mxu0 %v2511
        %v2513 = vand.u32 %v395, 4294901760
        %v2514 = vsub.f32 %v395, %v2513
        %2515 = vmatpush.msra.mxu0 %v2514
        %v2516 = vand.u32 %v394, 4294901760
        %v2517 = vsub.f32 %v394, %v2516
        %2518 = vmatpush.msra.mxu0 %v2517
        %v2519 = vand.u32 %v393, 4294901760
        %v2520 = vsub.f32 %v393, %v2519
        %2521 = vmatpush.msra.mxu0 %v2520
        %v2522 = vand.u32 %v392, 4294901760
        %v2523 = vsub.f32 %v392, %v2522
        %2524 = vmatpush.msra.mxu0 %v2523
        %v2525 = vand.u32 %v391, 4294901760
        %v2526 = vsub.f32 %v391, %v2525
        %2527 = vmatpush.msra.mxu0 %v2526
        %v2528 = vand.u32 %v390, 4294901760
        %v2529 = vsub.f32 %v390, %v2528
        %2530 = vmatpush.msra.mxu0 %v2529
        %v2531 = vand.u32 %v389, 4294901760
        %v2532 = vsub.f32 %v389, %v2531
        %2533 = vmatpush.msra.mxu0 %v2532
        %v2534 = vand.u32 %v388, 4294901760
        %v2535 = vsub.f32 %v388, %v2534
        %2536 = vmatpush.msra.mxu0 %v2535
        %v2537 = vand.u32 %v387, 4294901760
        %v2538 = vsub.f32 %v387, %v2537
        %2539 = vmatpush.msra.mxu0 %v2538
        %v2540 = vand.u32 %v386, 4294901760
        %v2541 = vsub.f32 %v386, %v2540
        %2542 = vmatpush.msra.mxu0 %v2541
        %v2543 = vand.u32 %v2339, 4294901760
        %v2544 = vsub.f32 %v2339, %v2543
        %2545 = vmatmul.f32.gmra.mxu0 %v2544
        %v2546 = vpop.f32.mrf.mxu0
        %v2547 = vadd.f32 %v2489, %v2546
        %v2548 = vand.u32 %v2340, 4294901760
        %v2549 = vsub.f32 %v2340, %v2548
        %2550 = vmatmul.f32.gmra.mxu0 %v2549
        %v2551 = vpop.f32.mrf.mxu0
        %v2552 = vadd.f32 %v2493, %v2551
        %2553 = vdwg.mxu0
        %v2554 = vand.u32 %v401, 4294901760
        %2555 = vmatpush.msra.mxu0 %v2554
        %v2556 = vand.u32 %v400, 4294901760
        %2557 = vmatpush.msra.mxu0 %v2556
        %v2558 = vand.u32 %v399, 4294901760
        %2559 = vmatpush.msra.mxu0 %v2558
        %v2560 = vand.u32 %v398, 4294901760
        %2561 = vmatpush.msra.mxu0 %v2560
        %v2562 = vand.u32 %v397, 4294901760
        %2563 = vmatpush.msra.mxu0 %v2562
        %v2564 = vand.u32 %v396, 4294901760
        %2565 = vmatpush.msra.mxu0 %v2564
        %v2566 = vand.u32 %v395, 4294901760
        %2567 = vmatpush.msra.mxu0 %v2566
        %v2568 = vand.u32 %v394, 4294901760
        %2569 = vmatpush.msra.mxu0 %v2568
        %v2570 = vand.u32 %v393, 4294901760
        %2571 = vmatpush.msra.mxu0 %v2570
        %v2572 = vand.u32 %v392, 4294901760
        %2573 = vmatpush.msra.mxu0 %v2572
        %v2574 = vand.u32 %v391, 4294901760
        %2575 = vmatpush.msra.mxu0 %v2574
        %v2576 = vand.u32 %v390, 4294901760
        %2577 = vmatpush.msra.mxu0 %v2576
        %v2578 = vand.u32 %v389, 4294901760
        %2579 = vmatpush.msra.mxu0 %v2578
        %v2580 = vand.u32 %v388, 4294901760
        %2581 = vmatpush.msra.mxu0 %v2580
        %v2582 = vand.u32 %v387, 4294901760
        %2583 = vmatpush.msra.mxu0 %v2582
        %v2584 = vand.u32 %v386, 4294901760
        %2585 = vmatpush.msra.mxu0 %v2584
        %v2586 = vand.u32 %v2339, 4294901760
        %v2587 = vsub.f32 %v2339, %v2586
        %v2588 = vand.u32 %v2587, 4294901760
        %2589 = vmatmul.f32.gmra.mxu0 %v2588
        %v2590 = vpop.f32.mrf.mxu0
        %v2591 = vadd.f32 %v2547, %v2590
        %v2592 = vand.u32 %v2340, 4294901760
        %v2593 = vsub.f32 %v2340, %v2592
        %v2594 = vand.u32 %v2593, 4294901760
        %2595 = vmatmul.f32.gmra.mxu0 %v2594
        %v2596 = vpop.f32.mrf.mxu0
        %v2597 = vadd.f32 %v2552, %v2596
        %2598 = vdwg.mxu0
        %v2599 = vand.u32 %v401, 4294901760
        %v2600 = vsub.f32 %v401, %v2599
        %v2601 = vand.u32 %v2600, 4294901760
        %2602 = vmatpush.msra.mxu0 %v2601
        %v2603 = vand.u32 %v400, 4294901760
        %v2604 = vsub.f32 %v400, %v2603
        %v2605 = vand.u32 %v2604, 4294901760
        %2606 = vmatpush.msra.mxu0 %v2605
        %v2607 = vand.u32 %v399, 4294901760
        %v2608 = vsub.f32 %v399, %v2607
        %v2609 = vand.u32 %v2608, 4294901760
        %2610 = vmatpush.msra.mxu0 %v2609
        %v2611 = vand.u32 %v398, 4294901760
        %v2612 = vsub.f32 %v398, %v2611
        %v2613 = vand.u32 %v2612, 4294901760
        %2614 = vmatpush.msra.mxu0 %v2613
        %v2615 = vand.u32 %v397, 4294901760
        %v2616 = vsub.f32 %v397, %v2615
        %v2617 = vand.u32 %v2616, 4294901760
        %2618 = vmatpush.msra.mxu0 %v2617
        %v2619 = vand.u32 %v396, 4294901760
        %v2620 = vsub.f32 %v396, %v2619
        %v2621 = vand.u32 %v2620, 4294901760
        %2622 = vmatpush.msra.mxu0 %v2621
        %v2623 = vand.u32 %v395, 4294901760
        %v2624 = vsub.f32 %v395, %v2623
        %v2625 = vand.u32 %v2624, 4294901760
        %2626 = vmatpush.msra.mxu0 %v2625
        %v2627 = vand.u32 %v394, 4294901760
        %v2628 = vsub.f32 %v394, %v2627
        %v2629 = vand.u32 %v2628, 4294901760
        %2630 = vmatpush.msra.mxu0 %v2629
        %v2631 = vand.u32 %v393, 4294901760
        %v2632 = vsub.f32 %v393, %v2631
        %v2633 = vand.u32 %v2632, 4294901760
        %2634 = vmatpush.msra.mxu0 %v2633
        %v2635 = vand.u32 %v392, 4294901760
        %v2636 = vsub.f32 %v392, %v2635
        %v2637 = vand.u32 %v2636, 4294901760
        %2638 = vmatpush.msra.mxu0 %v2637
        %v2639 = vand.u32 %v391, 4294901760
        %v2640 = vsub.f32 %v391, %v2639
        %v2641 = vand.u32 %v2640, 4294901760
        %2642 = vmatpush.msra.mxu0 %v2641
        %v2643 = vand.u32 %v390, 4294901760
        %v2644 = vsub.f32 %v390, %v2643
        %v2645 = vand.u32 %v2644, 4294901760
        %2646 = vmatpush.msra.mxu0 %v2645
        %v2647 = vand.u32 %v389, 4294901760
        %v2648 = vsub.f32 %v389, %v2647
        %v2649 = vand.u32 %v2648, 4294901760
        %2650 = vmatpush.msra.mxu0 %v2649
        %v2651 = vand.u32 %v388, 4294901760
        %v2652 = vsub.f32 %v388, %v2651
        %v2653 = vand.u32 %v2652, 4294901760
        %2654 = vmatpush.msra.mxu0 %v2653
        %v2655 = vand.u32 %v387, 4294901760
        %v2656 = vsub.f32 %v387, %v2655
        %v2657 = vand.u32 %v2656, 4294901760
        %2658 = vmatpush.msra.mxu0 %v2657
        %v2659 = vand.u32 %v386, 4294901760
        %v2660 = vsub.f32 %v386, %v2659
        %v2661 = vand.u32 %v2660, 4294901760
        %2662 = vmatpush.msra.mxu0 %v2661
        %v2663 = vand.u32 %v2339, 4294901760
        %2664 = vmatmul.f32.gmra.mxu0 %v2663
        %v2665 = vpop.f32.mrf.mxu0
        %v2666 = vadd.f32 %v2591, %v2665
        %v2667 = vand.u32 %v2340, 4294901760
        %2668 = vmatmul.f32.gmra.mxu0 %v2667
        %v2669 = vpop.f32.mrf.mxu0
        %v2670 = vadd.f32 %v2597, %v2669
        %2671 = vdwg.mxu0
        %v2672 = vand.u32 %v401, 4294901760
        %2673 = vmatpush.msra.mxu0 %v2672
        %v2674 = vand.u32 %v400, 4294901760
        %2675 = vmatpush.msra.mxu0 %v2674
        %v2676 = vand.u32 %v399, 4294901760
        %2677 = vmatpush.msra.mxu0 %v2676
        %v2678 = vand.u32 %v398, 4294901760
        %2679 = vmatpush.msra.mxu0 %v2678
        %v2680 = vand.u32 %v397, 4294901760
        %2681 = vmatpush.msra.mxu0 %v2680
        %v2682 = vand.u32 %v396, 4294901760
        %2683 = vmatpush.msra.mxu0 %v2682
        %v2684 = vand.u32 %v395, 4294901760
        %2685 = vmatpush.msra.mxu0 %v2684
        %v2686 = vand.u32 %v394, 4294901760
        %2687 = vmatpush.msra.mxu0 %v2686
        %v2688 = vand.u32 %v393, 4294901760
        %2689 = vmatpush.msra.mxu0 %v2688
        %v2690 = vand.u32 %v392, 4294901760
        %2691 = vmatpush.msra.mxu0 %v2690
        %v2692 = vand.u32 %v391, 4294901760
        %2693 = vmatpush.msra.mxu0 %v2692
        %v2694 = vand.u32 %v390, 4294901760
        %2695 = vmatpush.msra.mxu0 %v2694
        %v2696 = vand.u32 %v389, 4294901760
        %2697 = vmatpush.msra.mxu0 %v2696
        %v2698 = vand.u32 %v388, 4294901760
        %2699 = vmatpush.msra.mxu0 %v2698
        %v2700 = vand.u32 %v387, 4294901760
        %2701 = vmatpush.msra.mxu0 %v2700
        %v2702 = vand.u32 %v386, 4294901760
        %2703 = vmatpush.msra.mxu0 %v2702
        %v2704 = vand.u32 %v2339, 4294901760
        %2705 = vmatmul.f32.gmra.mxu0 %v2704
        %v2706 = vpop.f32.mrf.mxu0
        %v2707 = vadd.f32 %v2666, %v2706
        %v2708 = vand.u32 %v2340, 4294901760
        %2709 = vmatmul.f32.gmra.mxu0 %v2708
        %v2710 = vpop.f32.mrf.mxu0
        %v2711 = vadd.f32 %v2670, %v2710
        %2712 = vdwg.mxu0
        %v2713 = vrsqrt.pop %v2707
        %v2714 = vmul.f32 %v2713, %v2707
        %v2715 = vmul.f32 %v2714, %v2713
        %v2716 = vmul.f32 0.5, %v2715
        %v2717 = vsub.f32 1.5, %v2716
        %v2718 = vmul.f32 %v2713, %v2717
        %vm2719 = vweird.f32 %v2707
        %vm2720 = vweird.f32 %v2713
        %vm2721 = vmor %vm2719, %vm2720
        %v2722 = vsel %vm2721, %v2713, %v2718
        %v2723 = vrsqrt.pop %v2711
        %v2724 = vmul.f32 %v2723, %v2711
        %v2725 = vmul.f32 %v2724, %v2723
        %v2726 = vmul.f32 0.5, %v2725
        %v2727 = vsub.f32 1.5, %v2726
        %v2728 = vmul.f32 %v2723, %v2727
        %vm2729 = vweird.f32 %v2711
        %vm2730 = vweird.f32 %v2723
        %vm2731 = vmor %vm2729, %vm2730
        %v2732 = vsel %vm2731, %v2723, %v2728
        %v2733 = vmul.f32 %v2337, %v2722
        %v2734 = vmul.f32 %v2338, %v2732
        %v2735 = vperm.slane %v402, 4
        %v2736 = vmul.f32 %v2733, %v2735
        %v2737 = vmul.f32 %v2734, %v2735
        %v2738 = vperm.slane %v402, 5
        %v2739 = vadd.f32 %v2736, %v2738
        %v2740 = vadd.f32 %v2737, %v2738
        %v2741 = vmax.f32 %v2739, 0.0
        %v2742 = vmax.f32 %v2740, 0.0
        %v2743 = vld [vmem:[%s5] sm:$0xff]
        %v2744 = vld [vmem:[%s5 + $0x8] sm:$0xff]
        %v2745 = vld [vmem:[%s5 + $0x10] sm:$0xff]
        %v2746 = vld [vmem:[%s5 + $0x18] sm:$0xff]
        %v2747 = vld [vmem:[%s5 + $0x20] sm:$0xff]
        %v2748 = vld [vmem:[%s5 + $0x28] sm:$0xff]
        %v2749 = vld [vmem:[%s5 + $0x30] sm:$0xff]
        %v2750 = vld [vmem:[%s5 + $0x38] sm:$0xff]
        %v2751 = vld [vmem:[%s5 + $0x40] sm:$0xff]
        %v2752 = vld [vmem:[%s5 + $0x48] sm:$0xff]
        %v2753 = vld [vmem:[%s5 + $0x50] sm:$0xff]
        %v2754 = vld [vmem:[%s5 + $0x58] sm:$0xff]
        %v2755 = vld [vmem:[%s5 + $0x60] sm:$0xff]
        %v2756 = vld [vmem:[%s5 + $0x68] sm:$0xff]
        %v2757 = vld [vmem:[%s5 + $0x70] sm:$0xff]
        %v2758 = vld [vmem:[%s5 + $0x78] sm:$0xff]
        %v2759 = vperm.slane %v402, 6
        %v2760 = vand.u32 %v2758, 4294901760
        %2761 = vmatpush.msra.mxu0 %v2760
        %v2762 = vand.u32 %v2757, 4294901760
        %2763 = vmatpush.msra.mxu0 %v2762
        %v2764 = vand.u32 %v2756, 4294901760
        %2765 = vmatpush.msra.mxu0 %v2764
        %v2766 = vand.u32 %v2755, 4294901760
        %2767 = vmatpush.msra.mxu0 %v2766
        %v2768 = vand.u32 %v2754, 4294901760
        %2769 = vmatpush.msra.mxu0 %v2768
        %v2770 = vand.u32 %v2753, 4294901760
        %2771 = vmatpush.msra.mxu0 %v2770
        %v2772 = vand.u32 %v2752, 4294901760
        %2773 = vmatpush.msra.mxu0 %v2772
        %v2774 = vand.u32 %v2751, 4294901760
        %2775 = vmatpush.msra.mxu0 %v2774
        %v2776 = vand.u32 %v2750, 4294901760
        %2777 = vmatpush.msra.mxu0 %v2776
        %v2778 = vand.u32 %v2749, 4294901760
        %2779 = vmatpush.msra.mxu0 %v2778
        %v2780 = vand.u32 %v2748, 4294901760
        %2781 = vmatpush.msra.mxu0 %v2780
        %v2782 = vand.u32 %v2747, 4294901760
        %2783 = vmatpush.msra.mxu0 %v2782
        %v2784 = vand.u32 %v2746, 4294901760
        %2785 = vmatpush.msra.mxu0 %v2784
        %v2786 = vand.u32 %v2745, 4294901760
        %2787 = vmatpush.msra.mxu0 %v2786
        %v2788 = vand.u32 %v2744, 4294901760
        %2789 = vmatpush.msra.mxu0 %v2788
        %v2790 = vand.u32 %v2743, 4294901760
        %2791 = vmatpush.msra.mxu0 %v2790
        %v2792 = vand.u32 %v2741, 4294901760
        %v2793 = vsub.f32 %v2741, %v2792
        %v2794 = vand.u32 %v2793, 4294901760
        %v2795 = vsub.f32 %v2793, %v2794
        %v2796 = vand.u32 %v2795, 4294901760
        %2797 = vmatmul.f32.gmra.mxu0 %v2796
        %v2798 = vpop.f32.mrf.mxu0
        %v2799 = vadd.f32 %v2759, %v2798
        %v2800 = vand.u32 %v2742, 4294901760
        %v2801 = vsub.f32 %v2742, %v2800
        %v2802 = vand.u32 %v2801, 4294901760
        %v2803 = vsub.f32 %v2801, %v2802
        %v2804 = vand.u32 %v2803, 4294901760
        %2805 = vmatmul.f32.gmra.mxu0 %v2804
        %v2806 = vpop.f32.mrf.mxu0
        %v2807 = vadd.f32 %v2759, %v2806
        %2808 = vdwg.mxu0
        %v2809 = vand.u32 %v2758, 4294901760
        %v2810 = vsub.f32 %v2758, %v2809
        %v2811 = vand.u32 %v2810, 4294901760
        %v2812 = vsub.f32 %v2810, %v2811
        %v2813 = vand.u32 %v2812, 4294901760
        %2814 = vmatpush.msra.mxu0 %v2813
        %v2815 = vand.u32 %v2757, 4294901760
        %v2816 = vsub.f32 %v2757, %v2815
        %v2817 = vand.u32 %v2816, 4294901760
        %v2818 = vsub.f32 %v2816, %v2817
        %v2819 = vand.u32 %v2818, 4294901760
        %2820 = vmatpush.msra.mxu0 %v2819
        %v2821 = vand.u32 %v2756, 4294901760
        %v2822 = vsub.f32 %v2756, %v2821
        %v2823 = vand.u32 %v2822, 4294901760
        %v2824 = vsub.f32 %v2822, %v2823
        %v2825 = vand.u32 %v2824, 4294901760
        %2826 = vmatpush.msra.mxu0 %v2825
        %v2827 = vand.u32 %v2755, 4294901760
        %v2828 = vsub.f32 %v2755, %v2827
        %v2829 = vand.u32 %v2828, 4294901760
        %v2830 = vsub.f32 %v2828, %v2829
        %v2831 = vand.u32 %v2830, 4294901760
        %2832 = vmatpush.msra.mxu0 %v2831
        %v2833 = vand.u32 %v2754, 4294901760
        %v2834 = vsub.f32 %v2754, %v2833
        %v2835 = vand.u32 %v2834, 4294901760
        %v2836 = vsub.f32 %v2834, %v2835
        %v2837 = vand.u32 %v2836, 4294901760
        %2838 = vmatpush.msra.mxu0 %v2837
        %v2839 = vand.u32 %v2753, 4294901760
        %v2840 = vsub.f32 %v2753, %v2839
        %v2841 = vand.u32 %v2840, 4294901760
        %v2842 = vsub.f32 %v2840, %v2841
        %v2843 = vand.u32 %v2842, 4294901760
        %2844 = vmatpush.msra.mxu0 %v2843
        %v2845 = vand.u32 %v2752, 4294901760
        %v2846 = vsub.f32 %v2752, %v2845
        %v2847 = vand.u32 %v2846, 4294901760
        %v2848 = vsub.f32 %v2846, %v2847
        %v2849 = vand.u32 %v2848, 4294901760
        %2850 = vmatpush.msra.mxu0 %v2849
        %v2851 = vand.u32 %v2751, 4294901760
        %v2852 = vsub.f32 %v2751, %v2851
        %v2853 = vand.u32 %v2852, 4294901760
        %v2854 = vsub.f32 %v2852, %v2853
        %v2855 = vand.u32 %v2854, 4294901760
        %2856 = vmatpush.msra.mxu0 %v2855
        %v2857 = vand.u32 %v2750, 4294901760
        %v2858 = vsub.f32 %v2750, %v2857
        %v2859 = vand.u32 %v2858, 4294901760
        %v2860 = vsub.f32 %v2858, %v2859
        %v2861 = vand.u32 %v2860, 4294901760
        %2862 = vmatpush.msra.mxu0 %v2861
        %v2863 = vand.u32 %v2749, 4294901760
        %v2864 = vsub.f32 %v2749, %v2863
        %v2865 = vand.u32 %v2864, 4294901760
        %v2866 = vsub.f32 %v2864, %v2865
        %v2867 = vand.u32 %v2866, 4294901760
        %2868 = vmatpush.msra.mxu0 %v2867
        %v2869 = vand.u32 %v2748, 4294901760
        %v2870 = vsub.f32 %v2748, %v2869
        %v2871 = vand.u32 %v2870, 4294901760
        %v2872 = vsub.f32 %v2870, %v2871
        %v2873 = vand.u32 %v2872, 4294901760
        %2874 = vmatpush.msra.mxu0 %v2873
        %v2875 = vand.u32 %v2747, 4294901760
        %v2876 = vsub.f32 %v2747, %v2875
        %v2877 = vand.u32 %v2876, 4294901760
        %v2878 = vsub.f32 %v2876, %v2877
        %v2879 = vand.u32 %v2878, 4294901760
        %2880 = vmatpush.msra.mxu0 %v2879
        %v2881 = vand.u32 %v2746, 4294901760
        %v2882 = vsub.f32 %v2746, %v2881
        %v2883 = vand.u32 %v2882, 4294901760
        %v2884 = vsub.f32 %v2882, %v2883
        %v2885 = vand.u32 %v2884, 4294901760
        %2886 = vmatpush.msra.mxu0 %v2885
        %v2887 = vand.u32 %v2745, 4294901760
        %v2888 = vsub.f32 %v2745, %v2887
        %v2889 = vand.u32 %v2888, 4294901760
        %v2890 = vsub.f32 %v2888, %v2889
        %v2891 = vand.u32 %v2890, 4294901760
        %2892 = vmatpush.msra.mxu0 %v2891
        %v2893 = vand.u32 %v2744, 4294901760
        %v2894 = vsub.f32 %v2744, %v2893
        %v2895 = vand.u32 %v2894, 4294901760
        %v2896 = vsub.f32 %v2894, %v2895
        %v2897 = vand.u32 %v2896, 4294901760
        %2898 = vmatpush.msra.mxu0 %v2897
        %v2899 = vand.u32 %v2743, 4294901760
        %v2900 = vsub.f32 %v2743, %v2899
        %v2901 = vand.u32 %v2900, 4294901760
        %v2902 = vsub.f32 %v2900, %v2901
        %v2903 = vand.u32 %v2902, 4294901760
        %2904 = vmatpush.msra.mxu0 %v2903
        %v2905 = vand.u32 %v2741, 4294901760
        %2906 = vmatmul.f32.gmra.mxu0 %v2905
        %v2907 = vpop.f32.mrf.mxu0
        %v2908 = vadd.f32 %v2799, %v2907
        %v2909 = vand.u32 %v2742, 4294901760
        %2910 = vmatmul.f32.gmra.mxu0 %v2909
        %v2911 = vpop.f32.mrf.mxu0
        %v2912 = vadd.f32 %v2807, %v2911
        %2913 = vdwg.mxu0
        %v2914 = vand.u32 %v2758, 4294901760
        %v2915 = vsub.f32 %v2758, %v2914
        %2916 = vmatpush.msra.mxu0 %v2915
        %v2917 = vand.u32 %v2757, 4294901760
        %v2918 = vsub.f32 %v2757, %v2917
        %2919 = vmatpush.msra.mxu0 %v2918
        %v2920 = vand.u32 %v2756, 4294901760
        %v2921 = vsub.f32 %v2756, %v2920
        %2922 = vmatpush.msra.mxu0 %v2921
        %v2923 = vand.u32 %v2755, 4294901760
        %v2924 = vsub.f32 %v2755, %v2923
        %2925 = vmatpush.msra.mxu0 %v2924
        %v2926 = vand.u32 %v2754, 4294901760
        %v2927 = vsub.f32 %v2754, %v2926
        %2928 = vmatpush.msra.mxu0 %v2927
        %v2929 = vand.u32 %v2753, 4294901760
        %v2930 = vsub.f32 %v2753, %v2929
        %2931 = vmatpush.msra.mxu0 %v2930
        %v2932 = vand.u32 %v2752, 4294901760
        %v2933 = vsub.f32 %v2752, %v2932
        %2934 = vmatpush.msra.mxu0 %v2933
        %v2935 = vand.u32 %v2751, 4294901760
        %v2936 = vsub.f32 %v2751, %v2935
        %2937 = vmatpush.msra.mxu0 %v2936
        %v2938 = vand.u32 %v2750, 4294901760
        %v2939 = vsub.f32 %v2750, %v2938
        %2940 = vmatpush.msra.mxu0 %v2939
        %v2941 = vand.u32 %v2749, 4294901760
        %v2942 = vsub.f32 %v2749, %v2941
        %2943 = vmatpush.msra.mxu0 %v2942
        %v2944 = vand.u32 %v2748, 4294901760
        %v2945 = vsub.f32 %v2748, %v2944
        %2946 = vmatpush.msra.mxu0 %v2945
        %v2947 = vand.u32 %v2747, 4294901760
        %v2948 = vsub.f32 %v2747, %v2947
        %2949 = vmatpush.msra.mxu0 %v2948
        %v2950 = vand.u32 %v2746, 4294901760
        %v2951 = vsub.f32 %v2746, %v2950
        %2952 = vmatpush.msra.mxu0 %v2951
        %v2953 = vand.u32 %v2745, 4294901760
        %v2954 = vsub.f32 %v2745, %v2953
        %2955 = vmatpush.msra.mxu0 %v2954
        %v2956 = vand.u32 %v2744, 4294901760
        %v2957 = vsub.f32 %v2744, %v2956
        %2958 = vmatpush.msra.mxu0 %v2957
        %v2959 = vand.u32 %v2743, 4294901760
        %v2960 = vsub.f32 %v2743, %v2959
        %2961 = vmatpush.msra.mxu0 %v2960
        %v2962 = vand.u32 %v2741, 4294901760
        %v2963 = vsub.f32 %v2741, %v2962
        %2964 = vmatmul.f32.gmra.mxu0 %v2963
        %v2965 = vpop.f32.mrf.mxu0
        %v2966 = vadd.f32 %v2908, %v2965
        %v2967 = vand.u32 %v2742, 4294901760
        %v2968 = vsub.f32 %v2742, %v2967
        %2969 = vmatmul.f32.gmra.mxu0 %v2968
        %v2970 = vpop.f32.mrf.mxu0
        %v2971 = vadd.f32 %v2912, %v2970
        %2972 = vdwg.mxu0
        %v2973 = vand.u32 %v2758, 4294901760
        %2974 = vmatpush.msra.mxu0 %v2973
        %v2975 = vand.u32 %v2757, 4294901760
        %2976 = vmatpush.msra.mxu0 %v2975
        %v2977 = vand.u32 %v2756, 4294901760
        %2978 = vmatpush.msra.mxu0 %v2977
        %v2979 = vand.u32 %v2755, 4294901760
        %2980 = vmatpush.msra.mxu0 %v2979
        %v2981 = vand.u32 %v2754, 4294901760
        %2982 = vmatpush.msra.mxu0 %v2981
        %v2983 = vand.u32 %v2753, 4294901760
        %2984 = vmatpush.msra.mxu0 %v2983
        %v2985 = vand.u32 %v2752, 4294901760
        %2986 = vmatpush.msra.mxu0 %v2985
        %v2987 = vand.u32 %v2751, 4294901760
        %2988 = vmatpush.msra.mxu0 %v2987
        %v2989 = vand.u32 %v2750, 4294901760
        %2990 = vmatpush.msra.mxu0 %v2989
        %v2991 = vand.u32 %v2749, 4294901760
        %2992 = vmatpush.msra.mxu0 %v2991
        %v2993 = vand.u32 %v2748, 4294901760
        %2994 = vmatpush.msra.mxu0 %v2993
        %v2995 = vand.u32 %v2747, 4294901760
        %2996 = vmatpush.msra.mxu0 %v2995
        %v2997 = vand.u32 %v2746, 4294901760
        %2998 = vmatpush.msra.mxu0 %v2997
        %v2999 = vand.u32 %v2745, 4294901760
        %3000 = vmatpush.msra.mxu0 %v2999
        %v3001 = vand.u32 %v2744, 4294901760
        %3002 = vmatpush.msra.mxu0 %v3001
        %v3003 = vand.u32 %v2743, 4294901760
        %3004 = vmatpush.msra.mxu0 %v3003
        %v3005 = vand.u32 %v2741, 4294901760
        %v3006 = vsub.f32 %v2741, %v3005
        %v3007 = vand.u32 %v3006, 4294901760
        %3008 = vmatmul.f32.gmra.mxu0 %v3007
        %v3009 = vpop.f32.mrf.mxu0
        %v3010 = vadd.f32 %v2966, %v3009
        %v3011 = vand.u32 %v2742, 4294901760
        %v3012 = vsub.f32 %v2742, %v3011
        %v3013 = vand.u32 %v3012, 4294901760
        %3014 = vmatmul.f32.gmra.mxu0 %v3013
        %v3015 = vpop.f32.mrf.mxu0
        %v3016 = vadd.f32 %v2971, %v3015
        %3017 = vdwg.mxu0
        %v3018 = vand.u32 %v2758, 4294901760
        %v3019 = vsub.f32 %v2758, %v3018
        %v3020 = vand.u32 %v3019, 4294901760
        %3021 = vmatpush.msra.mxu0 %v3020
        %v3022 = vand.u32 %v2757, 4294901760
        %v3023 = vsub.f32 %v2757, %v3022
        %v3024 = vand.u32 %v3023, 4294901760
        %3025 = vmatpush.msra.mxu0 %v3024
        %v3026 = vand.u32 %v2756, 4294901760
        %v3027 = vsub.f32 %v2756, %v3026
        %v3028 = vand.u32 %v3027, 4294901760
        %3029 = vmatpush.msra.mxu0 %v3028
        %v3030 = vand.u32 %v2755, 4294901760
        %v3031 = vsub.f32 %v2755, %v3030
        %v3032 = vand.u32 %v3031, 4294901760
        %3033 = vmatpush.msra.mxu0 %v3032
        %v3034 = vand.u32 %v2754, 4294901760
        %v3035 = vsub.f32 %v2754, %v3034
        %v3036 = vand.u32 %v3035, 4294901760
        %3037 = vmatpush.msra.mxu0 %v3036
        %v3038 = vand.u32 %v2753, 4294901760
        %v3039 = vsub.f32 %v2753, %v3038
        %v3040 = vand.u32 %v3039, 4294901760
        %3041 = vmatpush.msra.mxu0 %v3040
        %v3042 = vand.u32 %v2752, 4294901760
        %v3043 = vsub.f32 %v2752, %v3042
        %v3044 = vand.u32 %v3043, 4294901760
        %3045 = vmatpush.msra.mxu0 %v3044
        %v3046 = vand.u32 %v2751, 4294901760
        %v3047 = vsub.f32 %v2751, %v3046
        %v3048 = vand.u32 %v3047, 4294901760
        %3049 = vmatpush.msra.mxu0 %v3048
        %v3050 = vand.u32 %v2750, 4294901760
        %v3051 = vsub.f32 %v2750, %v3050
        %v3052 = vand.u32 %v3051, 4294901760
        %3053 = vmatpush.msra.mxu0 %v3052
        %v3054 = vand.u32 %v2749, 4294901760
        %v3055 = vsub.f32 %v2749, %v3054
        %v3056 = vand.u32 %v3055, 4294901760
        %3057 = vmatpush.msra.mxu0 %v3056
        %v3058 = vand.u32 %v2748, 4294901760
        %v3059 = vsub.f32 %v2748, %v3058
        %v3060 = vand.u32 %v3059, 4294901760
        %3061 = vmatpush.msra.mxu0 %v3060
        %v3062 = vand.u32 %v2747, 4294901760
        %v3063 = vsub.f32 %v2747, %v3062
        %v3064 = vand.u32 %v3063, 4294901760
        %3065 = vmatpush.msra.mxu0 %v3064
        %v3066 = vand.u32 %v2746, 4294901760
        %v3067 = vsub.f32 %v2746, %v3066
        %v3068 = vand.u32 %v3067, 4294901760
        %3069 = vmatpush.msra.mxu0 %v3068
        %v3070 = vand.u32 %v2745, 4294901760
        %v3071 = vsub.f32 %v2745, %v3070
        %v3072 = vand.u32 %v3071, 4294901760
        %3073 = vmatpush.msra.mxu0 %v3072
        %v3074 = vand.u32 %v2744, 4294901760
        %v3075 = vsub.f32 %v2744, %v3074
        %v3076 = vand.u32 %v3075, 4294901760
        %3077 = vmatpush.msra.mxu0 %v3076
        %v3078 = vand.u32 %v2743, 4294901760
        %v3079 = vsub.f32 %v2743, %v3078
        %v3080 = vand.u32 %v3079, 4294901760
        %3081 = vmatpush.msra.mxu0 %v3080
        %v3082 = vand.u32 %v2741, 4294901760
        %3083 = vmatmul.f32.gmra.mxu0 %v3082
        %v3084 = vpop.f32.mrf.mxu0
        %v3085 = vadd.f32 %v3010, %v3084
        %v3086 = vand.u32 %v2742, 4294901760
        %3087 = vmatmul.f32.gmra.mxu0 %v3086
        %v3088 = vpop.f32.mrf.mxu0
        %v3089 = vadd.f32 %v3016, %v3088
        %3090 = vdwg.mxu0
        %v3091 = vand.u32 %v2758, 4294901760
        %3092 = vmatpush.msra.mxu0 %v3091
        %v3093 = vand.u32 %v2757, 4294901760
        %3094 = vmatpush.msra.mxu0 %v3093
        %v3095 = vand.u32 %v2756, 4294901760
        %3096 = vmatpush.msra.mxu0 %v3095
        %v3097 = vand.u32 %v2755, 4294901760
        %3098 = vmatpush.msra.mxu0 %v3097
        %v3099 = vand.u32 %v2754, 4294901760
        %3100 = vmatpush.msra.mxu0 %v3099
        %v3101 = vand.u32 %v2753, 4294901760
        %3102 = vmatpush.msra.mxu0 %v3101
        %v3103 = vand.u32 %v2752, 4294901760
        %3104 = vmatpush.msra.mxu0 %v3103
        %v3105 = vand.u32 %v2751, 4294901760
        %3106 = vmatpush.msra.mxu0 %v3105
        %v3107 = vand.u32 %v2750, 4294901760
        %3108 = vmatpush.msra.mxu0 %v3107
        %v3109 = vand.u32 %v2749, 4294901760
        %3110 = vmatpush.msra.mxu0 %v3109
        %v3111 = vand.u32 %v2748, 4294901760
        %3112 = vmatpush.msra.mxu0 %v3111
        %v3113 = vand.u32 %v2747, 4294901760
        %3114 = vmatpush.msra.mxu0 %v3113
        %v3115 = vand.u32 %v2746, 4294901760
        %3116 = vmatpush.msra.mxu0 %v3115
        %v3117 = vand.u32 %v2745, 4294901760
        %3118 = vmatpush.msra.mxu0 %v3117
        %v3119 = vand.u32 %v2744, 4294901760
        %3120 = vmatpush.msra.mxu0 %v3119
        %v3121 = vand.u32 %v2743, 4294901760
        %3122 = vmatpush.msra.mxu0 %v3121
        %v3123 = vand.u32 %v2741, 4294901760
        %3124 = vmatmul.f32.gmra.mxu0 %v3123
        %v3125 = vpop.f32.mrf.mxu0
        %v3126 = vadd.f32 %v3085, %v3125
        %v3127 = vand.u32 %v2742, 4294901760
        %3128 = vmatmul.f32.gmra.mxu0 %v3127
        %v3129 = vpop.f32.mrf.mxu0
        %v3130 = vadd.f32 %v3089, %v3129
        %3131 = vdwg.mxu0
        %vm3132 = vcmask 15360
        %3133 = vst.msk [vmem:[%s352] sm:$0xff] %vm3132, %v3126
        %3134 = vst.msk [vmem:[%s352 + $0x8] sm:$0xff] %vm3132, %v3130
        %s3135 = sand.u32 %s206, 1
        %s3136 = sand.u32 %s206, 1
        %s3137 = smul.addr %s3136, 16
        %s3138 = scalar_lea.vmem [#allocation4], %s3137
        // Predicated region
        $region57: #{tpu_custom_call.1} parent=51 // pred_check
          %p3139 = pneg %p216
        $region58: #{tpu_custom_call.1} parent=51 // pred_check_branch
          %3141 = sbr.rel (%p3139) target = $region60
        $region59: #{tpu_custom_call.1} parent=51 // pred_region
          %s3142 = smul.u32 2, %s20
          %s3143 = ssub.s32 3, %s3142
          %p3144 = scmp.lt.s32.totalorder %s3143, 2
          %s3145 = scalar_select %p3144, %s3143, 2
          %s3146 = smul.u32 8, %s3145
          %p3147 = scmp.ne.s32.totalorder 0, %s3146
          %s3148 = smul.addr %s3142, 8
          %s3149 = scalar_lea.vmem %s8, %s3148
          // Predicated region
          $region61: #{tpu_custom_call.1} parent=59 // pred_check
            %p3150 = pneg %p3147
          $region62: #{tpu_custom_call.1} parent=59 // pred_check_branch
            %3152 = sbr.rel (%p3150) target = $region64
          $region63: #{tpu_custom_call.1} parent=59 // pred_region
            // Predicated region
            $region65: #{tpu_custom_call.1} parent=63 // pred_check
              _
            $region66: #{tpu_custom_call.1} parent=63 // pred_check_branch
              %3154 = sbr.rel (0) target = $region68
            $region67: #{tpu_custom_call.1} parent=63 // pred_region
              // Predicated region
              $region87: #{tpu_custom_call.1} parent=67 // pred_check
                _
              $region88: #{tpu_custom_call.1} parent=67 // pred_check_branch
                %3206 = sbr.rel (0) target = $region90
              $region89: #{tpu_custom_call.1} parent=67 // pred_region
                %s3207 = sshrl.u32 %s3145, 1
                // While loop
                $region91: #{tpu_custom_call.1} parent=89 // loop_pre_header
                  _
                $region92: #{tpu_custom_call.1} parent=89 // loop_header
                  %s3209 = sphi 0, %s3211
                  %p3210 = scmp.ge.s32.totalorder %s3209, %s3207
                  %s3214 = sphi 0, %s3223
                  %s3215 = sphi %s3138, %s3226
                  %s3216 = sphi %s3149, %s3227
                $region93: #{tpu_custom_call.1} parent=89 // loop_header_branch
                  %3213 = sbr.rel (%p3210) target = $region97
                $region94: #{tpu_custom_call.1} parent=89 // loop_body
                  %v3217 = vld [vmem:[%s3215] sm:$0xff]
                  %3218 = vst [vmem:[%s3216] sm:$0xff] %v3217
                  %v3219 = vld [vmem:[%s3215 + $0x8] sm:$0xff]
                  %3220 = vst [vmem:[%s3216 + $0x8] sm:$0xff] %v3219
                  %s3221 = sadd.s32 1, %s3214
                  %p3222 = scmp.ge.s32.totalorder %s3221, %s3207
                  %s3223 = scalar_select %p3222, 0, %s3221
                  %s3224 = smul.u32 %s3223, 16
                  %s3225 = smul.u32 %s3223, 16
                  %s3226 = scalar_lea.vmem %s3138, %s3224 [#allocation4]
                  %s3227 = scalar_lea.vmem %s3149, %s3225
                $region95: #{tpu_custom_call.1} parent=89 // loop_footer
                  %s3211 = sadd.s32 %s3209, 1
                $region96: #{tpu_custom_call.1} parent=89 // loop_footer_branch
                  %3208 = sbr.rel target = $region92
                $region97: #{tpu_custom_call.1} parent=89 // loop_exit
                  _
                %s3228 = sshrl.u32 %s3145, 1
                %s3229 = sand.u32 %s3145, 1
                %s3230 = smul.u32 %s3228, 2
                %s3231 = smul.u32 8, %s3230
                %s3232 = scalar_lea.vmem %s3138, %s3231 [#allocation4]
                %s3233 = smul.u32 8, %s3230
                %s3234 = scalar_lea.vmem %s3149, %s3233
                // While loop
                $region98: #{tpu_custom_call.1} parent=89 // loop_pre_header
                  _
                $region99: #{tpu_custom_call.1} parent=89 // loop_header
                  %s3236 = sphi 0, %s3238
                  %p3237 = scmp.ge.s32.totalorder %s3236, %s3229
                  %s3241 = sphi 0, %s3248
                  %s3242 = sphi %s3232, %s3251
                  %s3243 = sphi %s3234, %s3252
                $region100: #{tpu_custom_call.1} parent=89 // loop_header_branch
                  %3240 = sbr.rel (%p3237) target = $region104
                $region101: #{tpu_custom_call.1} parent=89 // loop_body
                  %v3244 = vld [vmem:[%s3242] sm:$0xff]
                  %3245 = vst [vmem:[%s3243] sm:$0xff] %v3244
                  %s3246 = sadd.s32 1, %s3241
                  %p3247 = scmp.ge.s32.totalorder %s3246, %s3229
                  %s3248 = scalar_select %p3247, 0, %s3246
                  %s3249 = smul.u32 %s3248, 8
                  %s3250 = smul.u32 %s3248, 8
                  %s3251 = scalar_lea.vmem %s3232, %s3249 [#allocation4]
                  %s3252 = scalar_lea.vmem %s3234, %s3250
                $region102: #{tpu_custom_call.1} parent=89 // loop_footer
                  %s3238 = sadd.s32 %s3236, 1
                $region103: #{tpu_custom_call.1} parent=89 // loop_footer_branch
                  %3235 = sbr.rel target = $region99
                $region104: #{tpu_custom_call.1} parent=89 // loop_exit
                  _
              $region90: #{tpu_custom_call.1} parent=67 // pred_fallthru
                _
              // Predicated region
              $region105: #{tpu_custom_call.1} parent=67 // pred_check
                _
              $region106: #{tpu_custom_call.1} parent=67 // pred_check_branch
                %3254 = sbr.rel target = $region108
              $region107: #{tpu_custom_call.1} parent=67 // pred_region
                _
              $region108: #{tpu_custom_call.1} parent=67 // pred_fallthru
                _
            $region68: #{tpu_custom_call.1} parent=63 // pred_fallthru
              _
            // Predicated region
            $region69: #{tpu_custom_call.1} parent=63 // pred_check
              _
            $region70: #{tpu_custom_call.1} parent=63 // pred_check_branch
              %3156 = sbr.rel target = $region72
            $region71: #{tpu_custom_call.1} parent=63 // pred_region
              %s3158 = ssub.s32 256, 1
              %s3159 = sshrl.u32 %s3145, 1
              // While loop
              $region73: #{tpu_custom_call.1} parent=71 // loop_pre_header
                _
              $region74: #{tpu_custom_call.1} parent=71 // loop_header
                %s3161 = sphi 0, %s3163
                %p3162 = scmp.ge.s32.totalorder %s3161, %s3159
                %s3166 = sphi 0, %s3175
                %s3167 = sphi %s3138, %s3178
                %s3168 = sphi %s3149, %s3179
              $region75: #{tpu_custom_call.1} parent=71 // loop_header_branch
                %3165 = sbr.rel (%p3162) target = $region79
              $region76: #{tpu_custom_call.1} parent=71 // loop_body
                %v3169 = vld [vmem:[%s3167] sm:%s3158]
                %3170 = vst [vmem:[%s3168] sm:%s3158] %v3169
                %v3171 = vld [vmem:[%s3167 + $0x8] sm:%s3158]
                %3172 = vst [vmem:[%s3168 + $0x8] sm:%s3158] %v3171
                %s3173 = sadd.s32 1, %s3166
                %p3174 = scmp.ge.s32.totalorder %s3173, %s3159
                %s3175 = scalar_select %p3174, 0, %s3173
                %s3176 = smul.u32 %s3175, 16
                %s3177 = smul.u32 %s3175, 16
                %s3178 = scalar_lea.vmem %s3138, %s3176 [#allocation4]
                %s3179 = scalar_lea.vmem %s3149, %s3177
              $region77: #{tpu_custom_call.1} parent=71 // loop_footer
                %s3163 = sadd.s32 %s3161, 1
              $region78: #{tpu_custom_call.1} parent=71 // loop_footer_branch
                %3160 = sbr.rel target = $region74
              $region79: #{tpu_custom_call.1} parent=71 // loop_exit
                _
              %s3180 = sshrl.u32 %s3145, 1
              %s3181 = sand.u32 %s3145, 1
              %s3182 = smul.u32 %s3180, 2
              %s3183 = smul.u32 8, %s3182
              %s3184 = scalar_lea.vmem %s3138, %s3183 [#allocation4]
              %s3185 = smul.u32 8, %s3182
              %s3186 = scalar_lea.vmem %s3149, %s3185
              // While loop
              $region80: #{tpu_custom_call.1} parent=71 // loop_pre_header
                _
              $region81: #{tpu_custom_call.1} parent=71 // loop_header
                %s3188 = sphi 0, %s3190
                %p3189 = scmp.ge.s32.totalorder %s3188, %s3181
                %s3193 = sphi 0, %s3200
                %s3194 = sphi %s3184, %s3203
                %s3195 = sphi %s3186, %s3204
              $region82: #{tpu_custom_call.1} parent=71 // loop_header_branch
                %3192 = sbr.rel (%p3189) target = $region86
              $region83: #{tpu_custom_call.1} parent=71 // loop_body
                %v3196 = vld [vmem:[%s3194] sm:%s3158]
                %3197 = vst [vmem:[%s3195] sm:%s3158] %v3196
                %s3198 = sadd.s32 1, %s3193
                %p3199 = scmp.ge.s32.totalorder %s3198, %s3181
                %s3200 = scalar_select %p3199, 0, %s3198
                %s3201 = smul.u32 %s3200, 8
                %s3202 = smul.u32 %s3200, 8
                %s3203 = scalar_lea.vmem %s3184, %s3201 [#allocation4]
                %s3204 = scalar_lea.vmem %s3186, %s3202
              $region84: #{tpu_custom_call.1} parent=71 // loop_footer
                %s3190 = sadd.s32 %s3188, 1
              $region85: #{tpu_custom_call.1} parent=71 // loop_footer_branch
                %3187 = sbr.rel target = $region81
              $region86: #{tpu_custom_call.1} parent=71 // loop_exit
                _
            $region72: #{tpu_custom_call.1} parent=63 // pred_fallthru
              _
          $region64: #{tpu_custom_call.1} parent=59 // pred_fallthru
            _
          %3255 = vnop
        $region60: #{tpu_custom_call.1} parent=51 // pred_fallthru
          _
      $region52: #{tpu_custom_call.1} parent=5 // pred_fallthru
        _
      %p3256 = scmp.le.s32.totalorder 2, %s15
      // Predicated region
      $region109: #{tpu_custom_call.1} parent=5 // pred_check
        %p3257 = pneg %p3256
      $region110: #{tpu_custom_call.1} parent=5 // pred_check_branch
        %3259 = sbr.rel (%p3257) target = $region112
      $region111: #{tpu_custom_call.1} parent=5 // pred_region
        %s3260 = ssub.s32 %s15, 2
        // Predicated region
        $region113: #{tpu_custom_call.1} parent=111 // pred_check
          %p3261 = pneg %p222
        $region114: #{tpu_custom_call.1} parent=111 // pred_check_branch
          %3263 = sbr.rel (%p3261) target = $region116
        $region115: #{tpu_custom_call.1} parent=111 // pred_region
          %s3264 = sand.u32 %s207, 1
          %s3265 = sand.u32 %s207, 1
          %s3266 = smul.addr %s3265, 16
          %s3267 = scalar_lea.vmem [#allocation4], %s3266
        $region116: #{tpu_custom_call.1} parent=111 // pred_fallthru
          _
      $region112: #{tpu_custom_call.1} parent=5 // pred_fallthru
        _
    $region6: #{tpu_custom_call.1} parent=1 // loop_footer
      %s19 = sadd.s32 1, %s15
    $region7: #{tpu_custom_call.1} parent=1 // loop_footer_branch
      %14 = sbr.rel target = $region3
    $region8: #{tpu_custom_call.1} parent=1 // loop_exit
      _
    %3268 = vsyncpa [#allocation3], 1
    %s3269 = scalar_lea.sflag [#allocation3], 1
    %3270 = vsyncpa %s3269, 1

</llo_original>
